<compile_context>
chip_gen: v5e
topology: v5e:2x2
jax: 0.10.0
libtpu: 0.0.40
codegen_flags: <defaults>
</compile_context>

<pallas_src>
import functools

import numpy as np
import jax
import jax.numpy as jnp
from jax.experimental import pallas as pl
from jax.experimental.pallas import tpu as pltpu


# --------------------------------------------------------------------------
# helpers (host side)
# --------------------------------------------------------------------------
def _mish(x):
    # x * tanh(softplus(x)), numerically stable softplus, all in f32
    sp = jnp.maximum(x, 0.0) + jnp.log1p(jnp.exp(-jnp.abs(x)))
    return x * jnp.tanh(sp)


def _interp_matrix(n_in, n_out):
    # Bilinear interpolation matrix matching torch Upsample(align_corners=True)
    i = np.arange(n_out, dtype=np.float64)
    src = i * (n_in - 1) / (n_out - 1)
    lo = np.clip(np.floor(src).astype(np.int64), 0, n_in - 1)
    hi = np.minimum(lo + 1, n_in - 1)
    frac = src - lo
    a = np.zeros((n_out, n_in), dtype=np.float64)
    a[np.arange(n_out), lo] += 1.0 - frac
    a[np.arange(n_out), hi] += frac
    return a.astype(np.float32)


def _geometry(H0, W0):
    # Flat "padded width" layout: each spatial row is [left pad, Wo data, right pads].
    # Widen the right padding a little so the anchor count N = Ho*Wp is a
    # multiple of 128 -> fully unmasked lane-dense stores.
    Ho, Wo = 2 * H0, 2 * W0
    Wp = Wo + 2
    while (Ho * Wp) % 128 != 0 and Wp < Wo + 2 + 128:
        Wp += 1
    Hrows = Ho + 3                       # 1 top pad row + Ho data rows + 2 bottom pad rows
    N = Ho * Wp                          # conv output anchors (top-left of 3x3 window)
    Ltot = Hrows * Wp                    # flat padded image length
    shifts = tuple(dh * Wp + dw for dh in range(3) for dw in range(3))
    pad_off = Wp + 1                     # where h1 gets re-embedded for conv2
    return Ho, Wo, Wp, Hrows, N, Ltot, shifts, pad_off


# --------------------------------------------------------------------------
# fused Pallas kernel (per batch element)
# --------------------------------------------------------------------------
def _fused_kernel(x_ref, mt_ref, w1_ref, w2_ref, wsc_ref, mask_ref, bns_ref,
                  bnt_ref, o_ref, buf_ref, xs_ref, *, shifts, cp, n, pad_off):
    # 1) bilinear x2 upsample + zero ring padding, fused into ONE matmul that
    #    writes the padded image directly in flattened (row*Wp + col) layout.
    buf_ref[...] = jnp.dot(x_ref[0], mt_ref[...],
                           preferred_element_type=jnp.float32)

    def build_taps():
        # in-kernel im2col: 9 static lane-offset slices of the padded flat
        # image, stacked along sublanes into one (9*Cin_p, N) bf16 matrix.
        for t, s in enumerate(shifts):
            xs_ref[t * cp:(t + 1) * cp, :] = (
                buf_ref[:, s:s + n].astype(xs_ref.dtype))

    build_taps()

    # 2) style conv 1 (per-batch modulated weights) + mish: single MXU matmul.
    h1 = jnp.dot(w1_ref[0], xs_ref[...], preferred_element_type=jnp.float32)
    h1 = _mish(h1) * mask_ref[...]          # zero the pad-column anchors

    # 3) shortcut conv + folded eval-BatchNorm (reuses the same tap matrix).
    sc = jnp.dot(wsc_ref[...], xs_ref[...], preferred_element_type=jnp.float32)
    sc = sc * bns_ref[...] + bnt_ref[...]

    # 4) re-embed h1 into the padded flat layout and rebuild the taps.
    buf_ref[...] = jnp.zeros_like(buf_ref)
    buf_ref[:, pad_off:pad_off + n] = h1
    build_taps()

    # 5) style conv 2 + mish, residual add fused before the single lane-dense store.
    h2 = _mish(jnp.dot(w2_ref[0], xs_ref[...],
                       preferred_element_type=jnp.float32))
    o_ref[0] = (h2 + sc).astype(o_ref.dtype)


# --------------------------------------------------------------------------
# weight preparation (tiny per-batch math, plain JAX)
# --------------------------------------------------------------------------
def _modulated_weights(weight, style_w, style_b, z, ci_pad, co_pad):
    # PyTorch ConvertibleStyleBlock modulation + demodulation, laid out as
    # (B, co_pad, 9*ci_pad) matching the in-kernel tap ordering (t = dh*3 + dw).
    co, ci, k, _ = weight.shape
    y = z @ style_w.T + style_b                                    # (B, ci)
    w = weight[None] * (y[:, None, :, None, None] + 1.0)           # (B, co, ci, k, k)
    d = jax.lax.rsqrt(jnp.sum(w * w, axis=(2, 3, 4), keepdims=True) + 1e-8)
    w = w * d
    w = jnp.transpose(w, (0, 1, 3, 4, 2))                          # (B, co, k, k, ci)
    w = jnp.pad(w, ((0, 0), (0, co_pad - co), (0, 0), (0, 0), (0, ci_pad - ci)))
    return w.reshape(z.shape[0], co_pad, k * k * ci_pad).astype(jnp.bfloat16)


def _shortcut_weights(p, ci_pad, co_pad):
    # TODO(synk): ConvBlock definition not provided upstream; assumed
    # Conv2d(nc1, nc2, 3, padding=1, bias=True) + BatchNorm2d (eval mode) + no actv.
    co, ci, k, _ = p["conv_w"].shape
    w = jnp.transpose(p["conv_w"], (0, 2, 3, 1))                   # (co, k, k, ci)
    w = jnp.pad(w, ((0, co_pad - co), (0, 0), (0, 0), (0, ci_pad - ci)))
    w = w.reshape(co_pad, k * k * ci_pad).astype(jnp.bfloat16)
    bn_scale = p["bn_gamma"] / jnp.sqrt(p["bn_var"] + 1e-5)        # (co,)
    scale = jnp.pad(bn_scale, (0, co_pad - co)).reshape(co_pad, 1)
    shift_v = (p["conv_b"] - p["bn_mean"]) * bn_scale + p["bn_beta"]
    shift = jnp.pad(shift_v, (0, co_pad - co)).reshape(co_pad, 1)
    return w, scale.astype(jnp.float32), shift.astype(jnp.float32)


# --------------------------------------------------------------------------
# full module forward
# --------------------------------------------------------------------------
def up_double_convertible_style_block(x, z, params):
    # x: (B, nc1, H, W) NCHW, z: (B, z_dims)  ->  (B, nc2, 2H, 2W)
    B, nc1, H0, W0 = x.shape
    nc2, _, k, _ = params["shortcut"]["conv_w"].shape
    assert k == 3 and params["main1"]["weight"].shape[-1] == 3
    Ho, Wo, Wp, Hrows, N, Ltot, shifts, pad_off = _geometry(H0, W0)

    nc1p = -(-nc1 // 8) * 8
    nc2p = -(-nc2 // 8) * 8
    kk = k * k

    # Upsample+pad matrix: kron of padded 1-D bilinear interpolation matrices.
    # (At large resolutions use the separable two-matmul form instead.)
    ah = _interp_matrix(H0, Ho)
    aw = _interp_matrix(W0, Wo)
    ahp = np.zeros((Hrows, H0), np.float32)
    ahp[1:1 + Ho] = ah
    awp = np.zeros((Wp, W0), np.float32)
    awp[1:1 + Wo] = aw
    mt = jnp.asarray(np.kron(ahp, awp).T)                          # (H0*W0, Ltot)

    colmask = jnp.asarray(
        ((np.arange(N) % Wp) < Wo).astype(np.float32)[None, :])    # (1, N)

    x0 = x.reshape(B, nc1, H0 * W0).astype(jnp.float32)
    x0 = jnp.pad(x0, ((0, 0), (0, nc1p - nc1), (0, 0)))            # (B, nc1p, H0*W0)

    w1 = _modulated_weights(params["main1"]["weight"], params["main1"]["style_w"],
                            params["main1"]["style_b"], z, nc1p, nc1p)
    w2 = _modulated_weights(params["main2"]["weight"], params["main2"]["style_w"],
                            params["main2"]["style_b"], z, nc1p, nc2p)
    wsc, bn_s, bn_t = _shortcut_weights(params["shortcut"], nc1p, nc2p)

    kernel = functools.partial(_fused_kernel, shifts=shifts, cp=nc1p, n=N,
                               pad_off=pad_off)
    out_wide = pl.pallas_call(
        kernel,
        out_shape=jax.ShapeDtypeStruct((B, nc2p, N), jnp.float32),
        grid=(B,),
        in_specs=[
            pl.BlockSpec((1, nc1p, H0 * W0), lambda b: (b, 0, 0)),   # x (flat)
            pl.BlockSpec((H0 * W0, Ltot), lambda b: (0, 0)),         # upsample+pad matrix
            pl.BlockSpec((1, nc1p, kk * nc1p), lambda b: (b, 0, 0)),  # conv1 weights
            pl.BlockSpec((1, nc2p, kk * nc1p), lambda b: (b, 0, 0)),  # conv2 weights
            pl.BlockSpec((nc2p, kk * nc1p), lambda b: (0, 0)),        # shortcut weights
            pl.BlockSpec((1, N), lambda b: (0, 0)),                   # valid-column mask
            pl.BlockSpec((nc2p, 1), lambda b: (0, 0)),                # BN scale
            pl.BlockSpec((nc2p, 1), lambda b: (0, 0)),                # BN shift
        ],
        out_specs=pl.BlockSpec((1, nc2p, N), lambda b: (b, 0, 0)),
        scratch_shapes=[
            pltpu.VMEM((nc1p, Ltot), jnp.float32),      # padded flat image / h1
            pltpu.VMEM((kk * nc1p, N), jnp.bfloat16),   # packed 3x3 taps
        ],
        compiler_params=pltpu.CompilerParams(
            dimension_semantics=("parallel",),
            vmem_limit_bytes=32 * 1024 * 1024),
    )(x0, mt, w1, w2, wsc, colmask, bn_s, bn_t)

    # Drop the padded right columns / channels (small XLA slice of the final output).
    out = out_wide.reshape(B, nc2p, Ho, Wp)[:, :nc2, :, :Wo]
    return out


# --------------------------------------------------------------------------
# deterministic parameter init (shapes from the module's __init__)
# --------------------------------------------------------------------------
def init_params(key, nc1, nc2, z_dims, k=3):
    ks = jax.random.split(key, 8)

    def kaiming(kk, shape):
        fan_in = shape[1] * shape[2] * shape[3]
        return jax.random.normal(kk, shape, jnp.float32) * jnp.sqrt(2.0 / fan_in)

    def linear(kw, kb, out_f, in_f):
        bound = 1.0 / float(np.sqrt(in_f))
        w = jax.random.uniform(kw, (out_f, in_f), jnp.float32, -bound, bound)
        b = jax.random.uniform(kb, (out_f,), jnp.float32, -bound, bound)
        return w, b

    m1_w, m1_b = linear(ks[0], ks[1], nc1, z_dims)
    m2_w, m2_b = linear(ks[2], ks[3], nc1, z_dims)
    cbound = 1.0 / float(np.sqrt(nc1 * k * k))
    return {
        "main1": {"style_w": m1_w, "style_b": m1_b,
                  "weight": kaiming(ks[4], (nc1, nc1, k, k))},
        "main2": {"style_w": m2_w, "style_b": m2_b,
                  "weight": kaiming(ks[5], (nc2, nc1, k, k))},
        "shortcut": {
            "conv_w": kaiming(ks[6], (nc2, nc1, k, k)),
            "conv_b": jax.random.uniform(ks[7], (nc2,), jnp.float32, -cbound, cbound),
            "bn_gamma": jnp.ones((nc2,), jnp.float32),
            "bn_beta": jnp.zeros((nc2,), jnp.float32),
            "bn_mean": jnp.zeros((nc2,), jnp.float32),
            "bn_var": jnp.ones((nc2,), jnp.float32),
        },
    }


if __name__ == "__main__":
    nc1, nc2, z_dims = 4, 8, 16
    B, H, W = 2, 16, 16

    key = jax.random.PRNGKey(0)
    kx, kz, kp = jax.random.split(key, 3)
    x = jax.random.normal(kx, (B, nc1, H, W), jnp.float32)
    z = jax.random.normal(kz, (B, z_dims), jnp.float32)
    params = init_params(kp, nc1, nc2, z_dims)

    fwd = jax.jit(up_double_convertible_style_block)
    out = fwd(x, z, params)
    jax.block_until_ready(out)
    assert out.shape == (B, nc2, 2 * H, 2 * W), out.shape
    assert bool(jnp.all(jnp.isfinite(out)))
    print("KERNEL_OK")
</pallas_src>

<mosaic_0001>
module attributes {stable_mosaic.version = 11 : i64} {
  func.func @_fused_kernel(%arg0: i32, %arg1: memref<1x8x256xf32, #tpu.memory_space<vmem>>, %arg2: memref<256x1260xf32, #tpu.memory_space<vmem>>, %arg3: memref<1x8x72xbf16, #tpu.memory_space<vmem>>, %arg4: memref<1x8x72xbf16, #tpu.memory_space<vmem>>, %arg5: memref<8x72xbf16, #tpu.memory_space<vmem>>, %arg6: memref<1x1152xf32, #tpu.memory_space<vmem>>, %arg7: memref<8x1xf32, #tpu.memory_space<vmem>>, %arg8: memref<8x1xf32, #tpu.memory_space<vmem>>, %arg9: memref<1x8x1152xf32, #tpu.memory_space<vmem>>, %arg10: memref<8x1260xf32, #tpu.memory_space<vmem>>, %arg11: memref<72x1152xbf16, #tpu.memory_space<vmem>>) attributes {dimension_semantics = [#tpu.dimension_semantics<parallel>], iteration_bounds = array<i64: 2>, scalar_prefetch = 0 : i64, scratch_operands = 2 : i64, tpu.core_type = #tpu.core_type<tc>, window_params = [{transform_indices = @transform_0, window_bounds = array<i64: 1, 8, 256>}, {pipeline_mode = #tpu.pipeline_mode<synchronous>, transform_indices = @transform_1, window_bounds = array<i64: 256, 1260>}, {transform_indices = @transform_2, window_bounds = array<i64: 1, 8, 72>}, {transform_indices = @transform_3, window_bounds = array<i64: 1, 8, 72>}, {pipeline_mode = #tpu.pipeline_mode<synchronous>, transform_indices = @transform_4, window_bounds = array<i64: 8, 72>}, {pipeline_mode = #tpu.pipeline_mode<synchronous>, transform_indices = @transform_5, window_bounds = array<i64: 1, 1152>}, {pipeline_mode = #tpu.pipeline_mode<synchronous>, transform_indices = @transform_6, window_bounds = array<i64: 8, 1>}, {pipeline_mode = #tpu.pipeline_mode<synchronous>, transform_indices = @transform_7, window_bounds = array<i64: 8, 1>}, {transform_indices = @transform_8, window_bounds = array<i64: 1, 8, 1152>}]} {
    %c0 = arith.constant 0 : index
    %c0_0 = arith.constant 0 : index
    %c0_1 = arith.constant 0 : index
    %0 = vector.load %arg1[%c0, %c0_0, %c0_1] : memref<1x8x256xf32, #tpu.memory_space<vmem>>, vector<1x8x256xf32>
    %1 = vector.shape_cast %0 : vector<1x8x256xf32> to vector<8x256xf32>
    %c0_2 = arith.constant 0 : index
    %c0_3 = arith.constant 0 : index
    %2 = vector.load %arg2[%c0_2, %c0_3] : memref<256x1260xf32, #tpu.memory_space<vmem>>, vector<256x1260xf32>
    %cst = arith.constant dense<0.000000e+00> : vector<8x1260xf32>
    %3 = tpu.matmul %1, %2, %cst {dimension_numbers = #tpu.dot_dimension_numbers<[1], [0], [0], [1], [0, 0, 1, 1], [], []>} : vector<8x256xf32>, vector<256x1260xf32>, vector<8x1260xf32> -> vector<8x1260xf32>
    %c0_4 = arith.constant 0 : index
    %c0_5 = arith.constant 0 : index
    %4 = vector.load %arg10[%c0_4, %c0_5] : memref<8x1260xf32, #tpu.memory_space<vmem>>, vector<8x1260xf32>
    tpu.vector_store %arg10[%c0_4, %c0_5], %3 {strides = array<i32>} : memref<8x1260xf32, #tpu.memory_space<vmem>>, vector<8x1260xf32>,
    %c0_6 = arith.constant 0 : index
    %c0_7 = arith.constant 0 : index
    %5 = vector.load %arg10[%c0_6, %c0_7] : memref<8x1260xf32, #tpu.memory_space<vmem>>, vector<8x1152xf32>
    %6 = arith.truncf %5 : vector<8x1152xf32> to vector<8x1152xbf16>
    %c0_8 = arith.constant 0 : index
    %c0_9 = arith.constant 0 : index
    %7 = vector.load %arg11[%c0_8, %c0_9] : memref<72x1152xbf16, #tpu.memory_space<vmem>>, vector<8x1152xbf16>
    tpu.vector_store %arg11[%c0_8, %c0_9], %6 {strides = array<i32>} : memref<72x1152xbf16, #tpu.memory_space<vmem>>, vector<8x1152xbf16>,
    %c0_10 = arith.constant 0 : index
    %c1 = arith.constant 1 : index
    %8 = vector.load %arg10[%c0_10, %c1] : memref<8x1260xf32, #tpu.memory_space<vmem>>, vector<8x1152xf32>
    %9 = arith.truncf %8 : vector<8x1152xf32> to vector<8x1152xbf16>
    %c8 = arith.constant 8 : index
    %c0_11 = arith.constant 0 : index
    %10 = vector.load %arg11[%c8, %c0_11] : memref<72x1152xbf16, #tpu.memory_space<vmem>>, vector<8x1152xbf16>
    tpu.vector_store %arg11[%c8, %c0_11], %9 {strides = array<i32>} : memref<72x1152xbf16, #tpu.memory_space<vmem>>, vector<8x1152xbf16>,
    %c0_12 = arith.constant 0 : index
    %c2 = arith.constant 2 : index
    %11 = vector.load %arg10[%c0_12, %c2] : memref<8x1260xf32, #tpu.memory_space<vmem>>, vector<8x1152xf32>
    %12 = arith.truncf %11 : vector<8x1152xf32> to vector<8x1152xbf16>
    %c16 = arith.constant 16 : index
    %c0_13 = arith.constant 0 : index
    %13 = vector.load %arg11[%c16, %c0_13] : memref<72x1152xbf16, #tpu.memory_space<vmem>>, vector<8x1152xbf16>
    tpu.vector_store %arg11[%c16, %c0_13], %12 {strides = array<i32>} : memref<72x1152xbf16, #tpu.memory_space<vmem>>, vector<8x1152xbf16>,
    %c0_14 = arith.constant 0 : index
    %c36 = arith.constant 36 : index
    %14 = vector.load %arg10[%c0_14, %c36] : memref<8x1260xf32, #tpu.memory_space<vmem>>, vector<8x1152xf32>
    %15 = arith.truncf %14 : vector<8x1152xf32> to vector<8x1152xbf16>
    %c24 = arith.constant 24 : index
    %c0_15 = arith.constant 0 : index
    %16 = vector.load %arg11[%c24, %c0_15] : memref<72x1152xbf16, #tpu.memory_space<vmem>>, vector<8x1152xbf16>
    tpu.vector_store %arg11[%c24, %c0_15], %15 {strides = array<i32>} : memref<72x1152xbf16, #tpu.memory_space<vmem>>, vector<8x1152xbf16>,
    %c0_16 = arith.constant 0 : index
    %c37 = arith.constant 37 : index
    %17 = vector.load %arg10[%c0_16, %c37] : memref<8x1260xf32, #tpu.memory_space<vmem>>, vector<8x1152xf32>
    %18 = arith.truncf %17 : vector<8x1152xf32> to vector<8x1152xbf16>
    %c32 = arith.constant 32 : index
    %c0_17 = arith.constant 0 : index
    %19 = vector.load %arg11[%c32, %c0_17] : memref<72x1152xbf16, #tpu.memory_space<vmem>>, vector<8x1152xbf16>
    tpu.vector_store %arg11[%c32, %c0_17], %18 {strides = array<i32>} : memref<72x1152xbf16, #tpu.memory_space<vmem>>, vector<8x1152xbf16>,
    %c0_18 = arith.constant 0 : index
    %c38 = arith.constant 38 : index
    %20 = vector.load %arg10[%c0_18, %c38] : memref<8x1260xf32, #tpu.memory_space<vmem>>, vector<8x1152xf32>
    %21 = arith.truncf %20 : vector<8x1152xf32> to vector<8x1152xbf16>
    %c40 = arith.constant 40 : index
    %c0_19 = arith.constant 0 : index
    %22 = vector.load %arg11[%c40, %c0_19] : memref<72x1152xbf16, #tpu.memory_space<vmem>>, vector<8x1152xbf16>
    tpu.vector_store %arg11[%c40, %c0_19], %21 {strides = array<i32>} : memref<72x1152xbf16, #tpu.memory_space<vmem>>, vector<8x1152xbf16>,
    %c0_20 = arith.constant 0 : index
    %c72 = arith.constant 72 : index
    %23 = vector.load %arg10[%c0_20, %c72] : memref<8x1260xf32, #tpu.memory_space<vmem>>, vector<8x1152xf32>
    %24 = arith.truncf %23 : vector<8x1152xf32> to vector<8x1152xbf16>
    %c48 = arith.constant 48 : index
    %c0_21 = arith.constant 0 : index
    %25 = vector.load %arg11[%c48, %c0_21] : memref<72x1152xbf16, #tpu.memory_space<vmem>>, vector<8x1152xbf16>
    tpu.vector_store %arg11[%c48, %c0_21], %24 {strides = array<i32>} : memref<72x1152xbf16, #tpu.memory_space<vmem>>, vector<8x1152xbf16>,
    %c0_22 = arith.constant 0 : index
    %c73 = arith.constant 73 : index
    %26 = vector.load %arg10[%c0_22, %c73] : memref<8x1260xf32, #tpu.memory_space<vmem>>, vector<8x1152xf32>
    %27 = arith.truncf %26 : vector<8x1152xf32> to vector<8x1152xbf16>
    %c56 = arith.constant 56 : index
    %c0_23 = arith.constant 0 : index
    %28 = vector.load %arg11[%c56, %c0_23] : memref<72x1152xbf16, #tpu.memory_space<vmem>>, vector<8x1152xbf16>
    tpu.vector_store %arg11[%c56, %c0_23], %27 {strides = array<i32>} : memref<72x1152xbf16, #tpu.memory_space<vmem>>, vector<8x1152xbf16>,
    %c0_24 = arith.constant 0 : index
    %c74 = arith.constant 74 : index
    %29 = vector.load %arg10[%c0_24, %c74] : memref<8x1260xf32, #tpu.memory_space<vmem>>, vector<8x1152xf32>
    %30 = arith.truncf %29 : vector<8x1152xf32> to vector<8x1152xbf16>
    %c64 = arith.constant 64 : index
    %c0_25 = arith.constant 0 : index
    %31 = vector.load %arg11[%c64, %c0_25] : memref<72x1152xbf16, #tpu.memory_space<vmem>>, vector<8x1152xbf16>
    tpu.vector_store %arg11[%c64, %c0_25], %30 {strides = array<i32>} : memref<72x1152xbf16, #tpu.memory_space<vmem>>, vector<8x1152xbf16>,
    %c0_26 = arith.constant 0 : index
    %c0_27 = arith.constant 0 : index
    %c0_28 = arith.constant 0 : index
    %32 = vector.load %arg3[%c0_26, %c0_27, %c0_28] : memref<1x8x72xbf16, #tpu.memory_space<vmem>>, vector<1x8x72xbf16>
    %33 = vector.shape_cast %32 : vector<1x8x72xbf16> to vector<8x72xbf16>
    %c0_29 = arith.constant 0 : index
    %c0_30 = arith.constant 0 : index
    %34 = vector.load %arg11[%c0_29, %c0_30] : memref<72x1152xbf16, #tpu.memory_space<vmem>>, vector<72x1152xbf16>
    %cst_31 = arith.constant dense<0.000000e+00> : vector<8x1152xf32>
    %35 = tpu.matmul %33, %34, %cst_31 {dimension_numbers = #tpu.dot_dimension_numbers<[1], [0], [0], [1], [0, 0, 1, 1], [], []>} : vector<8x72xbf16>, vector<72x1152xbf16>, vector<8x1152xf32> -> vector<8x1152xf32>
    %cst_32 = arith.constant 0.000000e+00 : f32
    %36 = vector.broadcast %cst_32 : f32 to vector<8x1152xf32>
    %37 = arith.maximumf %35, %36 : vector<8x1152xf32>
    %38 = math.absf %35 : vector<8x1152xf32>
    %cst_33 = arith.constant 0.000000e+00 : f32
    %39 = vector.broadcast %cst_33 : f32 to vector<8x1152xf32>
    %40 = arith.subf %39, %38 : vector<8x1152xf32>
    %41 = math.exp %40 : vector<8x1152xf32>
    %42 = math.log1p %41 : vector<8x1152xf32>
    %43 = arith.addf %37, %42 : vector<8x1152xf32>
    %44 = math.tanh %43 : vector<8x1152xf32>
    %45 = arith.mulf %35, %44 : vector<8x1152xf32>
    %c0_34 = arith.constant 0 : index
    %c0_35 = arith.constant 0 : index
    %46 = vector.load %arg6[%c0_34, %c0_35] : memref<1x1152xf32, #tpu.memory_space<vmem>>, vector<1x1152xf32>
    %47 = vector.broadcast %46 : vector<1x1152xf32> to vector<8x1152xf32>
    %48 = arith.mulf %45, %47 : vector<8x1152xf32>
    %c0_36 = arith.constant 0 : index
    %c0_37 = arith.constant 0 : index
    %49 = vector.load %arg5[%c0_36, %c0_37] : memref<8x72xbf16, #tpu.memory_space<vmem>>, vector<8x72xbf16>
    %c0_38 = arith.constant 0 : index
    %c0_39 = arith.constant 0 : index
    %50 = vector.load %arg11[%c0_38, %c0_39] : memref<72x1152xbf16, #tpu.memory_space<vmem>>, vector<72x1152xbf16>
    %cst_40 = arith.constant dense<0.000000e+00> : vector<8x1152xf32>
    %51 = tpu.matmul %49, %50, %cst_40 {dimension_numbers = #tpu.dot_dimension_numbers<[1], [0], [0], [1], [0, 0, 1, 1], [], []>} : vector<8x72xbf16>, vector<72x1152xbf16>, vector<8x1152xf32> -> vector<8x1152xf32>
    %c0_41 = arith.constant 0 : index
    %c0_42 = arith.constant 0 : index
    %52 = vector.load %arg7[%c0_41, %c0_42] : memref<8x1xf32, #tpu.memory_space<vmem>>, vector<8x1xf32>
    %53 = vector.broadcast %52 : vector<8x1xf32> to vector<8x1152xf32>
    %54 = arith.mulf %51, %53 : vector<8x1152xf32>
    %c0_43 = arith.constant 0 : index
    %c0_44 = arith.constant 0 : index
    %55 = vector.load %arg8[%c0_43, %c0_44] : memref<8x1xf32, #tpu.memory_space<vmem>>, vector<8x1xf32>
    %56 = vector.broadcast %55 : vector<8x1xf32> to vector<8x1152xf32>
    %57 = arith.addf %54, %56 : vector<8x1152xf32>
    %cst_45 = arith.constant 0.000000e+00 : f32
    %58 = vector.broadcast %cst_45 : f32 to vector<8x1260xf32>
    %c0_46 = arith.constant 0 : index
    %c0_47 = arith.constant 0 : index
    %59 = vector.load %arg10[%c0_46, %c0_47] : memref<8x1260xf32, #tpu.memory_space<vmem>>, vector<8x1260xf32>
    tpu.vector_store %arg10[%c0_46, %c0_47], %58 {strides = array<i32>} : memref<8x1260xf32, #tpu.memory_space<vmem>>, vector<8x1260xf32>,
    %c0_48 = arith.constant 0 : index
    %c37_49 = arith.constant 37 : index
    %60 = vector.load %arg10[%c0_48, %c37_49] : memref<8x1260xf32, #tpu.memory_space<vmem>>, vector<8x1152xf32>
    tpu.vector_store %arg10[%c0_48, %c37_49], %48 {strides = array<i32>} : memref<8x1260xf32, #tpu.memory_space<vmem>>, vector<8x1152xf32>,
    %c0_50 = arith.constant 0 : index
    %c0_51 = arith.constant 0 : index
    %61 = vector.load %arg10[%c0_50, %c0_51] : memref<8x1260xf32, #tpu.memory_space<vmem>>, vector<8x1152xf32>
    %62 = arith.truncf %61 : vector<8x1152xf32> to vector<8x1152xbf16>
    %c0_52 = arith.constant 0 : index
    %c0_53 = arith.constant 0 : index
    %63 = vector.load %arg11[%c0_52, %c0_53] : memref<72x1152xbf16, #tpu.memory_space<vmem>>, vector<8x1152xbf16>
    tpu.vector_store %arg11[%c0_52, %c0_53], %62 {strides = array<i32>} : memref<72x1152xbf16, #tpu.memory_space<vmem>>, vector<8x1152xbf16>,
    %c0_54 = arith.constant 0 : index
    %c1_55 = arith.constant 1 : index
    %64 = vector.load %arg10[%c0_54, %c1_55] : memref<8x1260xf32, #tpu.memory_space<vmem>>, vector<8x1152xf32>
    %65 = arith.truncf %64 : vector<8x1152xf32> to vector<8x1152xbf16>
    %c8_56 = arith.constant 8 : index
    %c0_57 = arith.constant 0 : index
    %66 = vector.load %arg11[%c8_56, %c0_57] : memref<72x1152xbf16, #tpu.memory_space<vmem>>, vector<8x1152xbf16>
    tpu.vector_store %arg11[%c8_56, %c0_57], %65 {strides = array<i32>} : memref<72x1152xbf16, #tpu.memory_space<vmem>>, vector<8x1152xbf16>,
    %c0_58 = arith.constant 0 : index
    %c2_59 = arith.constant 2 : index
    %67 = vector.load %arg10[%c0_58, %c2_59] : memref<8x1260xf32, #tpu.memory_space<vmem>>, vector<8x1152xf32>
    %68 = arith.truncf %67 : vector<8x1152xf32> to vector<8x1152xbf16>
    %c16_60 = arith.constant 16 : index
    %c0_61 = arith.constant 0 : index
    %69 = vector.load %arg11[%c16_60, %c0_61] : memref<72x1152xbf16, #tpu.memory_space<vmem>>, vector<8x1152xbf16>
    tpu.vector_store %arg11[%c16_60, %c0_61], %68 {strides = array<i32>} : memref<72x1152xbf16, #tpu.memory_space<vmem>>, vector<8x1152xbf16>,
    %c0_62 = arith.constant 0 : index
    %c36_63 = arith.constant 36 : index
    %70 = vector.load %arg10[%c0_62, %c36_63] : memref<8x1260xf32, #tpu.memory_space<vmem>>, vector<8x1152xf32>
    %71 = arith.truncf %70 : vector<8x1152xf32> to vector<8x1152xbf16>
    %c24_64 = arith.constant 24 : index
    %c0_65 = arith.constant 0 : index
    %72 = vector.load %arg11[%c24_64, %c0_65] : memref<72x1152xbf16, #tpu.memory_space<vmem>>, vector<8x1152xbf16>
    tpu.vector_store %arg11[%c24_64, %c0_65], %71 {strides = array<i32>} : memref<72x1152xbf16, #tpu.memory_space<vmem>>, vector<8x1152xbf16>,
    %c0_66 = arith.constant 0 : index
    %c37_67 = arith.constant 37 : index
    %73 = vector.load %arg10[%c0_66, %c37_67] : memref<8x1260xf32, #tpu.memory_space<vmem>>, vector<8x1152xf32>
    %74 = arith.truncf %73 : vector<8x1152xf32> to vector<8x1152xbf16>
    %c32_68 = arith.constant 32 : index
    %c0_69 = arith.constant 0 : index
    %75 = vector.load %arg11[%c32_68, %c0_69] : memref<72x1152xbf16, #tpu.memory_space<vmem>>, vector<8x1152xbf16>
    tpu.vector_store %arg11[%c32_68, %c0_69], %74 {strides = array<i32>} : memref<72x1152xbf16, #tpu.memory_space<vmem>>, vector<8x1152xbf16>,
    %c0_70 = arith.constant 0 : index
    %c38_71 = arith.constant 38 : index
    %76 = vector.load %arg10[%c0_70, %c38_71] : memref<8x1260xf32, #tpu.memory_space<vmem>>, vector<8x1152xf32>
    %77 = arith.truncf %76 : vector<8x1152xf32> to vector<8x1152xbf16>
    %c40_72 = arith.constant 40 : index
    %c0_73 = arith.constant 0 : index
    %78 = vector.load %arg11[%c40_72, %c0_73] : memref<72x1152xbf16, #tpu.memory_space<vmem>>, vector<8x1152xbf16>
    tpu.vector_store %arg11[%c40_72, %c0_73], %77 {strides = array<i32>} : memref<72x1152xbf16, #tpu.memory_space<vmem>>, vector<8x1152xbf16>,
    %c0_74 = arith.constant 0 : index
    %c72_75 = arith.constant 72 : index
    %79 = vector.load %arg10[%c0_74, %c72_75] : memref<8x1260xf32, #tpu.memory_space<vmem>>, vector<8x1152xf32>
    %80 = arith.truncf %79 : vector<8x1152xf32> to vector<8x1152xbf16>
    %c48_76 = arith.constant 48 : index
    %c0_77 = arith.constant 0 : index
    %81 = vector.load %arg11[%c48_76, %c0_77] : memref<72x1152xbf16, #tpu.memory_space<vmem>>, vector<8x1152xbf16>
    tpu.vector_store %arg11[%c48_76, %c0_77], %80 {strides = array<i32>} : memref<72x1152xbf16, #tpu.memory_space<vmem>>, vector<8x1152xbf16>,
    %c0_78 = arith.constant 0 : index
    %c73_79 = arith.constant 73 : index
    %82 = vector.load %arg10[%c0_78, %c73_79] : memref<8x1260xf32, #tpu.memory_space<vmem>>, vector<8x1152xf32>
    %83 = arith.truncf %82 : vector<8x1152xf32> to vector<8x1152xbf16>
    %c56_80 = arith.constant 56 : index
    %c0_81 = arith.constant 0 : index
    %84 = vector.load %arg11[%c56_80, %c0_81] : memref<72x1152xbf16, #tpu.memory_space<vmem>>, vector<8x1152xbf16>
    tpu.vector_store %arg11[%c56_80, %c0_81], %83 {strides = array<i32>} : memref<72x1152xbf16, #tpu.memory_space<vmem>>, vector<8x1152xbf16>,
    %c0_82 = arith.constant 0 : index
    %c74_83 = arith.constant 74 : index
    %85 = vector.load %arg10[%c0_82, %c74_83] : memref<8x1260xf32, #tpu.memory_space<vmem>>, vector<8x1152xf32>
    %86 = arith.truncf %85 : vector<8x1152xf32> to vector<8x1152xbf16>
    %c64_84 = arith.constant 64 : index
    %c0_85 = arith.constant 0 : index
    %87 = vector.load %arg11[%c64_84, %c0_85] : memref<72x1152xbf16, #tpu.memory_space<vmem>>, vector<8x1152xbf16>
    tpu.vector_store %arg11[%c64_84, %c0_85], %86 {strides = array<i32>} : memref<72x1152xbf16, #tpu.memory_space<vmem>>, vector<8x1152xbf16>,
    %c0_86 = arith.constant 0 : index
    %c0_87 = arith.constant 0 : index
    %c0_88 = arith.constant 0 : index
    %88 = vector.load %arg4[%c0_86, %c0_87, %c0_88] : memref<1x8x72xbf16, #tpu.memory_space<vmem>>, vector<1x8x72xbf16>
    %89 = vector.shape_cast %88 : vector<1x8x72xbf16> to vector<8x72xbf16>
    %c0_89 = arith.constant 0 : index
    %c0_90 = arith.constant 0 : index
    %90 = vector.load %arg11[%c0_89, %c0_90] : memref<72x1152xbf16, #tpu.memory_space<vmem>>, vector<72x1152xbf16>
    %cst_91 = arith.constant dense<0.000000e+00> : vector<8x1152xf32>
    %91 = tpu.matmul %89, %90, %cst_91 {dimension_numbers = #tpu.dot_dimension_numbers<[1], [0], [0], [1], [0, 0, 1, 1], [], []>} : vector<8x72xbf16>, vector<72x1152xbf16>, vector<8x1152xf32> -> vector<8x1152xf32>
    %cst_92 = arith.constant 0.000000e+00 : f32
    %92 = vector.broadcast %cst_92 : f32 to vector<8x1152xf32>
    %93 = arith.maximumf %91, %92 : vector<8x1152xf32>
    %94 = math.absf %91 : vector<8x1152xf32>
    %cst_93 = arith.constant 0.000000e+00 : f32
    %95 = vector.broadcast %cst_93 : f32 to vector<8x1152xf32>
    %96 = arith.subf %95, %94 : vector<8x1152xf32>
    %97 = math.exp %96 : vector<8x1152xf32>
    %98 = math.log1p %97 : vector<8x1152xf32>
    %99 = arith.addf %93, %98 : vector<8x1152xf32>
    %100 = math.tanh %99 : vector<8x1152xf32>
    %101 = arith.mulf %91, %100 : vector<8x1152xf32>
    %102 = arith.addf %101, %57 : vector<8x1152xf32>
    %c0_94 = arith.constant 0 : index
    %c0_95 = arith.constant 0 : index
    %c0_96 = arith.constant 0 : index
    %103 = vector.load %arg9[%c0_94, %c0_95, %c0_96] : memref<1x8x1152xf32, #tpu.memory_space<vmem>>, vector<1x8x1152xf32>
    %104 = vector.shape_cast %103 : vector<1x8x1152xf32> to vector<8x1152xf32>
    %105 = vector.shape_cast %102 : vector<8x1152xf32> to vector<1x8x1152xf32>
    tpu.vector_store %arg9[%c0_94, %c0_95, %c0_96], %105 {strides = array<i32>} : memref<1x8x1152xf32, #tpu.memory_space<vmem>>, vector<1x8x1152xf32>,
    return
  }
  func.func @transform_0(%arg0: i32) -> (i32, i32, i32) {
    %c0_i32 = arith.constant 0 : i32
    %c0_i32_0 = arith.constant 0 : i32
    %c0_i32_1 = arith.constant 0 : i32
    return %arg0, %c0_i32, %c0_i32_0 : i32, i32, i32
  }
  func.func @transform_1(%arg0: i32) -> (i32, i32) {
    %c0_i32 = arith.constant 0 : i32
    %c0_i32_0 = arith.constant 0 : i32
    %c0_i32_1 = arith.constant 0 : i32
    return %c0_i32, %c0_i32_0 : i32, i32
  }
  func.func @transform_2(%arg0: i32) -> (i32, i32, i32) {
    %c0_i32 = arith.constant 0 : i32
    %c0_i32_0 = arith.constant 0 : i32
    %c0_i32_1 = arith.constant 0 : i32
    return %arg0, %c0_i32, %c0_i32_0 : i32, i32, i32
  }
  func.func @transform_3(%arg0: i32) -> (i32, i32, i32) {
    %c0_i32 = arith.constant 0 : i32
    %c0_i32_0 = arith.constant 0 : i32
    %c0_i32_1 = arith.constant 0 : i32
    return %arg0, %c0_i32, %c0_i32_0 : i32, i32, i32
  }
  func.func @transform_4(%arg0: i32) -> (i32, i32) {
    %c0_i32 = arith.constant 0 : i32
    %c0_i32_0 = arith.constant 0 : i32
    %c0_i32_1 = arith.constant 0 : i32
    return %c0_i32, %c0_i32_0 : i32, i32
  }
  func.func @transform_5(%arg0: i32) -> (i32, i32) {
    %c0_i32 = arith.constant 0 : i32
    %c0_i32_0 = arith.constant 0 : i32
    %c0_i32_1 = arith.constant 0 : i32
    return %c0_i32, %c0_i32_0 : i32, i32
  }
  func.func @transform_6(%arg0: i32) -> (i32, i32) {
    %c0_i32 = arith.constant 0 : i32
    %c0_i32_0 = arith.constant 0 : i32
    %c0_i32_1 = arith.constant 0 : i32
    return %c0_i32, %c0_i32_0 : i32, i32
  }
  func.func @transform_7(%arg0: i32) -> (i32, i32) {
    %c0_i32 = arith.constant 0 : i32
    %c0_i32_0 = arith.constant 0 : i32
    %c0_i32_1 = arith.constant 0 : i32
    return %c0_i32, %c0_i32_0 : i32, i32
  }
  func.func @transform_8(%arg0: i32) -> (i32, i32, i32) {
    %c0_i32 = arith.constant 0 : i32
    %c0_i32_0 = arith.constant 0 : i32
    %c0_i32_1 = arith.constant 0 : i32
    return %arg0, %c0_i32, %c0_i32_0 : i32, i32, i32
  }
}

</mosaic_0001>

<llo_original>
// kernel: up_double_convertible_style_block.1
$region0: #{up_double_convertible_style_block.1}
  #allocation0 [shape = 'u32[]', space=smem, size = 0x4, offset = 0x4, fixed_abs, tag = 'smem constant byte address 0x4 - core index']
  #allocation1 [shape = 'u32[72,128]{1,0:T(1,128)}', space=vmem, size = 0x9000, scoped, tag = 'internal scratch']
  #allocation2 [shape = 'f32[8,1260]{1,0:T(8,128)}', space=vmem, size = 0xa000, scoped, tag = 'scratch operand']
  #allocation3 [shape = 'bf16[72,1152]{1,0:T(8,128)(2,1)}', space=vmem, size = 0x28800, scoped, tag = 'scratch operand']
  %s0 = inlined_call_operand.vmem [shape: f32[2,8,256], index: 0, kind: input, shape index: {}]
  %s1 = inlined_call_operand.hbm [shape: f32[256,1260], index: 1, kind: input, shape index: {}]
  %s2 = inlined_call_operand.vmem [shape: bf16[2,8,72], index: 2, kind: input, shape index: {}]
  %s3 = inlined_call_operand.vmem [shape: bf16[2,8,72], index: 3, kind: input, shape index: {}]
  %s4 = inlined_call_operand.vmem [shape: bf16[8,72], index: 4, kind: input, shape index: {}]
  %s5 = inlined_call_operand.hbm [shape: f32[1,1152], index: 5, kind: input, shape index: {}]
  %s6 = inlined_call_operand.vmem [shape: f32[8,1], index: 6, kind: input, shape index: {}]
  %s7 = inlined_call_operand.vmem [shape: f32[8,1], index: 7, kind: input, shape index: {}]
  %s8 = inlined_call_operand.vmem [shape: f32[2,8,1152], index: 8, kind: output, shape index: {}]
  %s9 = sld [smem:[#allocation0]]
  $region73: #{up_double_convertible_style_block.1} parent=0
    _
  %s11 = ssub.s32 1, %s9
  %s12 = scalar_select 0, %s11, %s9
  $region1: #{up_double_convertible_style_block.1} parent=0
    #allocation4 [shape = 'u8[1310720]{0}', space=vmem, size = 0x140000, scoped, tag = 'input window, operand 1, single buffered']
    #allocation5 [shape = 's32[2]{0}', space=sflag, size = 0x8, scoped, tag = 'scoped memory for up_double_convertible_style_block.1']
    #allocation6 [shape = 'u8[4608]{0}', space=vmem, size = 0x1400, scoped, tag = 'input window, operand 5, single buffered']
    #allocation7 [shape = 's32[1]{0}', space=sflag, size = 0x4, scoped, tag = 'scoped memory for up_double_convertible_style_block.1']
    %13 = vsyncpa [#allocation5], 0
    %14 = vsyncpa [#allocation7], 0
    loop: start=0, step=1, limit=4
    $region2: #{up_double_convertible_style_block.1} parent=1 // loop_pre_header
      _
    $region3: #{up_double_convertible_style_block.1} parent=1 // loop_header
      %s16 = sphi 0, %s20
      %p17 = scmp.ge.s32.totalorder %s16, 4
      %s26 = sphi 0, %s28
      %s29 = sphi 0, %s26
      %s30 = sphi 0, %s29
      %s46 = sphi 0, %s30
      %s50 = sphi 0, %s50
      %s52 = sphi 0, %s50
      %s53 = sphi 0, %s52
      %s67 = sphi 0, %s53
      %s73 = sphi 0, %s75
      %s76 = sphi 0, %s73
      %s77 = sphi 0, %s76
      %s93 = sphi 0, %s77
      %s99 = sphi 0, %s101
      %s102 = sphi 0, %s99
      %s103 = sphi 0, %s102
      %s119 = sphi 0, %s103
      %s123 = sphi 0, %s123
      %s125 = sphi 0, %s123
      %s126 = sphi 0, %s125
      %s140 = sphi 0, %s126
      %s144 = sphi 0, %s144
      %s146 = sphi 0, %s144
      %s147 = sphi 0, %s146
      %s161 = sphi 0, %s147
      %s165 = sphi 0, %s165
      %s167 = sphi 0, %s165
      %s168 = sphi 0, %s167
      %s182 = sphi 0, %s168
      %s186 = sphi 0, %s186
      %s188 = sphi 0, %s186
      %s189 = sphi 0, %s188
      %s203 = sphi 0, %s189
      %s209 = sphi 0, %s211
      %s212 = sphi 0, %s209
      %s213 = sphi 0, %s212
      %s229 = sphi 0, %s213
    $region4: #{up_double_convertible_style_block.1} parent=1 // loop_header_branch
      %19 = sbr.rel (%p17) target = $region8
    $region5: #{up_double_convertible_style_block.1} parent=1 // loop_body
      %s21 = ssub.s32 %s16, 1
      %s22 = ssub.s32 %s16, 2
      %s23 = sadd.s32 %s16, 1
      %s24 = ssub.s32 %s16, %s23
      %p25 = scmp.eq.s32.totalorder %s24, 0
      %s27 = sadd.s32 %s26, 1
      %s28 = scalar_select %p25, %s26, %s27
      %p31 = pneg %p25
      %p32 = scmp.eq.s32.totalorder %s16, 1
      %p33 = por %p31, %p32
      %p34 = scmp.ne.s32.totalorder %s26, %s29
      %p35 = scmp.eq.s32.totalorder %s16, 0
      %p36 = por %p34, %p35
      %p37 = scmp.ne.s32.totalorder %s26, %s29
      %p38 = scmp.eq.s32.totalorder %s21, 1
      %p39 = por %p37, %p38
      %p40 = scmp.ne.s32.totalorder %s29, %s30
      %p41 = scmp.eq.s32.totalorder %s21, 0
      %p42 = por %p40, %p41
      %p43 = scmp.ne.s32.totalorder %s29, %s30
      %p44 = scmp.eq.s32.totalorder %s22, 1
      %p45 = por %p43, %p44
      %p47 = scmp.ne.s32.totalorder %s30, %s46
      %p48 = scmp.eq.s32.totalorder %s22, 0
      %p49 = por %p47, %p48
      %s51 = sadd.s32 %s50, 1
      %p54 = scmp.eq.s32.totalorder %s16, 1
      %p55 = scmp.ne.s32.totalorder %s50, %s52
      %p56 = scmp.eq.s32.totalorder %s16, 0
      %p57 = por %p55, %p56
      %p58 = scmp.ne.s32.totalorder %s50, %s52
      %p59 = scmp.eq.s32.totalorder %s21, 1
      %p60 = por %p58, %p59
      %p61 = scmp.ne.s32.totalorder %s52, %s53
      %p62 = scmp.eq.s32.totalorder %s21, 0
      %p63 = por %p61, %p62
      %p64 = scmp.ne.s32.totalorder %s52, %s53
      %p65 = scmp.eq.s32.totalorder %s22, 1
      %p66 = por %p64, %p65
      %p68 = scmp.ne.s32.totalorder %s53, %s67
      %p69 = scmp.eq.s32.totalorder %s22, 0
      %p70 = por %p68, %p69
      %s71 = ssub.s32 %s16, %s23
      %p72 = scmp.eq.s32.totalorder %s71, 0
      %s74 = sadd.s32 %s73, 1
      %s75 = scalar_select %p72, %s73, %s74
      %p78 = pneg %p72
      %p79 = scmp.eq.s32.totalorder %s16, 1
      %p80 = por %p78, %p79
      %p81 = scmp.ne.s32.totalorder %s73, %s76
      %p82 = scmp.eq.s32.totalorder %s16, 0
      %p83 = por %p81, %p82
      %p84 = scmp.ne.s32.totalorder %s73, %s76
      %p85 = scmp.eq.s32.totalorder %s21, 1
      %p86 = por %p84, %p85
      %p87 = scmp.ne.s32.totalorder %s76, %s77
      %p88 = scmp.eq.s32.totalorder %s21, 0
      %p89 = por %p87, %p88
      %p90 = scmp.ne.s32.totalorder %s76, %s77
      %p91 = scmp.eq.s32.totalorder %s22, 1
      %p92 = por %p90, %p91
      %p94 = scmp.ne.s32.totalorder %s77, %s93
      %p95 = scmp.eq.s32.totalorder %s22, 0
      %p96 = por %p94, %p95
      %s97 = ssub.s32 %s16, %s23
      %p98 = scmp.eq.s32.totalorder %s97, 0
      %s100 = sadd.s32 %s99, 1
      %s101 = scalar_select %p98, %s99, %s100
      %p104 = pneg %p98
      %p105 = scmp.eq.s32.totalorder %s16, 1
      %p106 = por %p104, %p105
      %p107 = scmp.ne.s32.totalorder %s99, %s102
      %p108 = scmp.eq.s32.totalorder %s16, 0
      %p109 = por %p107, %p108
      %p110 = scmp.ne.s32.totalorder %s99, %s102
      %p111 = scmp.eq.s32.totalorder %s21, 1
      %p112 = por %p110, %p111
      %p113 = scmp.ne.s32.totalorder %s102, %s103
      %p114 = scmp.eq.s32.totalorder %s21, 0
      %p115 = por %p113, %p114
      %p116 = scmp.ne.s32.totalorder %s102, %s103
      %p117 = scmp.eq.s32.totalorder %s22, 1
      %p118 = por %p116, %p117
      %p120 = scmp.ne.s32.totalorder %s103, %s119
      %p121 = scmp.eq.s32.totalorder %s22, 0
      %p122 = por %p120, %p121
      %s124 = sadd.s32 %s123, 1
      %p127 = scmp.eq.s32.totalorder %s16, 1
      %p128 = scmp.ne.s32.totalorder %s123, %s125
      %p129 = scmp.eq.s32.totalorder %s16, 0
      %p130 = por %p128, %p129
      %p131 = scmp.ne.s32.totalorder %s123, %s125
      %p132 = scmp.eq.s32.totalorder %s21, 1
      %p133 = por %p131, %p132
      %p134 = scmp.ne.s32.totalorder %s125, %s126
      %p135 = scmp.eq.s32.totalorder %s21, 0
      %p136 = por %p134, %p135
      %p137 = scmp.ne.s32.totalorder %s125, %s126
      %p138 = scmp.eq.s32.totalorder %s22, 1
      %p139 = por %p137, %p138
      %p141 = scmp.ne.s32.totalorder %s126, %s140
      %p142 = scmp.eq.s32.totalorder %s22, 0
      %p143 = por %p141, %p142
      %s145 = sadd.s32 %s144, 1
      %p148 = scmp.eq.s32.totalorder %s16, 1
      %p149 = scmp.ne.s32.totalorder %s144, %s146
      %p150 = scmp.eq.s32.totalorder %s16, 0
      %p151 = por %p149, %p150
      %p152 = scmp.ne.s32.totalorder %s144, %s146
      %p153 = scmp.eq.s32.totalorder %s21, 1
      %p154 = por %p152, %p153
      %p155 = scmp.ne.s32.totalorder %s146, %s147
      %p156 = scmp.eq.s32.totalorder %s21, 0
      %p157 = por %p155, %p156
      %p158 = scmp.ne.s32.totalorder %s146, %s147
      %p159 = scmp.eq.s32.totalorder %s22, 1
      %p160 = por %p158, %p159
      %p162 = scmp.ne.s32.totalorder %s147, %s161
      %p163 = scmp.eq.s32.totalorder %s22, 0
      %p164 = por %p162, %p163
      %s166 = sadd.s32 %s165, 1
      %p169 = scmp.eq.s32.totalorder %s16, 1
      %p170 = scmp.ne.s32.totalorder %s165, %s167
      %p171 = scmp.eq.s32.totalorder %s16, 0
      %p172 = por %p170, %p171
      %p173 = scmp.ne.s32.totalorder %s165, %s167
      %p174 = scmp.eq.s32.totalorder %s21, 1
      %p175 = por %p173, %p174
      %p176 = scmp.ne.s32.totalorder %s167, %s168
      %p177 = scmp.eq.s32.totalorder %s21, 0
      %p178 = por %p176, %p177
      %p179 = scmp.ne.s32.totalorder %s167, %s168
      %p180 = scmp.eq.s32.totalorder %s22, 1
      %p181 = por %p179, %p180
      %p183 = scmp.ne.s32.totalorder %s168, %s182
      %p184 = scmp.eq.s32.totalorder %s22, 0
      %p185 = por %p183, %p184
      %s187 = sadd.s32 %s186, 1
      %p190 = scmp.eq.s32.totalorder %s16, 1
      %p191 = scmp.ne.s32.totalorder %s186, %s188
      %p192 = scmp.eq.s32.totalorder %s16, 0
      %p193 = por %p191, %p192
      %p194 = scmp.ne.s32.totalorder %s186, %s188
      %p195 = scmp.eq.s32.totalorder %s21, 1
      %p196 = por %p194, %p195
      %p197 = scmp.ne.s32.totalorder %s188, %s189
      %p198 = scmp.eq.s32.totalorder %s21, 0
      %p199 = por %p197, %p198
      %p200 = scmp.ne.s32.totalorder %s188, %s189
      %p201 = scmp.eq.s32.totalorder %s22, 1
      %p202 = por %p200, %p201
      %p204 = scmp.ne.s32.totalorder %s189, %s203
      %p205 = scmp.eq.s32.totalorder %s22, 0
      %p206 = por %p204, %p205
      %s207 = ssub.s32 %s16, %s23
      %p208 = scmp.eq.s32.totalorder %s207, 0
      %s210 = sadd.s32 %s209, 1
      %s211 = scalar_select %p208, %s209, %s210
      %p214 = pneg %p208
      %p215 = scmp.eq.s32.totalorder %s16, 1
      %p216 = por %p214, %p215
      %p217 = scmp.ne.s32.totalorder %s209, %s212
      %p218 = scmp.eq.s32.totalorder %s16, 0
      %p219 = por %p217, %p218
      %p220 = scmp.ne.s32.totalorder %s209, %s212
      %p221 = scmp.eq.s32.totalorder %s21, 1
      %p222 = por %p220, %p221
      %p223 = scmp.ne.s32.totalorder %s212, %s213
      %p224 = scmp.eq.s32.totalorder %s21, 0
      %p225 = por %p223, %p224
      %p226 = scmp.ne.s32.totalorder %s212, %s213
      %p227 = scmp.eq.s32.totalorder %s22, 1
      %p228 = por %p226, %p227
      %p230 = scmp.ne.s32.totalorder %s213, %s229
      %p231 = scmp.eq.s32.totalorder %s22, 0
      %p232 = por %p230, %p231
      %p233 = scmp.le.s32.totalorder 1, %s16
      %p234 = scmp.lt.s32.totalorder %s16, 3
      %p235 = pnand %p233, %p234
      %p236 = pneg %p235
      // Predicated region
      $region9: #{up_double_convertible_style_block.1} parent=5 // pred_check
        _
      $region10: #{up_double_convertible_style_block.1} parent=5 // pred_check_branch
        %238 = sbr.rel (%p235) target = $region12
      $region11: #{up_double_convertible_style_block.1} parent=5 // pred_region
        %s239 = ssub.s32 %s16, 1
        // Predicated region
        $region13: #{up_double_convertible_style_block.1} parent=11 // pred_check
          %p240 = pneg %p63
        $region14: #{up_double_convertible_style_block.1} parent=11 // pred_check_branch
          %242 = sbr.rel (%p240) target = $region16
        $region15: #{up_double_convertible_style_block.1} parent=11 // pred_region
          %244 = vsyncadd [#allocation5], 0
          %s245 = sshll.u32 %s1, 4
          %s246 = int_to_ptr.hbm [resolvable:$true] %s245
          %s247 = sshll.u32 [#allocation4], 4
          %s248 = int_to_ptr.vmem [resolvable:$true] %s247
          %253 = dma.hbm_to_vmem [thread:$0]  %s246, 40960, %s248, [#allocation5], 1280, 1280, 80
        $region16: #{up_double_convertible_style_block.1} parent=11 // pred_fallthru
          _
        // Predicated region
        $region17: #{up_double_convertible_style_block.1} parent=11 // pred_check
          %p254 = pneg %p136
        $region18: #{up_double_convertible_style_block.1} parent=11 // pred_check_branch
          %256 = sbr.rel (%p254) target = $region20
        $region19: #{up_double_convertible_style_block.1} parent=11 // pred_region
          _
        $region20: #{up_double_convertible_style_block.1} parent=11 // pred_fallthru
          _
        // Predicated region
        $region21: #{up_double_convertible_style_block.1} parent=11 // pred_check
          %p257 = pneg %p157
        $region22: #{up_double_convertible_style_block.1} parent=11 // pred_check_branch
          %259 = sbr.rel (%p257) target = $region24
        $region23: #{up_double_convertible_style_block.1} parent=11 // pred_region
          %261 = vsyncadd [#allocation7], 0
          %s263 = sshll.u32 %s5, 4
          %s264 = int_to_ptr.hbm [resolvable:$true] %s263
          %s265 = sshll.u32 [#allocation6], 4
          %s266 = int_to_ptr.vmem [resolvable:$true] %s265
          %268 = dma.hbm_to_vmem [thread:$0]  %s264, 144, %s266, [#allocation7]
        $region24: #{up_double_convertible_style_block.1} parent=11 // pred_fallthru
          _
        // Predicated region
        $region25: #{up_double_convertible_style_block.1} parent=11 // pred_check
          %p269 = pneg %p178
        $region26: #{up_double_convertible_style_block.1} parent=11 // pred_check_branch
          %271 = sbr.rel (%p269) target = $region28
        $region27: #{up_double_convertible_style_block.1} parent=11 // pred_region
          _
        $region28: #{up_double_convertible_style_block.1} parent=11 // pred_fallthru
          _
        // Predicated region
        $region29: #{up_double_convertible_style_block.1} parent=11 // pred_check
          %p272 = pneg %p199
        $region30: #{up_double_convertible_style_block.1} parent=11 // pred_check_branch
          %274 = sbr.rel (%p272) target = $region32
        $region31: #{up_double_convertible_style_block.1} parent=11 // pred_region
          _
        $region32: #{up_double_convertible_style_block.1} parent=11 // pred_fallthru
          _
      $region12: #{up_double_convertible_style_block.1} parent=5 // pred_fallthru
        _
      %p275 = scmp.lt.s32.totalorder %s16, 2
      // Predicated region
      $region33: #{up_double_convertible_style_block.1} parent=5 // pred_check
        %p276 = pneg %p275
      $region34: #{up_double_convertible_style_block.1} parent=5 // pred_check_branch
        %278 = sbr.rel (%p276) target = $region36
      $region35: #{up_double_convertible_style_block.1} parent=5 // pred_region
        // Predicated region
        $region37: #{up_double_convertible_style_block.1} parent=35 // pred_check
          %p279 = pneg %p36
        $region38: #{up_double_convertible_style_block.1} parent=35 // pred_check_branch
          %281 = sbr.rel (%p279) target = $region40
        $region39: #{up_double_convertible_style_block.1} parent=35 // pred_region
          %p282 = scmp.lt.s32.totalorder %s16, 1
          %s283 = scalar_select %p282, %s16, 1
          %s284 = smul.addr %s283, 2
          %s285 = smul.addr %s284, 8
          %s286 = scalar_lea.vmem %s0, %s285
        $region40: #{up_double_convertible_style_block.1} parent=35 // pred_fallthru
          _
        // Predicated region
        $region41: #{up_double_convertible_style_block.1} parent=35 // pred_check
          %p287 = pneg %p83
        $region42: #{up_double_convertible_style_block.1} parent=35 // pred_check_branch
          %289 = sbr.rel (%p287) target = $region44
        $region43: #{up_double_convertible_style_block.1} parent=35 // pred_region
          %p290 = scmp.lt.s32.totalorder %s16, 1
          %s291 = scalar_select %p290, %s16, 1
          %s292 = smul.addr %s291, 4
          %s293 = scalar_lea.vmem %s2, %s292
        $region44: #{up_double_convertible_style_block.1} parent=35 // pred_fallthru
          _
        // Predicated region
        $region45: #{up_double_convertible_style_block.1} parent=35 // pred_check
          %p294 = pneg %p109
        $region46: #{up_double_convertible_style_block.1} parent=35 // pred_check_branch
          %296 = sbr.rel (%p294) target = $region48
        $region47: #{up_double_convertible_style_block.1} parent=35 // pred_region
          %p297 = scmp.lt.s32.totalorder %s16, 1
          %s298 = scalar_select %p297, %s16, 1
          %s299 = smul.addr %s298, 4
          %s300 = scalar_lea.vmem %s3, %s299
        $region48: #{up_double_convertible_style_block.1} parent=35 // pred_fallthru
          _
      $region36: #{up_double_convertible_style_block.1} parent=5 // pred_fallthru
        _
      %p301 = scmp.le.s32.totalorder 1, %s16
      %p302 = scmp.lt.s32.totalorder %s16, 3
      %p303 = pnand %p301, %p302
      %p304 = pneg %p303
      // Predicated region
      $region49: #{up_double_convertible_style_block.1} parent=5 // pred_check
        _
      $region50: #{up_double_convertible_style_block.1} parent=5 // pred_check_branch
        %306 = sbr.rel (%p303) target = $region52
      $region51: #{up_double_convertible_style_block.1} parent=5 // pred_region
        %s307 = ssub.s32 %s16, 1
        // Predicated region
        $region53: #{up_double_convertible_style_block.1} parent=51 // pred_check
          %p308 = pneg %p63
        $region54: #{up_double_convertible_style_block.1} parent=51 // pred_check_branch
          %310 = sbr.rel (%p308) target = $region56
        $region55: #{up_double_convertible_style_block.1} parent=51 // pred_region
          %312 = dma.done [#allocation5], 40960
        $region56: #{up_double_convertible_style_block.1} parent=51 // pred_fallthru
          _
        // Predicated region
        $region57: #{up_double_convertible_style_block.1} parent=51 // pred_check
          %p313 = pneg %p157
        $region58: #{up_double_convertible_style_block.1} parent=51 // pred_check_branch
          %315 = sbr.rel (%p313) target = $region60
        $region59: #{up_double_convertible_style_block.1} parent=51 // pred_region
          %317 = dma.done [#allocation7], 144
        $region60: #{up_double_convertible_style_block.1} parent=51 // pred_fallthru
          _
        %p318 = scmp.lt.s32.totalorder %s21, 1
        %s319 = scalar_select %p318, %s21, 1
        %s320 = smul.addr %s319, 2
        %s321 = smul.addr %s320, 8
        %s322 = scalar_lea.vmem %s0, %s321
        %p323 = pneg %p42
        %p324 = pneg %p39
        %p325 = pneg %p63
        %p326 = pneg %p60
        %p327 = scmp.lt.s32.totalorder %s21, 1
        %s328 = scalar_select %p327, %s21, 1
        %s329 = smul.addr %s328, 4
        %s330 = scalar_lea.vmem %s2, %s329
        %p331 = pneg %p89
        %p332 = pneg %p86
        %p333 = scmp.lt.s32.totalorder %s21, 1
        %s334 = scalar_select %p333, %s21, 1
        %s335 = smul.addr %s334, 4
        %s336 = scalar_lea.vmem %s3, %s335
        %p337 = pneg %p115
        %p338 = pneg %p112
        %p339 = pneg %p136
        %p340 = pneg %p133
        %p341 = pneg %p157
        %p342 = pneg %p154
        %p343 = pneg %p178
        %p344 = pneg %p175
        %p345 = pneg %p199
        %p346 = pneg %p196
        %p347 = pneg %p225
        %p348 = pneg %p222
        %p349 = scmp.lt.s32.totalorder %s21, 1
        %s350 = scalar_select %p349, %s21, 1
        %s351 = smul.addr %s350, 9
        %s352 = smul.addr %s351, 8
        %s353 = scalar_lea.vmem %s8, %s352
        %p354 = scmp.lt.s32.totalorder %s21, 1
        %s355 = scalar_select %p354, %s21, 1
        %s356 = smul.addr %s355, 2
        %s357 = smul.addr %s356, 8
        %s358 = scalar_lea.vmem %s0, %s357
        %p359 = scmp.lt.s32.totalorder %s21, 1
        %s360 = scalar_select %p359, %s21, 1
        %s361 = smul.addr %s360, 4
        %s362 = scalar_lea.vmem %s2, %s361
        %p363 = scmp.lt.s32.totalorder %s21, 1
        %s364 = scalar_select %p363, %s21, 1
        %s365 = smul.addr %s364, 4
        %s366 = scalar_lea.vmem %s3, %s365
        %p367 = scmp.lt.s32.totalorder %s21, 1
        %s368 = scalar_select %p367, %s21, 1
        %s369 = smul.addr %s368, 9
        %s370 = smul.addr %s369, 8
        %s371 = scalar_lea.vmem %s8, %s370
        %v373 = vld [vmem:[%s358] sm:$0xff]
        %v374 = vld [vmem:[%s358 + $0x8] sm:$0xff]
        %v375 = vld [vmem:[#allocation4] sm:$0xff]
        %v376 = vld [vmem:[#allocation4 + $0x8] sm:$0xff]
        %v377 = vld [vmem:[#allocation4 + $0x10] sm:$0xff]
        %v378 = vld [vmem:[#allocation4 + $0x18] sm:$0xff]
        %v379 = vld [vmem:[#allocation4 + $0x20] sm:$0xff]
        %v380 = vld [vmem:[#allocation4 + $0x28] sm:$0xff]
        %v381 = vld [vmem:[#allocation4 + $0x30] sm:$0xff]
        %v382 = vld [vmem:[#allocation4 + $0x38] sm:$0xff]
        %v383 = vld [vmem:[#allocation4 + $0x40] sm:$0xff]
        %v384 = vld [vmem:[#allocation4 + $0x48] sm:$0xff]
        %v385 = vld [vmem:[#allocation4 + $0x50] sm:$0xff]
        %v386 = vld [vmem:[#allocation4 + $0x58] sm:$0xff]
        %v387 = vld [vmem:[#allocation4 + $0x60] sm:$0xff]
        %v388 = vld [vmem:[#allocation4 + $0x68] sm:$0xff]
        %v389 = vld [vmem:[#allocation4 + $0x70] sm:$0xff]
        %v390 = vld [vmem:[#allocation4 + $0x78] sm:$0xff]
        %v391 = vld [vmem:[#allocation4 + $0x80] sm:$0xff]
        %v392 = vld [vmem:[#allocation4 + $0x88] sm:$0xff]
        %v393 = vld [vmem:[#allocation4 + $0x90] sm:$0xff]
        %v394 = vld [vmem:[#allocation4 + $0x98] sm:$0xff]
        %v395 = vld [vmem:[#allocation4 + $0xa0] sm:$0xff]
        %v396 = vld [vmem:[#allocation4 + $0xa8] sm:$0xff]
        %v397 = vld [vmem:[#allocation4 + $0xb0] sm:$0xff]
        %v398 = vld [vmem:[#allocation4 + $0xb8] sm:$0xff]
        %v399 = vld [vmem:[#allocation4 + $0xc0] sm:$0xff]
        %v400 = vld [vmem:[#allocation4 + $0xc8] sm:$0xff]
        %v401 = vld [vmem:[#allocation4 + $0xd0] sm:$0xff]
        %v402 = vld [vmem:[#allocation4 + $0xd8] sm:$0xff]
        %v403 = vld [vmem:[#allocation4 + $0xe0] sm:$0xff]
        %v404 = vld [vmem:[#allocation4 + $0xe8] sm:$0xff]
        %v405 = vld [vmem:[#allocation4 + $0xf0] sm:$0xff]
        %v406 = vld [vmem:[#allocation4 + $0xf8] sm:$0xff]
        %v407 = vld [vmem:[#allocation4 + $0x100] sm:$0xff]
        %v408 = vld [vmem:[#allocation4 + $0x108] sm:$0xff]
        %v409 = vld [vmem:[#allocation4 + $0x110] sm:$0xff]
        %v410 = vld [vmem:[#allocation4 + $0x118] sm:$0xff]
        %v411 = vld [vmem:[#allocation4 + $0x120] sm:$0xff]
        %v412 = vld [vmem:[#allocation4 + $0x128] sm:$0xff]
        %v413 = vld [vmem:[#allocation4 + $0x130] sm:$0xff]
        %v414 = vld [vmem:[#allocation4 + $0x138] sm:$0xff]
        %v415 = vld [vmem:[#allocation4 + $0x140] sm:$0xff]
        %v416 = vld [vmem:[#allocation4 + $0x148] sm:$0xff]
        %v417 = vld [vmem:[#allocation4 + $0x150] sm:$0xff]
        %v418 = vld [vmem:[#allocation4 + $0x158] sm:$0xff]
        %v419 = vld [vmem:[#allocation4 + $0x160] sm:$0xff]
        %v420 = vld [vmem:[#allocation4 + $0x168] sm:$0xff]
        %v421 = vld [vmem:[#allocation4 + $0x170] sm:$0xff]
        %v422 = vld [vmem:[#allocation4 + $0x178] sm:$0xff]
        %v423 = vld [vmem:[#allocation4 + $0x180] sm:$0xff]
        %v424 = vld [vmem:[#allocation4 + $0x188] sm:$0xff]
        %v425 = vld [vmem:[#allocation4 + $0x190] sm:$0xff]
        %v426 = vld [vmem:[#allocation4 + $0x198] sm:$0xff]
        %v427 = vld [vmem:[#allocation4 + $0x1a0] sm:$0xff]
        %v428 = vld [vmem:[#allocation4 + $0x1a8] sm:$0xff]
        %v429 = vld [vmem:[#allocation4 + $0x1b0] sm:$0xff]
        %v430 = vld [vmem:[#allocation4 + $0x1b8] sm:$0xff]
        %v431 = vld [vmem:[#allocation4 + $0x1c0] sm:$0xff]
        %v432 = vld [vmem:[#allocation4 + $0x1c8] sm:$0xff]
        %v433 = vld [vmem:[#allocation4 + $0x1d0] sm:$0xff]
        %v434 = vld [vmem:[#allocation4 + $0x1d8] sm:$0xff]
        %v435 = vld [vmem:[#allocation4 + $0x1e0] sm:$0xff]
        %v436 = vld [vmem:[#allocation4 + $0x1e8] sm:$0xff]
        %v437 = vld [vmem:[#allocation4 + $0x1f0] sm:$0xff]
        %v438 = vld [vmem:[#allocation4 + $0x1f8] sm:$0xff]
        %v439 = vld [vmem:[#allocation4 + $0x200] sm:$0xff]
        %v440 = vld [vmem:[#allocation4 + $0x208] sm:$0xff]
        %v441 = vld [vmem:[#allocation4 + $0x210] sm:$0xff]
        %v442 = vld [vmem:[#allocation4 + $0x218] sm:$0xff]
        %v443 = vld [vmem:[#allocation4 + $0x220] sm:$0xff]
        %v444 = vld [vmem:[#allocation4 + $0x228] sm:$0xff]
        %v445 = vld [vmem:[#allocation4 + $0x230] sm:$0xff]
        %v446 = vld [vmem:[#allocation4 + $0x238] sm:$0xff]
        %v447 = vld [vmem:[#allocation4 + $0x240] sm:$0xff]
        %v448 = vld [vmem:[#allocation4 + $0x248] sm:$0xff]
        %v449 = vld [vmem:[#allocation4 + $0x250] sm:$0xff]
        %v450 = vld [vmem:[#allocation4 + $0x258] sm:$0xff]
        %v451 = vld [vmem:[#allocation4 + $0x260] sm:$0xff]
        %v452 = vld [vmem:[#allocation4 + $0x268] sm:$0xff]
        %v453 = vld [vmem:[#allocation4 + $0x270] sm:$0xff]
        %v454 = vld [vmem:[#allocation4 + $0x278] sm:$0xff]
        %v455 = vld [vmem:[#allocation4 + $0x280] sm:$0xff]
        %v456 = vld [vmem:[#allocation4 + $0x288] sm:$0xff]
        %v457 = vld [vmem:[#allocation4 + $0x290] sm:$0xff]
        %v458 = vld [vmem:[#allocation4 + $0x298] sm:$0xff]
        %v459 = vld [vmem:[#allocation4 + $0x2a0] sm:$0xff]
        %v460 = vld [vmem:[#allocation4 + $0x2a8] sm:$0xff]
        %v461 = vld [vmem:[#allocation4 + $0x2b0] sm:$0xff]
        %v462 = vld [vmem:[#allocation4 + $0x2b8] sm:$0xff]
        %v463 = vld [vmem:[#allocation4 + $0x2c0] sm:$0xff]
        %v464 = vld [vmem:[#allocation4 + $0x2c8] sm:$0xff]
        %v465 = vld [vmem:[#allocation4 + $0x2d0] sm:$0xff]
        %v466 = vld [vmem:[#allocation4 + $0x2d8] sm:$0xff]
        %v467 = vld [vmem:[#allocation4 + $0x2e0] sm:$0xff]
        %v468 = vld [vmem:[#allocation4 + $0x2e8] sm:$0xff]
        %v469 = vld [vmem:[#allocation4 + $0x2f0] sm:$0xff]
        %v470 = vld [vmem:[#allocation4 + $0x2f8] sm:$0xff]
        %v471 = vld [vmem:[#allocation4 + $0x300] sm:$0xff]
        %v472 = vld [vmem:[#allocation4 + $0x308] sm:$0xff]
        %v473 = vld [vmem:[#allocation4 + $0x310] sm:$0xff]
        %v474 = vld [vmem:[#allocation4 + $0x318] sm:$0xff]
        %v475 = vld [vmem:[#allocation4 + $0x320] sm:$0xff]
        %v476 = vld [vmem:[#allocation4 + $0x328] sm:$0xff]
        %v477 = vld [vmem:[#allocation4 + $0x330] sm:$0xff]
        %v478 = vld [vmem:[#allocation4 + $0x338] sm:$0xff]
        %v479 = vld [vmem:[#allocation4 + $0x340] sm:$0xff]
        %v480 = vld [vmem:[#allocation4 + $0x348] sm:$0xff]
        %v481 = vld [vmem:[#allocation4 + $0x350] sm:$0xff]
        %v482 = vld [vmem:[#allocation4 + $0x358] sm:$0xff]
        %v483 = vld [vmem:[#allocation4 + $0x360] sm:$0xff]
        %v484 = vld [vmem:[#allocation4 + $0x368] sm:$0xff]
        %v485 = vld [vmem:[#allocation4 + $0x370] sm:$0xff]
        %v486 = vld [vmem:[#allocation4 + $0x378] sm:$0xff]
        %v487 = vld [vmem:[#allocation4 + $0x380] sm:$0xff]
        %v488 = vld [vmem:[#allocation4 + $0x388] sm:$0xff]
        %v489 = vld [vmem:[#allocation4 + $0x390] sm:$0xff]
        %v490 = vld [vmem:[#allocation4 + $0x398] sm:$0xff]
        %v491 = vld [vmem:[#allocation4 + $0x3a0] sm:$0xff]
        %v492 = vld [vmem:[#allocation4 + $0x3a8] sm:$0xff]
        %v493 = vld [vmem:[#allocation4 + $0x3b0] sm:$0xff]
        %v494 = vld [vmem:[#allocation4 + $0x3b8] sm:$0xff]
        %v495 = vld [vmem:[#allocation4 + $0x3c0] sm:$0xff]
        %v496 = vld [vmem:[#allocation4 + $0x3c8] sm:$0xff]
        %v497 = vld [vmem:[#allocation4 + $0x3d0] sm:$0xff]
        %v498 = vld [vmem:[#allocation4 + $0x3d8] sm:$0xff]
        %v499 = vld [vmem:[#allocation4 + $0x3e0] sm:$0xff]
        %v500 = vld [vmem:[#allocation4 + $0x3e8] sm:$0xff]
        %v501 = vld [vmem:[#allocation4 + $0x3f0] sm:$0xff]
        %v502 = vld [vmem:[#allocation4 + $0x3f8] sm:$0xff]
        %v503 = vld [vmem:[#allocation4 + $0x400] sm:$0xff]
        %v504 = vld [vmem:[#allocation4 + $0x408] sm:$0xff]
        %v505 = vld [vmem:[#allocation4 + $0x410] sm:$0xff]
        %v506 = vld [vmem:[#allocation4 + $0x418] sm:$0xff]
        %v507 = vld [vmem:[#allocation4 + $0x420] sm:$0xff]
        %v508 = vld [vmem:[#allocation4 + $0x428] sm:$0xff]
        %v509 = vld [vmem:[#allocation4 + $0x430] sm:$0xff]
        %v510 = vld [vmem:[#allocation4 + $0x438] sm:$0xff]
        %v511 = vld [vmem:[#allocation4 + $0x440] sm:$0xff]
        %v512 = vld [vmem:[#allocation4 + $0x448] sm:$0xff]
        %v513 = vld [vmem:[#allocation4 + $0x450] sm:$0xff]
        %v514 = vld [vmem:[#allocation4 + $0x458] sm:$0xff]
        %v515 = vld [vmem:[#allocation4 + $0x460] sm:$0xff]
        %v516 = vld [vmem:[#allocation4 + $0x468] sm:$0xff]
        %v517 = vld [vmem:[#allocation4 + $0x470] sm:$0xff]
        %v518 = vld [vmem:[#allocation4 + $0x478] sm:$0xff]
        %v519 = vld [vmem:[#allocation4 + $0x480] sm:$0xff]
        %v520 = vld [vmem:[#allocation4 + $0x488] sm:$0xff]
        %v521 = vld [vmem:[#allocation4 + $0x490] sm:$0xff]
        %v522 = vld [vmem:[#allocation4 + $0x498] sm:$0xff]
        %v523 = vld [vmem:[#allocation4 + $0x4a0] sm:$0xff]
        %v524 = vld [vmem:[#allocation4 + $0x4a8] sm:$0xff]
        %v525 = vld [vmem:[#allocation4 + $0x4b0] sm:$0xff]
        %v526 = vld [vmem:[#allocation4 + $0x4b8] sm:$0xff]
        %v527 = vld [vmem:[#allocation4 + $0x4c0] sm:$0xff]
        %v528 = vld [vmem:[#allocation4 + $0x4c8] sm:$0xff]
        %v529 = vld [vmem:[#allocation4 + $0x4d0] sm:$0xff]
        %v530 = vld [vmem:[#allocation4 + $0x4d8] sm:$0xff]
        %v531 = vld [vmem:[#allocation4 + $0x4e0] sm:$0xff]
        %v532 = vld [vmem:[#allocation4 + $0x4e8] sm:$0xff]
        %v533 = vld [vmem:[#allocation4 + $0x4f0] sm:$0xff]
        %v534 = vld [vmem:[#allocation4 + $0x4f8] sm:$0xff]
        %v535 = vld [vmem:[#allocation4 + $0x500] sm:$0xff]
        %v536 = vld [vmem:[#allocation4 + $0x508] sm:$0xff]
        %v537 = vld [vmem:[#allocation4 + $0x510] sm:$0xff]
        %v538 = vld [vmem:[#allocation4 + $0x518] sm:$0xff]
        %v539 = vld [vmem:[#allocation4 + $0x520] sm:$0xff]
        %v540 = vld [vmem:[#allocation4 + $0x528] sm:$0xff]
        %v541 = vld [vmem:[#allocation4 + $0x530] sm:$0xff]
        %v542 = vld [vmem:[#allocation4 + $0x538] sm:$0xff]
        %v543 = vld [vmem:[#allocation4 + $0x540] sm:$0xff]
        %v544 = vld [vmem:[#allocation4 + $0x548] sm:$0xff]
        %v545 = vld [vmem:[#allocation4 + $0x550] sm:$0xff]
        %v546 = vld [vmem:[#allocation4 + $0x558] sm:$0xff]
        %v547 = vld [vmem:[#allocation4 + $0x560] sm:$0xff]
        %v548 = vld [vmem:[#allocation4 + $0x568] sm:$0xff]
        %v549 = vld [vmem:[#allocation4 + $0x570] sm:$0xff]
        %v550 = vld [vmem:[#allocation4 + $0x578] sm:$0xff]
        %v551 = vld [vmem:[#allocation4 + $0x580] sm:$0xff]
        %v552 = vld [vmem:[#allocation4 + $0x588] sm:$0xff]
        %v553 = vld [vmem:[#allocation4 + $0x590] sm:$0xff]
        %v554 = vld [vmem:[#allocation4 + $0x598] sm:$0xff]
        %v555 = vld [vmem:[#allocation4 + $0x5a0] sm:$0xff]
        %v556 = vld [vmem:[#allocation4 + $0x5a8] sm:$0xff]
        %v557 = vld [vmem:[#allocation4 + $0x5b0] sm:$0xff]
        %v558 = vld [vmem:[#allocation4 + $0x5b8] sm:$0xff]
        %v559 = vld [vmem:[#allocation4 + $0x5c0] sm:$0xff]
        %v560 = vld [vmem:[#allocation4 + $0x5c8] sm:$0xff]
        %v561 = vld [vmem:[#allocation4 + $0x5d0] sm:$0xff]
        %v562 = vld [vmem:[#allocation4 + $0x5d8] sm:$0xff]
        %v563 = vld [vmem:[#allocation4 + $0x5e0] sm:$0xff]
        %v564 = vld [vmem:[#allocation4 + $0x5e8] sm:$0xff]
        %v565 = vld [vmem:[#allocation4 + $0x5f0] sm:$0xff]
        %v566 = vld [vmem:[#allocation4 + $0x5f8] sm:$0xff]
        %v567 = vld [vmem:[#allocation4 + $0x600] sm:$0xff]
        %v568 = vld [vmem:[#allocation4 + $0x608] sm:$0xff]
        %v569 = vld [vmem:[#allocation4 + $0x610] sm:$0xff]
        %v570 = vld [vmem:[#allocation4 + $0x618] sm:$0xff]
        %v571 = vld [vmem:[#allocation4 + $0x620] sm:$0xff]
        %v572 = vld [vmem:[#allocation4 + $0x628] sm:$0xff]
        %v573 = vld [vmem:[#allocation4 + $0x630] sm:$0xff]
        %v574 = vld [vmem:[#allocation4 + $0x638] sm:$0xff]
        %v575 = vld [vmem:[#allocation4 + $0x640] sm:$0xff]
        %v576 = vld [vmem:[#allocation4 + $0x648] sm:$0xff]
        %v577 = vld [vmem:[#allocation4 + $0x650] sm:$0xff]
        %v578 = vld [vmem:[#allocation4 + $0x658] sm:$0xff]
        %v579 = vld [vmem:[#allocation4 + $0x660] sm:$0xff]
        %v580 = vld [vmem:[#allocation4 + $0x668] sm:$0xff]
        %v581 = vld [vmem:[#allocation4 + $0x670] sm:$0xff]
        %v582 = vld [vmem:[#allocation4 + $0x678] sm:$0xff]
        %v583 = vld [vmem:[#allocation4 + $0x680] sm:$0xff]
        %v584 = vld [vmem:[#allocation4 + $0x688] sm:$0xff]
        %v585 = vld [vmem:[#allocation4 + $0x690] sm:$0xff]
        %v586 = vld [vmem:[#allocation4 + $0x698] sm:$0xff]
        %v587 = vld [vmem:[#allocation4 + $0x6a0] sm:$0xff]
        %v588 = vld [vmem:[#allocation4 + $0x6a8] sm:$0xff]
        %v589 = vld [vmem:[#allocation4 + $0x6b0] sm:$0xff]
        %v590 = vld [vmem:[#allocation4 + $0x6b8] sm:$0xff]
        %v591 = vld [vmem:[#allocation4 + $0x6c0] sm:$0xff]
        %v592 = vld [vmem:[#allocation4 + $0x6c8] sm:$0xff]
        %v593 = vld [vmem:[#allocation4 + $0x6d0] sm:$0xff]
        %v594 = vld [vmem:[#allocation4 + $0x6d8] sm:$0xff]
        %v595 = vld [vmem:[#allocation4 + $0x6e0] sm:$0xff]
        %v596 = vld [vmem:[#allocation4 + $0x6e8] sm:$0xff]
        %v597 = vld [vmem:[#allocation4 + $0x6f0] sm:$0xff]
        %v598 = vld [vmem:[#allocation4 + $0x6f8] sm:$0xff]
        %v599 = vld [vmem:[#allocation4 + $0x700] sm:$0xff]
        %v600 = vld [vmem:[#allocation4 + $0x708] sm:$0xff]
        %v601 = vld [vmem:[#allocation4 + $0x710] sm:$0xff]
        %v602 = vld [vmem:[#allocation4 + $0x718] sm:$0xff]
        %v603 = vld [vmem:[#allocation4 + $0x720] sm:$0xff]
        %v604 = vld [vmem:[#allocation4 + $0x728] sm:$0xff]
        %v605 = vld [vmem:[#allocation4 + $0x730] sm:$0xff]
        %v606 = vld [vmem:[#allocation4 + $0x738] sm:$0xff]
        %v607 = vld [vmem:[#allocation4 + $0x740] sm:$0xff]
        %v608 = vld [vmem:[#allocation4 + $0x748] sm:$0xff]
        %v609 = vld [vmem:[#allocation4 + $0x750] sm:$0xff]
        %v610 = vld [vmem:[#allocation4 + $0x758] sm:$0xff]
        %v611 = vld [vmem:[#allocation4 + $0x760] sm:$0xff]
        %v612 = vld [vmem:[#allocation4 + $0x768] sm:$0xff]
        %v613 = vld [vmem:[#allocation4 + $0x770] sm:$0xff]
        %v614 = vld [vmem:[#allocation4 + $0x778] sm:$0xff]
        %v615 = vld [vmem:[#allocation4 + $0x780] sm:$0xff]
        %v616 = vld [vmem:[#allocation4 + $0x788] sm:$0xff]
        %v617 = vld [vmem:[#allocation4 + $0x790] sm:$0xff]
        %v618 = vld [vmem:[#allocation4 + $0x798] sm:$0xff]
        %v619 = vld [vmem:[#allocation4 + $0x7a0] sm:$0xff]
        %v620 = vld [vmem:[#allocation4 + $0x7a8] sm:$0xff]
        %v621 = vld [vmem:[#allocation4 + $0x7b0] sm:$0xff]
        %v622 = vld [vmem:[#allocation4 + $0x7b8] sm:$0xff]
        %v623 = vld [vmem:[#allocation4 + $0x7c0] sm:$0xff]
        %v624 = vld [vmem:[#allocation4 + $0x7c8] sm:$0xff]
        %v625 = vld [vmem:[#allocation4 + $0x7d0] sm:$0xff]
        %v626 = vld [vmem:[#allocation4 + $0x7d8] sm:$0xff]
        %v627 = vld [vmem:[#allocation4 + $0x7e0] sm:$0xff]
        %v628 = vld [vmem:[#allocation4 + $0x7e8] sm:$0xff]
        %v629 = vld [vmem:[#allocation4 + $0x7f0] sm:$0xff]
        %v630 = vld [vmem:[#allocation4 + $0x7f8] sm:$0xff]
        %v631 = vld [vmem:[#allocation4 + $0x800] sm:$0xff]
        %v632 = vld [vmem:[#allocation4 + $0x808] sm:$0xff]
        %v633 = vld [vmem:[#allocation4 + $0x810] sm:$0xff]
        %v634 = vld [vmem:[#allocation4 + $0x818] sm:$0xff]
        %v635 = vld [vmem:[#allocation4 + $0x820] sm:$0xff]
        %v636 = vld [vmem:[#allocation4 + $0x828] sm:$0xff]
        %v637 = vld [vmem:[#allocation4 + $0x830] sm:$0xff]
        %v638 = vld [vmem:[#allocation4 + $0x838] sm:$0xff]
        %v639 = vld [vmem:[#allocation4 + $0x840] sm:$0xff]
        %v640 = vld [vmem:[#allocation4 + $0x848] sm:$0xff]
        %v641 = vld [vmem:[#allocation4 + $0x850] sm:$0xff]
        %v642 = vld [vmem:[#allocation4 + $0x858] sm:$0xff]
        %v643 = vld [vmem:[#allocation4 + $0x860] sm:$0xff]
        %v644 = vld [vmem:[#allocation4 + $0x868] sm:$0xff]
        %v645 = vld [vmem:[#allocation4 + $0x870] sm:$0xff]
        %v646 = vld [vmem:[#allocation4 + $0x878] sm:$0xff]
        %v647 = vld [vmem:[#allocation4 + $0x880] sm:$0xff]
        %v648 = vld [vmem:[#allocation4 + $0x888] sm:$0xff]
        %v649 = vld [vmem:[#allocation4 + $0x890] sm:$0xff]
        %v650 = vld [vmem:[#allocation4 + $0x898] sm:$0xff]
        %v651 = vld [vmem:[#allocation4 + $0x8a0] sm:$0xff]
        %v652 = vld [vmem:[#allocation4 + $0x8a8] sm:$0xff]
        %v653 = vld [vmem:[#allocation4 + $0x8b0] sm:$0xff]
        %v654 = vld [vmem:[#allocation4 + $0x8b8] sm:$0xff]
        %v655 = vld [vmem:[#allocation4 + $0x8c0] sm:$0xff]
        %v656 = vld [vmem:[#allocation4 + $0x8c8] sm:$0xff]
        %v657 = vld [vmem:[#allocation4 + $0x8d0] sm:$0xff]
        %v658 = vld [vmem:[#allocation4 + $0x8d8] sm:$0xff]
        %v659 = vld [vmem:[#allocation4 + $0x8e0] sm:$0xff]
        %v660 = vld [vmem:[#allocation4 + $0x8e8] sm:$0xff]
        %v661 = vld [vmem:[#allocation4 + $0x8f0] sm:$0xff]
        %v662 = vld [vmem:[#allocation4 + $0x8f8] sm:$0xff]
        %v663 = vld [vmem:[#allocation4 + $0x900] sm:$0xff]
        %v664 = vld [vmem:[#allocation4 + $0x908] sm:$0xff]
        %v665 = vld [vmem:[#allocation4 + $0x910] sm:$0xff]
        %v666 = vld [vmem:[#allocation4 + $0x918] sm:$0xff]
        %v667 = vld [vmem:[#allocation4 + $0x920] sm:$0xff]
        %v668 = vld [vmem:[#allocation4 + $0x928] sm:$0xff]
        %v669 = vld [vmem:[#allocation4 + $0x930] sm:$0xff]
        %v670 = vld [vmem:[#allocation4 + $0x938] sm:$0xff]
        %v671 = vld [vmem:[#allocation4 + $0x940] sm:$0xff]
        %v672 = vld [vmem:[#allocation4 + $0x948] sm:$0xff]
        %v673 = vld [vmem:[#allocation4 + $0x950] sm:$0xff]
        %v674 = vld [vmem:[#allocation4 + $0x958] sm:$0xff]
        %v675 = vld [vmem:[#allocation4 + $0x960] sm:$0xff]
        %v676 = vld [vmem:[#allocation4 + $0x968] sm:$0xff]
        %v677 = vld [vmem:[#allocation4 + $0x970] sm:$0xff]
        %v678 = vld [vmem:[#allocation4 + $0x978] sm:$0xff]
        %v679 = vld [vmem:[#allocation4 + $0x980] sm:$0xff]
        %v680 = vld [vmem:[#allocation4 + $0x988] sm:$0xff]
        %v681 = vld [vmem:[#allocation4 + $0x990] sm:$0xff]
        %v682 = vld [vmem:[#allocation4 + $0x998] sm:$0xff]
        %v683 = vld [vmem:[#allocation4 + $0x9a0] sm:$0xff]
        %v684 = vld [vmem:[#allocation4 + $0x9a8] sm:$0xff]
        %v685 = vld [vmem:[#allocation4 + $0x9b0] sm:$0xff]
        %v686 = vld [vmem:[#allocation4 + $0x9b8] sm:$0xff]
        %v687 = vld [vmem:[#allocation4 + $0x9c0] sm:$0xff]
        %v688 = vld [vmem:[#allocation4 + $0x9c8] sm:$0xff]
        %v689 = vld [vmem:[#allocation4 + $0x9d0] sm:$0xff]
        %v690 = vld [vmem:[#allocation4 + $0x9d8] sm:$0xff]
        %v691 = vld [vmem:[#allocation4 + $0x9e0] sm:$0xff]
        %v692 = vld [vmem:[#allocation4 + $0x9e8] sm:$0xff]
        %v693 = vld [vmem:[#allocation4 + $0x9f0] sm:$0xff]
        %v694 = vld [vmem:[#allocation4 + $0x9f8] sm:$0xff]
        %695 = vmatpush.msra.mxu0 %v525
        %696 = vmatpush.msra.mxu0 %v515
        %697 = vmatpush.msra.mxu0 %v505
        %698 = vmatpush.msra.mxu0 %v495
        %699 = vmatpush.msra.mxu0 %v485
        %700 = vmatpush.msra.mxu0 %v475
        %701 = vmatpush.msra.mxu0 %v465
        %702 = vmatpush.msra.mxu0 %v455
        %703 = vmatpush.msra.mxu0 %v445
        %704 = vmatpush.msra.mxu0 %v435
        %705 = vmatpush.msra.mxu0 %v425
        %706 = vmatpush.msra.mxu0 %v415
        %707 = vmatpush.msra.mxu0 %v405
        %708 = vmatpush.msra.mxu0 %v395
        %709 = vmatpush.msra.mxu0 %v385
        %710 = vmatpush.msra.mxu0 %v375
        %711 = vmatmul.f32.gmra.mxu0 %v373
        %v712 = vpop.f32.mrf.mxu0
        %v713 = vadd.f32 0.0, %v712
        %714 = vdwg.mxu0
        %715 = vmatpush.msra.mxu0 %v685
        %716 = vmatpush.msra.mxu0 %v675
        %717 = vmatpush.msra.mxu0 %v665
        %718 = vmatpush.msra.mxu0 %v655
        %719 = vmatpush.msra.mxu0 %v645
        %720 = vmatpush.msra.mxu0 %v635
        %721 = vmatpush.msra.mxu0 %v625
        %722 = vmatpush.msra.mxu0 %v615
        %723 = vmatpush.msra.mxu0 %v605
        %724 = vmatpush.msra.mxu0 %v595
        %725 = vmatpush.msra.mxu0 %v585
        %726 = vmatpush.msra.mxu0 %v575
        %727 = vmatpush.msra.mxu0 %v565
        %728 = vmatpush.msra.mxu0 %v555
        %729 = vmatpush.msra.mxu0 %v545
        %730 = vmatpush.msra.mxu0 %v535
        %731 = vmatmul.f32.gmra.mxu0 %v374
        %v732 = vpop.f32.mrf.mxu0
        %v733 = vadd.f32 %v713, %v732
        %734 = vdwg.mxu0
        %735 = vmatpush.msra.mxu0 %v526
        %736 = vmatpush.msra.mxu0 %v516
        %737 = vmatpush.msra.mxu0 %v506
        %738 = vmatpush.msra.mxu0 %v496
        %739 = vmatpush.msra.mxu0 %v486
        %740 = vmatpush.msra.mxu0 %v476
        %741 = vmatpush.msra.mxu0 %v466
        %742 = vmatpush.msra.mxu0 %v456
        %743 = vmatpush.msra.mxu0 %v446
        %744 = vmatpush.msra.mxu0 %v436
        %745 = vmatpush.msra.mxu0 %v426
        %746 = vmatpush.msra.mxu0 %v416
        %747 = vmatpush.msra.mxu0 %v406
        %748 = vmatpush.msra.mxu0 %v396
        %749 = vmatpush.msra.mxu0 %v386
        %750 = vmatpush.msra.mxu0 %v376
        %751 = vmatmul.f32.gmra.mxu0 %v373
        %v752 = vpop.f32.mrf.mxu0
        %v753 = vadd.f32 0.0, %v752
        %754 = vdwg.mxu0
        %755 = vmatpush.msra.mxu0 %v686
        %756 = vmatpush.msra.mxu0 %v676
        %757 = vmatpush.msra.mxu0 %v666
        %758 = vmatpush.msra.mxu0 %v656
        %759 = vmatpush.msra.mxu0 %v646
        %760 = vmatpush.msra.mxu0 %v636
        %761 = vmatpush.msra.mxu0 %v626
        %762 = vmatpush.msra.mxu0 %v616
        %763 = vmatpush.msra.mxu0 %v606
        %764 = vmatpush.msra.mxu0 %v596
        %765 = vmatpush.msra.mxu0 %v586
        %766 = vmatpush.msra.mxu0 %v576
        %767 = vmatpush.msra.mxu0 %v566
        %768 = vmatpush.msra.mxu0 %v556
        %769 = vmatpush.msra.mxu0 %v546
        %770 = vmatpush.msra.mxu0 %v536
        %771 = vmatmul.f32.gmra.mxu0 %v374
        %v772 = vpop.f32.mrf.mxu0
        %v773 = vadd.f32 %v753, %v772
        %774 = vdwg.mxu0
        %775 = vmatpush.msra.mxu0 %v527
        %776 = vmatpush.msra.mxu0 %v517
        %777 = vmatpush.msra.mxu0 %v507
        %778 = vmatpush.msra.mxu0 %v497
        %779 = vmatpush.msra.mxu0 %v487
        %780 = vmatpush.msra.mxu0 %v477
        %781 = vmatpush.msra.mxu0 %v467
        %782 = vmatpush.msra.mxu0 %v457
        %783 = vmatpush.msra.mxu0 %v447
        %784 = vmatpush.msra.mxu0 %v437
        %785 = vmatpush.msra.mxu0 %v427
        %786 = vmatpush.msra.mxu0 %v417
        %787 = vmatpush.msra.mxu0 %v407
        %788 = vmatpush.msra.mxu0 %v397
        %789 = vmatpush.msra.mxu0 %v387
        %790 = vmatpush.msra.mxu0 %v377
        %791 = vmatmul.f32.gmra.mxu0 %v373
        %v792 = vpop.f32.mrf.mxu0
        %v793 = vadd.f32 0.0, %v792
        %794 = vdwg.mxu0
        %795 = vmatpush.msra.mxu0 %v687
        %796 = vmatpush.msra.mxu0 %v677
        %797 = vmatpush.msra.mxu0 %v667
        %798 = vmatpush.msra.mxu0 %v657
        %799 = vmatpush.msra.mxu0 %v647
        %800 = vmatpush.msra.mxu0 %v637
        %801 = vmatpush.msra.mxu0 %v627
        %802 = vmatpush.msra.mxu0 %v617
        %803 = vmatpush.msra.mxu0 %v607
        %804 = vmatpush.msra.mxu0 %v597
        %805 = vmatpush.msra.mxu0 %v587
        %806 = vmatpush.msra.mxu0 %v577
        %807 = vmatpush.msra.mxu0 %v567
        %808 = vmatpush.msra.mxu0 %v557
        %809 = vmatpush.msra.mxu0 %v547
        %810 = vmatpush.msra.mxu0 %v537
        %811 = vmatmul.f32.gmra.mxu0 %v374
        %v812 = vpop.f32.mrf.mxu0
        %v813 = vadd.f32 %v793, %v812
        %814 = vdwg.mxu0
        %815 = vmatpush.msra.mxu0 %v528
        %816 = vmatpush.msra.mxu0 %v518
        %817 = vmatpush.msra.mxu0 %v508
        %818 = vmatpush.msra.mxu0 %v498
        %819 = vmatpush.msra.mxu0 %v488
        %820 = vmatpush.msra.mxu0 %v478
        %821 = vmatpush.msra.mxu0 %v468
        %822 = vmatpush.msra.mxu0 %v458
        %823 = vmatpush.msra.mxu0 %v448
        %824 = vmatpush.msra.mxu0 %v438
        %825 = vmatpush.msra.mxu0 %v428
        %826 = vmatpush.msra.mxu0 %v418
        %827 = vmatpush.msra.mxu0 %v408
        %828 = vmatpush.msra.mxu0 %v398
        %829 = vmatpush.msra.mxu0 %v388
        %830 = vmatpush.msra.mxu0 %v378
        %831 = vmatmul.f32.gmra.mxu0 %v373
        %v832 = vpop.f32.mrf.mxu0
        %v833 = vadd.f32 0.0, %v832
        %834 = vdwg.mxu0
        %835 = vmatpush.msra.mxu0 %v688
        %836 = vmatpush.msra.mxu0 %v678
        %837 = vmatpush.msra.mxu0 %v668
        %838 = vmatpush.msra.mxu0 %v658
        %839 = vmatpush.msra.mxu0 %v648
        %840 = vmatpush.msra.mxu0 %v638
        %841 = vmatpush.msra.mxu0 %v628
        %842 = vmatpush.msra.mxu0 %v618
        %843 = vmatpush.msra.mxu0 %v608
        %844 = vmatpush.msra.mxu0 %v598
        %845 = vmatpush.msra.mxu0 %v588
        %846 = vmatpush.msra.mxu0 %v578
        %847 = vmatpush.msra.mxu0 %v568
        %848 = vmatpush.msra.mxu0 %v558
        %849 = vmatpush.msra.mxu0 %v548
        %850 = vmatpush.msra.mxu0 %v538
        %851 = vmatmul.f32.gmra.mxu0 %v374
        %v852 = vpop.f32.mrf.mxu0
        %v853 = vadd.f32 %v833, %v852
        %854 = vdwg.mxu0
        %855 = vmatpush.msra.mxu0 %v529
        %856 = vmatpush.msra.mxu0 %v519
        %857 = vmatpush.msra.mxu0 %v509
        %858 = vmatpush.msra.mxu0 %v499
        %859 = vmatpush.msra.mxu0 %v489
        %860 = vmatpush.msra.mxu0 %v479
        %861 = vmatpush.msra.mxu0 %v469
        %862 = vmatpush.msra.mxu0 %v459
        %863 = vmatpush.msra.mxu0 %v449
        %864 = vmatpush.msra.mxu0 %v439
        %865 = vmatpush.msra.mxu0 %v429
        %866 = vmatpush.msra.mxu0 %v419
        %867 = vmatpush.msra.mxu0 %v409
        %868 = vmatpush.msra.mxu0 %v399
        %869 = vmatpush.msra.mxu0 %v389
        %870 = vmatpush.msra.mxu0 %v379
        %871 = vmatmul.f32.gmra.mxu0 %v373
        %v872 = vpop.f32.mrf.mxu0
        %v873 = vadd.f32 0.0, %v872
        %874 = vdwg.mxu0
        %875 = vmatpush.msra.mxu0 %v689
        %876 = vmatpush.msra.mxu0 %v679
        %877 = vmatpush.msra.mxu0 %v669
        %878 = vmatpush.msra.mxu0 %v659
        %879 = vmatpush.msra.mxu0 %v649
        %880 = vmatpush.msra.mxu0 %v639
        %881 = vmatpush.msra.mxu0 %v629
        %882 = vmatpush.msra.mxu0 %v619
        %883 = vmatpush.msra.mxu0 %v609
        %884 = vmatpush.msra.mxu0 %v599
        %885 = vmatpush.msra.mxu0 %v589
        %886 = vmatpush.msra.mxu0 %v579
        %887 = vmatpush.msra.mxu0 %v569
        %888 = vmatpush.msra.mxu0 %v559
        %889 = vmatpush.msra.mxu0 %v549
        %890 = vmatpush.msra.mxu0 %v539
        %891 = vmatmul.f32.gmra.mxu0 %v374
        %v892 = vpop.f32.mrf.mxu0
        %v893 = vadd.f32 %v873, %v892
        %894 = vdwg.mxu0
        %895 = vmatpush.msra.mxu0 %v530
        %896 = vmatpush.msra.mxu0 %v520
        %897 = vmatpush.msra.mxu0 %v510
        %898 = vmatpush.msra.mxu0 %v500
        %899 = vmatpush.msra.mxu0 %v490
        %900 = vmatpush.msra.mxu0 %v480
        %901 = vmatpush.msra.mxu0 %v470
        %902 = vmatpush.msra.mxu0 %v460
        %903 = vmatpush.msra.mxu0 %v450
        %904 = vmatpush.msra.mxu0 %v440
        %905 = vmatpush.msra.mxu0 %v430
        %906 = vmatpush.msra.mxu0 %v420
        %907 = vmatpush.msra.mxu0 %v410
        %908 = vmatpush.msra.mxu0 %v400
        %909 = vmatpush.msra.mxu0 %v390
        %910 = vmatpush.msra.mxu0 %v380
        %911 = vmatmul.f32.gmra.mxu0 %v373
        %v912 = vpop.f32.mrf.mxu0
        %v913 = vadd.f32 0.0, %v912
        %914 = vdwg.mxu0
        %915 = vmatpush.msra.mxu0 %v690
        %916 = vmatpush.msra.mxu0 %v680
        %917 = vmatpush.msra.mxu0 %v670
        %918 = vmatpush.msra.mxu0 %v660
        %919 = vmatpush.msra.mxu0 %v650
        %920 = vmatpush.msra.mxu0 %v640
        %921 = vmatpush.msra.mxu0 %v630
        %922 = vmatpush.msra.mxu0 %v620
        %923 = vmatpush.msra.mxu0 %v610
        %924 = vmatpush.msra.mxu0 %v600
        %925 = vmatpush.msra.mxu0 %v590
        %926 = vmatpush.msra.mxu0 %v580
        %927 = vmatpush.msra.mxu0 %v570
        %928 = vmatpush.msra.mxu0 %v560
        %929 = vmatpush.msra.mxu0 %v550
        %930 = vmatpush.msra.mxu0 %v540
        %931 = vmatmul.f32.gmra.mxu0 %v374
        %v932 = vpop.f32.mrf.mxu0
        %v933 = vadd.f32 %v913, %v932
        %934 = vdwg.mxu0
        %935 = vmatpush.msra.mxu0 %v531
        %936 = vmatpush.msra.mxu0 %v521
        %937 = vmatpush.msra.mxu0 %v511
        %938 = vmatpush.msra.mxu0 %v501
        %939 = vmatpush.msra.mxu0 %v491
        %940 = vmatpush.msra.mxu0 %v481
        %941 = vmatpush.msra.mxu0 %v471
        %942 = vmatpush.msra.mxu0 %v461
        %943 = vmatpush.msra.mxu0 %v451
        %944 = vmatpush.msra.mxu0 %v441
        %945 = vmatpush.msra.mxu0 %v431
        %946 = vmatpush.msra.mxu0 %v421
        %947 = vmatpush.msra.mxu0 %v411
        %948 = vmatpush.msra.mxu0 %v401
        %949 = vmatpush.msra.mxu0 %v391
        %950 = vmatpush.msra.mxu0 %v381
        %951 = vmatmul.f32.gmra.mxu0 %v373
        %v952 = vpop.f32.mrf.mxu0
        %v953 = vadd.f32 0.0, %v952
        %954 = vdwg.mxu0
        %955 = vmatpush.msra.mxu0 %v691
        %956 = vmatpush.msra.mxu0 %v681
        %957 = vmatpush.msra.mxu0 %v671
        %958 = vmatpush.msra.mxu0 %v661
        %959 = vmatpush.msra.mxu0 %v651
        %960 = vmatpush.msra.mxu0 %v641
        %961 = vmatpush.msra.mxu0 %v631
        %962 = vmatpush.msra.mxu0 %v621
        %963 = vmatpush.msra.mxu0 %v611
        %964 = vmatpush.msra.mxu0 %v601
        %965 = vmatpush.msra.mxu0 %v591
        %966 = vmatpush.msra.mxu0 %v581
        %967 = vmatpush.msra.mxu0 %v571
        %968 = vmatpush.msra.mxu0 %v561
        %969 = vmatpush.msra.mxu0 %v551
        %970 = vmatpush.msra.mxu0 %v541
        %971 = vmatmul.f32.gmra.mxu0 %v374
        %v972 = vpop.f32.mrf.mxu0
        %v973 = vadd.f32 %v953, %v972
        %974 = vdwg.mxu0
        %975 = vmatpush.msra.mxu0 %v532
        %976 = vmatpush.msra.mxu0 %v522
        %977 = vmatpush.msra.mxu0 %v512
        %978 = vmatpush.msra.mxu0 %v502
        %979 = vmatpush.msra.mxu0 %v492
        %980 = vmatpush.msra.mxu0 %v482
        %981 = vmatpush.msra.mxu0 %v472
        %982 = vmatpush.msra.mxu0 %v462
        %983 = vmatpush.msra.mxu0 %v452
        %984 = vmatpush.msra.mxu0 %v442
        %985 = vmatpush.msra.mxu0 %v432
        %986 = vmatpush.msra.mxu0 %v422
        %987 = vmatpush.msra.mxu0 %v412
        %988 = vmatpush.msra.mxu0 %v402
        %989 = vmatpush.msra.mxu0 %v392
        %990 = vmatpush.msra.mxu0 %v382
        %991 = vmatmul.f32.gmra.mxu0 %v373
        %v992 = vpop.f32.mrf.mxu0
        %v993 = vadd.f32 0.0, %v992
        %994 = vdwg.mxu0
        %995 = vmatpush.msra.mxu0 %v692
        %996 = vmatpush.msra.mxu0 %v682
        %997 = vmatpush.msra.mxu0 %v672
        %998 = vmatpush.msra.mxu0 %v662
        %999 = vmatpush.msra.mxu0 %v652
        %1000 = vmatpush.msra.mxu0 %v642
        %1001 = vmatpush.msra.mxu0 %v632
        %1002 = vmatpush.msra.mxu0 %v622
        %1003 = vmatpush.msra.mxu0 %v612
        %1004 = vmatpush.msra.mxu0 %v602
        %1005 = vmatpush.msra.mxu0 %v592
        %1006 = vmatpush.msra.mxu0 %v582
        %1007 = vmatpush.msra.mxu0 %v572
        %1008 = vmatpush.msra.mxu0 %v562
        %1009 = vmatpush.msra.mxu0 %v552
        %1010 = vmatpush.msra.mxu0 %v542
        %1011 = vmatmul.f32.gmra.mxu0 %v374
        %v1012 = vpop.f32.mrf.mxu0
        %v1013 = vadd.f32 %v993, %v1012
        %1014 = vdwg.mxu0
        %1015 = vmatpush.msra.mxu0 %v533
        %1016 = vmatpush.msra.mxu0 %v523
        %1017 = vmatpush.msra.mxu0 %v513
        %1018 = vmatpush.msra.mxu0 %v503
        %1019 = vmatpush.msra.mxu0 %v493
        %1020 = vmatpush.msra.mxu0 %v483
        %1021 = vmatpush.msra.mxu0 %v473
        %1022 = vmatpush.msra.mxu0 %v463
        %1023 = vmatpush.msra.mxu0 %v453
        %1024 = vmatpush.msra.mxu0 %v443
        %1025 = vmatpush.msra.mxu0 %v433
        %1026 = vmatpush.msra.mxu0 %v423
        %1027 = vmatpush.msra.mxu0 %v413
        %1028 = vmatpush.msra.mxu0 %v403
        %1029 = vmatpush.msra.mxu0 %v393
        %1030 = vmatpush.msra.mxu0 %v383
        %1031 = vmatmul.f32.gmra.mxu0 %v373
        %v1032 = vpop.f32.mrf.mxu0
        %v1033 = vadd.f32 0.0, %v1032
        %1034 = vdwg.mxu0
        %1035 = vmatpush.msra.mxu0 %v693
        %1036 = vmatpush.msra.mxu0 %v683
        %1037 = vmatpush.msra.mxu0 %v673
        %1038 = vmatpush.msra.mxu0 %v663
        %1039 = vmatpush.msra.mxu0 %v653
        %1040 = vmatpush.msra.mxu0 %v643
        %1041 = vmatpush.msra.mxu0 %v633
        %1042 = vmatpush.msra.mxu0 %v623
        %1043 = vmatpush.msra.mxu0 %v613
        %1044 = vmatpush.msra.mxu0 %v603
        %1045 = vmatpush.msra.mxu0 %v593
        %1046 = vmatpush.msra.mxu0 %v583
        %1047 = vmatpush.msra.mxu0 %v573
        %1048 = vmatpush.msra.mxu0 %v563
        %1049 = vmatpush.msra.mxu0 %v553
        %1050 = vmatpush.msra.mxu0 %v543
        %1051 = vmatmul.f32.gmra.mxu0 %v374
        %v1052 = vpop.f32.mrf.mxu0
        %v1053 = vadd.f32 %v1033, %v1052
        %1054 = vdwg.mxu0
        %1055 = vmatpush.msra.mxu0 %v534
        %1056 = vmatpush.msra.mxu0 %v524
        %1057 = vmatpush.msra.mxu0 %v514
        %1058 = vmatpush.msra.mxu0 %v504
        %1059 = vmatpush.msra.mxu0 %v494
        %1060 = vmatpush.msra.mxu0 %v484
        %1061 = vmatpush.msra.mxu0 %v474
        %1062 = vmatpush.msra.mxu0 %v464
        %1063 = vmatpush.msra.mxu0 %v454
        %1064 = vmatpush.msra.mxu0 %v444
        %1065 = vmatpush.msra.mxu0 %v434
        %1066 = vmatpush.msra.mxu0 %v424
        %1067 = vmatpush.msra.mxu0 %v414
        %1068 = vmatpush.msra.mxu0 %v404
        %1069 = vmatpush.msra.mxu0 %v394
        %1070 = vmatpush.msra.mxu0 %v384
        %1071 = vmatmul.f32.gmra.mxu0 %v373
        %v1072 = vpop.f32.mrf.mxu0
        %v1073 = vadd.f32 0.0, %v1072
        %1074 = vdwg.mxu0
        %1075 = vmatpush.msra.mxu0 %v694
        %1076 = vmatpush.msra.mxu0 %v684
        %1077 = vmatpush.msra.mxu0 %v674
        %1078 = vmatpush.msra.mxu0 %v664
        %1079 = vmatpush.msra.mxu0 %v654
        %1080 = vmatpush.msra.mxu0 %v644
        %1081 = vmatpush.msra.mxu0 %v634
        %1082 = vmatpush.msra.mxu0 %v624
        %1083 = vmatpush.msra.mxu0 %v614
        %1084 = vmatpush.msra.mxu0 %v604
        %1085 = vmatpush.msra.mxu0 %v594
        %1086 = vmatpush.msra.mxu0 %v584
        %1087 = vmatpush.msra.mxu0 %v574
        %1088 = vmatpush.msra.mxu0 %v564
        %1089 = vmatpush.msra.mxu0 %v554
        %1090 = vmatpush.msra.mxu0 %v544
        %1091 = vmatmul.f32.gmra.mxu0 %v374
        %v1092 = vpop.f32.mrf.mxu0
        %v1093 = vadd.f32 %v1073, %v1092
        %1094 = vdwg.mxu0
        %1095 = vst [vmem:[#allocation2] sm:$0xff] %v733
        %1096 = vst [vmem:[#allocation2 + $0x8] sm:$0xff] %v773
        %1097 = vst [vmem:[#allocation2 + $0x10] sm:$0xff] %v813
        %1098 = vst [vmem:[#allocation2 + $0x18] sm:$0xff] %v853
        %1099 = vst [vmem:[#allocation2 + $0x20] sm:$0xff] %v893
        %1100 = vst [vmem:[#allocation2 + $0x28] sm:$0xff] %v933
        %1101 = vst [vmem:[#allocation2 + $0x30] sm:$0xff] %v973
        %1102 = vst [vmem:[#allocation2 + $0x38] sm:$0xff] %v1013
        %1103 = vst [vmem:[#allocation2 + $0x40] sm:$0xff] %v1053
        %vm1104 = vcmask 883712
        %1105 = vst.msk [vmem:[#allocation2 + $0x48] sm:$0xff] %vm1104, %v1093
        %v1106 = vld [vmem:[#allocation2] sm:$0xff]
        %v1107 = vld [vmem:[#allocation2 + $0x8] sm:$0xff]
        %v1108 = vld [vmem:[#allocation2 + $0x10] sm:$0xff]
        %v1109 = vld [vmem:[#allocation2 + $0x18] sm:$0xff]
        %v1110 = vld [vmem:[#allocation2 + $0x20] sm:$0xff]
        %v1111 = vld [vmem:[#allocation2 + $0x28] sm:$0xff]
        %v1112 = vld [vmem:[#allocation2 + $0x30] sm:$0xff]
        %v1113 = vld [vmem:[#allocation2 + $0x38] sm:$0xff]
        %v1114 = vld [vmem:[#allocation2 + $0x40] sm:$0xff]
        %v1115 = vpack.c.bf16 %v1107, %v1106
        %v1116 = vpack.c.bf16 %v1109, %v1108
        %v1117 = vpack.c.bf16 %v1111, %v1110
        %v1118 = vpack.c.bf16 %v1113, %v1112
        %v1119 = vpack.c.bf16 %v1114, %v1114
        %1120 = vst [vmem:[#allocation3] sm:$0xff] %v1115
        %1121 = vst [vmem:[#allocation3 + $0x8] sm:$0xff] %v1116
        %1122 = vst [vmem:[#allocation3 + $0x10] sm:$0xff] %v1117
        %1123 = vst [vmem:[#allocation3 + $0x18] sm:$0xff] %v1118
        %1124 = vst [vmem:[#allocation3 + $0x20] sm:$0xf] %v1119
        %v1125 = vld [vmem:[#allocation2] sm:$0xff]
        %v1126 = vld [vmem:[#allocation2 + $0x8] sm:$0xff]
        %v1127 = vld [vmem:[#allocation2 + $0x10] sm:$0xff]
        %v1128 = vld [vmem:[#allocation2 + $0x18] sm:$0xff]
        %v1129 = vld [vmem:[#allocation2 + $0x20] sm:$0xff]
        %v1130 = vld [vmem:[#allocation2 + $0x28] sm:$0xff]
        %v1131 = vld [vmem:[#allocation2 + $0x30] sm:$0xff]
        %v1132 = vld [vmem:[#allocation2 + $0x38] sm:$0xff]
        %v1133 = vld [vmem:[#allocation2 + $0x40] sm:$0xff]
        %v1134 = vld [vmem:[#allocation2 + $0x48] sm:$0xff]
        %v1135 = vpack.c.bf16 %v1126, %v1125
        %v1136 = vpack.c.bf16 %v1128, %v1127
        %v1137 = vpack.c.bf16 %v1130, %v1129
        %v1138 = vpack.c.bf16 %v1132, %v1131
        %v1139 = vpack.c.bf16 %v1134, %v1133
        %1145 = vrot.lane.b32.xlu0 %v1135, 127
        %v1146 = vpop.permute.xlu0 %1145
        %1147 = vrot.lane.b32.xlu0 %v1136, 127
        %v1148 = vpop.permute.xlu0 %1147
        %1149 = vrot.lane.b32.xlu0 %v1137, 127
        %v1150 = vpop.permute.xlu0 %1149
        %1151 = vrot.lane.b32.xlu0 %v1138, 127
        %v1152 = vpop.permute.xlu0 %1151
        %1153 = vrot.lane.b32.xlu0 %v1139, 127
        %v1154 = vpop.permute.xlu0 %1153
        %v1155 = vrot.slane %v1146, 4
        %v1156 = vrot.slane %v1148, 4
        %v1157 = vrot.slane %v1150, 4
        %v1158 = vrot.slane %v1152, 4
        %v1159 = vrot.slane %v1154, 4
        %vm1160 = vcmask 1043456
        %v1161 = vsel %vm1160, %v1155, %v1156
        %vm1162 = vcmask 1039360
        %v1163 = vsel %vm1162, %v1146, %v1161
        %v1164 = vsel %vm1160, %v1156, %v1157
        %v1165 = vsel %vm1162, %v1148, %v1164
        %v1166 = vsel %vm1160, %v1157, %v1158
        %v1167 = vsel %vm1162, %v1150, %v1166
        %v1168 = vsel %vm1160, %v1158, %v1159
        %v1169 = vsel %vm1162, %v1152, %v1168
        %v1170 = vsel %vm1162, %v1154, %v1159
        %1176 = vst [vmem:[#allocation3 + $0x24] sm:$0xff] %v1163
        %1177 = vst [vmem:[#allocation3 + $0x2c] sm:$0xff] %v1165
        %1178 = vst [vmem:[#allocation3 + $0x34] sm:$0xff] %v1167
        %1179 = vst [vmem:[#allocation3 + $0x3c] sm:$0xff] %v1169
        %1180 = vst [vmem:[#allocation3 + $0x44] sm:$0xf] %v1170
        %v1181 = vld [vmem:[#allocation2] sm:$0xff]
        %v1182 = vld [vmem:[#allocation2 + $0x8] sm:$0xff]
        %v1183 = vld [vmem:[#allocation2 + $0x10] sm:$0xff]
        %v1184 = vld [vmem:[#allocation2 + $0x18] sm:$0xff]
        %v1185 = vld [vmem:[#allocation2 + $0x20] sm:$0xff]
        %v1186 = vld [vmem:[#allocation2 + $0x28] sm:$0xff]
        %v1187 = vld [vmem:[#allocation2 + $0x30] sm:$0xff]
        %v1188 = vld [vmem:[#allocation2 + $0x38] sm:$0xff]
        %v1189 = vld [vmem:[#allocation2 + $0x40] sm:$0xff]
        %v1190 = vld [vmem:[#allocation2 + $0x48] sm:$0xff]
        %v1191 = vpack.c.bf16 %v1182, %v1181
        %v1192 = vpack.c.bf16 %v1184, %v1183
        %v1193 = vpack.c.bf16 %v1186, %v1185
        %v1194 = vpack.c.bf16 %v1188, %v1187
        %v1195 = vpack.c.bf16 %v1190, %v1189
        %1201 = vrot.lane.b32.xlu0 %v1191, 126
        %v1202 = vpop.permute.xlu0 %1201
        %1203 = vrot.lane.b32.xlu0 %v1192, 126
        %v1204 = vpop.permute.xlu0 %1203
        %1205 = vrot.lane.b32.xlu0 %v1193, 126
        %v1206 = vpop.permute.xlu0 %1205
        %1207 = vrot.lane.b32.xlu0 %v1194, 126
        %v1208 = vpop.permute.xlu0 %1207
        %1209 = vrot.lane.b32.xlu0 %v1195, 126
        %v1210 = vpop.permute.xlu0 %1209
        %v1211 = vrot.slane %v1202, 4
        %v1212 = vrot.slane %v1204, 4
        %v1213 = vrot.slane %v1206, 4
        %v1214 = vrot.slane %v1208, 4
        %v1215 = vrot.slane %v1210, 4
        %v1216 = vsel %vm1160, %v1211, %v1212
        %vm1217 = vcmask 1031168
        %v1218 = vsel %vm1217, %v1202, %v1216
        %v1219 = vsel %vm1160, %v1212, %v1213
        %v1220 = vsel %vm1217, %v1204, %v1219
        %v1221 = vsel %vm1160, %v1213, %v1214
        %v1222 = vsel %vm1217, %v1206, %v1221
        %v1223 = vsel %vm1160, %v1214, %v1215
        %v1224 = vsel %vm1217, %v1208, %v1223
        %v1225 = vsel %vm1217, %v1210, %v1215
        %1231 = vst [vmem:[#allocation3 + $0x48] sm:$0xff] %v1218
        %1232 = vst [vmem:[#allocation3 + $0x50] sm:$0xff] %v1220
        %1233 = vst [vmem:[#allocation3 + $0x58] sm:$0xff] %v1222
        %1234 = vst [vmem:[#allocation3 + $0x60] sm:$0xff] %v1224
        %1235 = vst [vmem:[#allocation3 + $0x68] sm:$0xf] %v1225
        %v1236 = vld [vmem:[#allocation2] sm:$0xff]
        %v1237 = vld [vmem:[#allocation2 + $0x8] sm:$0xff]
        %v1238 = vld [vmem:[#allocation2 + $0x10] sm:$0xff]
        %v1239 = vld [vmem:[#allocation2 + $0x18] sm:$0xff]
        %v1240 = vld [vmem:[#allocation2 + $0x20] sm:$0xff]
        %v1241 = vld [vmem:[#allocation2 + $0x28] sm:$0xff]
        %v1242 = vld [vmem:[#allocation2 + $0x30] sm:$0xff]
        %v1243 = vld [vmem:[#allocation2 + $0x38] sm:$0xff]
        %v1244 = vld [vmem:[#allocation2 + $0x40] sm:$0xff]
        %v1245 = vld [vmem:[#allocation2 + $0x48] sm:$0xff]
        %v1246 = vpack.c.bf16 %v1237, %v1236
        %v1247 = vpack.c.bf16 %v1239, %v1238
        %v1248 = vpack.c.bf16 %v1241, %v1240
        %v1249 = vpack.c.bf16 %v1243, %v1242
        %v1250 = vpack.c.bf16 %v1245, %v1244
        %1256 = vrot.lane.b32.xlu0 %v1246, 92
        %v1257 = vpop.permute.xlu0 %1256
        %1258 = vrot.lane.b32.xlu0 %v1247, 92
        %v1259 = vpop.permute.xlu0 %1258
        %1260 = vrot.lane.b32.xlu0 %v1248, 92
        %v1261 = vpop.permute.xlu0 %1260
        %1262 = vrot.lane.b32.xlu0 %v1249, 92
        %v1263 = vpop.permute.xlu0 %1262
        %1264 = vrot.lane.b32.xlu0 %v1250, 92
        %v1265 = vpop.permute.xlu0 %1264
        %v1266 = vrot.slane %v1257, 4
        %v1267 = vrot.slane %v1259, 4
        %v1268 = vrot.slane %v1261, 4
        %v1269 = vrot.slane %v1263, 4
        %v1270 = vrot.slane %v1265, 4
        %v1271 = vsel %vm1160, %v1266, %v1267
        %vm1272 = vcmask 752640
        %v1273 = vsel %vm1272, %v1257, %v1271
        %v1274 = vsel %vm1160, %v1267, %v1268
        %v1275 = vsel %vm1272, %v1259, %v1274
        %v1276 = vsel %vm1160, %v1268, %v1269
        %v1277 = vsel %vm1272, %v1261, %v1276
        %v1278 = vsel %vm1160, %v1269, %v1270
        %v1279 = vsel %vm1272, %v1263, %v1278
        %v1280 = vsel %vm1272, %v1265, %v1270
        %1286 = vst [vmem:[#allocation3 + $0x6c] sm:$0xff] %v1273
        %1287 = vst [vmem:[#allocation3 + $0x74] sm:$0xff] %v1275
        %1288 = vst [vmem:[#allocation3 + $0x7c] sm:$0xff] %v1277
        %1289 = vst [vmem:[#allocation3 + $0x84] sm:$0xff] %v1279
        %1290 = vst [vmem:[#allocation3 + $0x8c] sm:$0xf] %v1280
        %v1291 = vld [vmem:[#allocation2] sm:$0xff]
        %v1292 = vld [vmem:[#allocation2 + $0x8] sm:$0xff]
        %v1293 = vld [vmem:[#allocation2 + $0x10] sm:$0xff]
        %v1294 = vld [vmem:[#allocation2 + $0x18] sm:$0xff]
        %v1295 = vld [vmem:[#allocation2 + $0x20] sm:$0xff]
        %v1296 = vld [vmem:[#allocation2 + $0x28] sm:$0xff]
        %v1297 = vld [vmem:[#allocation2 + $0x30] sm:$0xff]
        %v1298 = vld [vmem:[#allocation2 + $0x38] sm:$0xff]
        %v1299 = vld [vmem:[#allocation2 + $0x40] sm:$0xff]
        %v1300 = vld [vmem:[#allocation2 + $0x48] sm:$0xff]
        %v1301 = vpack.c.bf16 %v1292, %v1291
        %v1302 = vpack.c.bf16 %v1294, %v1293
        %v1303 = vpack.c.bf16 %v1296, %v1295
        %v1304 = vpack.c.bf16 %v1298, %v1297
        %v1305 = vpack.c.bf16 %v1300, %v1299
        %1311 = vrot.lane.b32.xlu0 %v1301, 91
        %v1312 = vpop.permute.xlu0 %1311
        %1313 = vrot.lane.b32.xlu0 %v1302, 91
        %v1314 = vpop.permute.xlu0 %1313
        %1315 = vrot.lane.b32.xlu0 %v1303, 91
        %v1316 = vpop.permute.xlu0 %1315
        %1317 = vrot.lane.b32.xlu0 %v1304, 91
        %v1318 = vpop.permute.xlu0 %1317
        %1319 = vrot.lane.b32.xlu0 %v1305, 91
        %v1320 = vpop.permute.xlu0 %1319
        %v1321 = vrot.slane %v1312, 4
        %v1322 = vrot.slane %v1314, 4
        %v1323 = vrot.slane %v1316, 4
        %v1324 = vrot.slane %v1318, 4
        %v1325 = vrot.slane %v1320, 4
        %v1326 = vsel %vm1160, %v1321, %v1322
        %vm1327 = vcmask 744448
        %v1328 = vsel %vm1327, %v1312, %v1326
        %v1329 = vsel %vm1160, %v1322, %v1323
        %v1330 = vsel %vm1327, %v1314, %v1329
        %v1331 = vsel %vm1160, %v1323, %v1324
        %v1332 = vsel %vm1327, %v1316, %v1331
        %v1333 = vsel %vm1160, %v1324, %v1325
        %v1334 = vsel %vm1327, %v1318, %v1333
        %v1335 = vsel %vm1327, %v1320, %v1325
        %1341 = vst [vmem:[#allocation3 + $0x90] sm:$0xff] %v1328
        %1342 = vst [vmem:[#allocation3 + $0x98] sm:$0xff] %v1330
        %1343 = vst [vmem:[#allocation3 + $0xa0] sm:$0xff] %v1332
        %1344 = vst [vmem:[#allocation3 + $0xa8] sm:$0xff] %v1334
        %1345 = vst [vmem:[#allocation3 + $0xb0] sm:$0xf] %v1335
        %v1346 = vld [vmem:[#allocation2] sm:$0xff]
        %v1347 = vld [vmem:[#allocation2 + $0x8] sm:$0xff]
        %v1348 = vld [vmem:[#allocation2 + $0x10] sm:$0xff]
        %v1349 = vld [vmem:[#allocation2 + $0x18] sm:$0xff]
        %v1350 = vld [vmem:[#allocation2 + $0x20] sm:$0xff]
        %v1351 = vld [vmem:[#allocation2 + $0x28] sm:$0xff]
        %v1352 = vld [vmem:[#allocation2 + $0x30] sm:$0xff]
        %v1353 = vld [vmem:[#allocation2 + $0x38] sm:$0xff]
        %v1354 = vld [vmem:[#allocation2 + $0x40] sm:$0xff]
        %v1355 = vld [vmem:[#allocation2 + $0x48] sm:$0xff]
        %v1356 = vpack.c.bf16 %v1347, %v1346
        %v1357 = vpack.c.bf16 %v1349, %v1348
        %v1358 = vpack.c.bf16 %v1351, %v1350
        %v1359 = vpack.c.bf16 %v1353, %v1352
        %v1360 = vpack.c.bf16 %v1355, %v1354
        %1366 = vrot.lane.b32.xlu0 %v1356, 90
        %v1367 = vpop.permute.xlu0 %1366
        %1368 = vrot.lane.b32.xlu0 %v1357, 90
        %v1369 = vpop.permute.xlu0 %1368
        %1370 = vrot.lane.b32.xlu0 %v1358, 90
        %v1371 = vpop.permute.xlu0 %1370
        %1372 = vrot.lane.b32.xlu0 %v1359, 90
        %v1373 = vpop.permute.xlu0 %1372
        %1374 = vrot.lane.b32.xlu0 %v1360, 90
        %v1375 = vpop.permute.xlu0 %1374
        %v1376 = vrot.slane %v1367, 4
        %v1377 = vrot.slane %v1369, 4
        %v1378 = vrot.slane %v1371, 4
        %v1379 = vrot.slane %v1373, 4
        %v1380 = vrot.slane %v1375, 4
        %v1381 = vsel %vm1160, %v1376, %v1377
        %vm1382 = vcmask 736256
        %v1383 = vsel %vm1382, %v1367, %v1381
        %v1384 = vsel %vm1160, %v1377, %v1378
        %v1385 = vsel %vm1382, %v1369, %v1384
        %v1386 = vsel %vm1160, %v1378, %v1379
        %v1387 = vsel %vm1382, %v1371, %v1386
        %v1388 = vsel %vm1160, %v1379, %v1380
        %v1389 = vsel %vm1382, %v1373, %v1388
        %v1390 = vsel %vm1382, %v1375, %v1380
        %1396 = vst [vmem:[#allocation3 + $0xb4] sm:$0xff] %v1383
        %1397 = vst [vmem:[#allocation3 + $0xbc] sm:$0xff] %v1385
        %1398 = vst [vmem:[#allocation3 + $0xc4] sm:$0xff] %v1387
        %1399 = vst [vmem:[#allocation3 + $0xcc] sm:$0xff] %v1389
        %1400 = vst [vmem:[#allocation3 + $0xd4] sm:$0xf] %v1390
        %v1401 = vld [vmem:[#allocation2] sm:$0xff]
        %v1402 = vld [vmem:[#allocation2 + $0x8] sm:$0xff]
        %v1403 = vld [vmem:[#allocation2 + $0x10] sm:$0xff]
        %v1404 = vld [vmem:[#allocation2 + $0x18] sm:$0xff]
        %v1405 = vld [vmem:[#allocation2 + $0x20] sm:$0xff]
        %v1406 = vld [vmem:[#allocation2 + $0x28] sm:$0xff]
        %v1407 = vld [vmem:[#allocation2 + $0x30] sm:$0xff]
        %v1408 = vld [vmem:[#allocation2 + $0x38] sm:$0xff]
        %v1409 = vld [vmem:[#allocation2 + $0x40] sm:$0xff]
        %v1410 = vld [vmem:[#allocation2 + $0x48] sm:$0xff]
        %v1411 = vpack.c.bf16 %v1402, %v1401
        %v1412 = vpack.c.bf16 %v1404, %v1403
        %v1413 = vpack.c.bf16 %v1406, %v1405
        %v1414 = vpack.c.bf16 %v1408, %v1407
        %v1415 = vpack.c.bf16 %v1410, %v1409
        %1421 = vrot.lane.b32.xlu0 %v1411, 56
        %v1422 = vpop.permute.xlu0 %1421
        %1423 = vrot.lane.b32.xlu0 %v1412, 56
        %v1424 = vpop.permute.xlu0 %1423
        %1425 = vrot.lane.b32.xlu0 %v1413, 56
        %v1426 = vpop.permute.xlu0 %1425
        %1427 = vrot.lane.b32.xlu0 %v1414, 56
        %v1428 = vpop.permute.xlu0 %1427
        %1429 = vrot.lane.b32.xlu0 %v1415, 56
        %v1430 = vpop.permute.xlu0 %1429
        %v1431 = vrot.slane %v1422, 4
        %v1432 = vrot.slane %v1424, 4
        %v1433 = vrot.slane %v1426, 4
        %v1434 = vrot.slane %v1428, 4
        %v1435 = vrot.slane %v1430, 4
        %v1436 = vsel %vm1160, %v1431, %v1432
        %vm1437 = vcmask 457728
        %v1438 = vsel %vm1437, %v1422, %v1436
        %v1439 = vsel %vm1160, %v1432, %v1433
        %v1440 = vsel %vm1437, %v1424, %v1439
        %v1441 = vsel %vm1160, %v1433, %v1434
        %v1442 = vsel %vm1437, %v1426, %v1441
        %v1443 = vsel %vm1160, %v1434, %v1435
        %v1444 = vsel %vm1437, %v1428, %v1443
        %v1445 = vsel %vm1437, %v1430, %v1435
        %1451 = vst [vmem:[#allocation3 + $0xd8] sm:$0xff] %v1438
        %1452 = vst [vmem:[#allocation3 + $0xe0] sm:$0xff] %v1440
        %1453 = vst [vmem:[#allocation3 + $0xe8] sm:$0xff] %v1442
        %1454 = vst [vmem:[#allocation3 + $0xf0] sm:$0xff] %v1444
        %1455 = vst [vmem:[#allocation3 + $0xf8] sm:$0xf] %v1445
        %v1456 = vld [vmem:[#allocation2] sm:$0xff]
        %v1457 = vld [vmem:[#allocation2 + $0x8] sm:$0xff]
        %v1458 = vld [vmem:[#allocation2 + $0x10] sm:$0xff]
        %v1459 = vld [vmem:[#allocation2 + $0x18] sm:$0xff]
        %v1460 = vld [vmem:[#allocation2 + $0x20] sm:$0xff]
        %v1461 = vld [vmem:[#allocation2 + $0x28] sm:$0xff]
        %v1462 = vld [vmem:[#allocation2 + $0x30] sm:$0xff]
        %v1463 = vld [vmem:[#allocation2 + $0x38] sm:$0xff]
        %v1464 = vld [vmem:[#allocation2 + $0x40] sm:$0xff]
        %v1465 = vld [vmem:[#allocation2 + $0x48] sm:$0xff]
        %v1466 = vpack.c.bf16 %v1457, %v1456
        %v1467 = vpack.c.bf16 %v1459, %v1458
        %v1468 = vpack.c.bf16 %v1461, %v1460
        %v1469 = vpack.c.bf16 %v1463, %v1462
        %v1470 = vpack.c.bf16 %v1465, %v1464
        %1476 = vrot.lane.b32.xlu0 %v1466, 55
        %v1477 = vpop.permute.xlu0 %1476
        %1478 = vrot.lane.b32.xlu0 %v1467, 55
        %v1479 = vpop.permute.xlu0 %1478
        %1480 = vrot.lane.b32.xlu0 %v1468, 55
        %v1481 = vpop.permute.xlu0 %1480
        %1482 = vrot.lane.b32.xlu0 %v1469, 55
        %v1483 = vpop.permute.xlu0 %1482
        %1484 = vrot.lane.b32.xlu0 %v1470, 55
        %v1485 = vpop.permute.xlu0 %1484
        %v1486 = vrot.slane %v1477, 4
        %v1487 = vrot.slane %v1479, 4
        %v1488 = vrot.slane %v1481, 4
        %v1489 = vrot.slane %v1483, 4
        %v1490 = vrot.slane %v1485, 4
        %v1491 = vsel %vm1160, %v1486, %v1487
        %vm1492 = vcmask 449536
        %v1493 = vsel %vm1492, %v1477, %v1491
        %v1494 = vsel %vm1160, %v1487, %v1488
        %v1495 = vsel %vm1492, %v1479, %v1494
        %v1496 = vsel %vm1160, %v1488, %v1489
        %v1497 = vsel %vm1492, %v1481, %v1496
        %v1498 = vsel %vm1160, %v1489, %v1490
        %v1499 = vsel %vm1492, %v1483, %v1498
        %v1500 = vsel %vm1492, %v1485, %v1490
        %1506 = vst [vmem:[#allocation3 + $0xfc] sm:$0xff] %v1493
        %1507 = vst [vmem:[#allocation3 + $0x104] sm:$0xff] %v1495
        %1508 = vst [vmem:[#allocation3 + $0x10c] sm:$0xff] %v1497
        %1509 = vst [vmem:[#allocation3 + $0x114] sm:$0xff] %v1499
        %1510 = vst [vmem:[#allocation3 + $0x11c] sm:$0xf] %v1500
        %v1511 = vld [vmem:[#allocation2] sm:$0xff]
        %v1512 = vld [vmem:[#allocation2 + $0x8] sm:$0xff]
        %v1513 = vld [vmem:[#allocation2 + $0x10] sm:$0xff]
        %v1514 = vld [vmem:[#allocation2 + $0x18] sm:$0xff]
        %v1515 = vld [vmem:[#allocation2 + $0x20] sm:$0xff]
        %v1516 = vld [vmem:[#allocation2 + $0x28] sm:$0xff]
        %v1517 = vld [vmem:[#allocation2 + $0x30] sm:$0xff]
        %v1518 = vld [vmem:[#allocation2 + $0x38] sm:$0xff]
        %v1519 = vld [vmem:[#allocation2 + $0x40] sm:$0xff]
        %v1520 = vld [vmem:[#allocation2 + $0x48] sm:$0xff]
        %v1521 = vpack.c.bf16 %v1512, %v1511
        %v1522 = vpack.c.bf16 %v1514, %v1513
        %v1523 = vpack.c.bf16 %v1516, %v1515
        %v1524 = vpack.c.bf16 %v1518, %v1517
        %v1525 = vpack.c.bf16 %v1520, %v1519
        %1531 = vrot.lane.b32.xlu0 %v1521, 54
        %v1532 = vpop.permute.xlu0 %1531
        %1533 = vrot.lane.b32.xlu0 %v1522, 54
        %v1534 = vpop.permute.xlu0 %1533
        %1535 = vrot.lane.b32.xlu0 %v1523, 54
        %v1536 = vpop.permute.xlu0 %1535
        %1537 = vrot.lane.b32.xlu0 %v1524, 54
        %v1538 = vpop.permute.xlu0 %1537
        %1539 = vrot.lane.b32.xlu0 %v1525, 54
        %v1540 = vpop.permute.xlu0 %1539
        %v1541 = vrot.slane %v1532, 4
        %v1542 = vrot.slane %v1534, 4
        %v1543 = vrot.slane %v1536, 4
        %v1544 = vrot.slane %v1538, 4
        %v1545 = vrot.slane %v1540, 4
        %v1546 = vsel %vm1160, %v1541, %v1542
        %vm1547 = vcmask 441344
        %v1548 = vsel %vm1547, %v1532, %v1546
        %v1549 = vsel %vm1160, %v1542, %v1543
        %v1550 = vsel %vm1547, %v1534, %v1549
        %v1551 = vsel %vm1160, %v1543, %v1544
        %v1552 = vsel %vm1547, %v1536, %v1551
        %v1553 = vsel %vm1160, %v1544, %v1545
        %v1554 = vsel %vm1547, %v1538, %v1553
        %v1555 = vsel %vm1547, %v1540, %v1545
        %1561 = vst [vmem:[#allocation3 + $0x120] sm:$0xff] %v1548
        %1562 = vst [vmem:[#allocation3 + $0x128] sm:$0xff] %v1550
        %1563 = vst [vmem:[#allocation3 + $0x130] sm:$0xff] %v1552
        %1564 = vst [vmem:[#allocation3 + $0x138] sm:$0xff] %v1554
        %1565 = vst [vmem:[#allocation3 + $0x140] sm:$0xf] %v1555
        %v1566 = vld [vmem:[%s362] sm:$0xf]
        %v1567 = vld [vmem:[#allocation3] sm:$0xff]
        %v1568 = vld [vmem:[#allocation3 + $0x8] sm:$0xff]
        %v1569 = vld [vmem:[#allocation3 + $0x10] sm:$0xff]
        %v1570 = vld [vmem:[#allocation3 + $0x18] sm:$0xff]
        %v1571 = vld [vmem:[#allocation3 + $0x20] sm:$0xf]
        %v1572 = vld [vmem:[#allocation3 + $0x24] sm:$0xff]
        %v1573 = vld [vmem:[#allocation3 + $0x2c] sm:$0xff]
        %v1574 = vld [vmem:[#allocation3 + $0x34] sm:$0xff]
        %v1575 = vld [vmem:[#allocation3 + $0x3c] sm:$0xff]
        %v1576 = vld [vmem:[#allocation3 + $0x44] sm:$0xf]
        %v1577 = vld [vmem:[#allocation3 + $0x48] sm:$0xff]
        %v1578 = vld [vmem:[#allocation3 + $0x50] sm:$0xff]
        %v1579 = vld [vmem:[#allocation3 + $0x58] sm:$0xff]
        %v1580 = vld [vmem:[#allocation3 + $0x60] sm:$0xff]
        %v1581 = vld [vmem:[#allocation3 + $0x68] sm:$0xf]
        %v1582 = vld [vmem:[#allocation3 + $0x6c] sm:$0xff]
        %v1583 = vld [vmem:[#allocation3 + $0x74] sm:$0xff]
        %v1584 = vld [vmem:[#allocation3 + $0x7c] sm:$0xff]
        %v1585 = vld [vmem:[#allocation3 + $0x84] sm:$0xff]
        %v1586 = vld [vmem:[#allocation3 + $0x8c] sm:$0xf]
        %v1587 = vld [vmem:[#allocation3 + $0x90] sm:$0xff]
        %v1588 = vld [vmem:[#allocation3 + $0x98] sm:$0xff]
        %v1589 = vld [vmem:[#allocation3 + $0xa0] sm:$0xff]
        %v1590 = vld [vmem:[#allocation3 + $0xa8] sm:$0xff]
        %v1591 = vld [vmem:[#allocation3 + $0xb0] sm:$0xf]
        %v1592 = vld [vmem:[#allocation3 + $0xb4] sm:$0xff]
        %v1593 = vld [vmem:[#allocation3 + $0xbc] sm:$0xff]
        %v1594 = vld [vmem:[#allocation3 + $0xc4] sm:$0xff]
        %v1595 = vld [vmem:[#allocation3 + $0xcc] sm:$0xff]
        %v1596 = vld [vmem:[#allocation3 + $0xd4] sm:$0xf]
        %v1597 = vld [vmem:[#allocation3 + $0xd8] sm:$0xff]
        %v1598 = vld [vmem:[#allocation3 + $0xe0] sm:$0xff]
        %v1599 = vld [vmem:[#allocation3 + $0xe8] sm:$0xff]
        %v1600 = vld [vmem:[#allocation3 + $0xf0] sm:$0xff]
        %v1601 = vld [vmem:[#allocation3 + $0xf8] sm:$0xf]
        %v1602 = vld [vmem:[#allocation3 + $0xfc] sm:$0xff]
        %v1603 = vld [vmem:[#allocation3 + $0x104] sm:$0xff]
        %v1604 = vld [vmem:[#allocation3 + $0x10c] sm:$0xff]
        %v1605 = vld [vmem:[#allocation3 + $0x114] sm:$0xff]
        %v1606 = vld [vmem:[#allocation3 + $0x11c] sm:$0xf]
        %v1607 = vld [vmem:[#allocation3 + $0x120] sm:$0xff]
        %v1608 = vld [vmem:[#allocation3 + $0x128] sm:$0xff]
        %v1609 = vld [vmem:[#allocation3 + $0x130] sm:$0xff]
        %v1610 = vld [vmem:[#allocation3 + $0x138] sm:$0xff]
        %v1611 = vld [vmem:[#allocation3 + $0x140] sm:$0xf]
        %v1657 = vunpack.c.l.b16 %v1567
        %v1658 = vunpack.c.h.b16 %v1567
        %v1659 = vunpack.c.l.b16 %v1568
        %v1660 = vunpack.c.h.b16 %v1568
        %v1661 = vunpack.c.l.b16 %v1569
        %v1662 = vunpack.c.h.b16 %v1569
        %v1663 = vunpack.c.l.b16 %v1570
        %v1664 = vunpack.c.h.b16 %v1570
        %v1665 = vunpack.c.l.b16 %v1571
        %v1666 = vunpack.c.l.b16 %v1572
        %v1667 = vunpack.c.h.b16 %v1572
        %v1668 = vunpack.c.l.b16 %v1573
        %v1669 = vunpack.c.h.b16 %v1573
        %v1670 = vunpack.c.l.b16 %v1574
        %v1671 = vunpack.c.h.b16 %v1574
        %v1672 = vunpack.c.l.b16 %v1575
        %v1673 = vunpack.c.h.b16 %v1575
        %v1674 = vunpack.c.l.b16 %v1576
        %v1675 = vunpack.c.l.b16 %v1577
        %v1676 = vunpack.c.h.b16 %v1577
        %v1677 = vunpack.c.l.b16 %v1578
        %v1678 = vunpack.c.h.b16 %v1578
        %v1679 = vunpack.c.l.b16 %v1579
        %v1680 = vunpack.c.h.b16 %v1579
        %v1681 = vunpack.c.l.b16 %v1580
        %v1682 = vunpack.c.h.b16 %v1580
        %v1683 = vunpack.c.l.b16 %v1581
        %v1684 = vunpack.c.l.b16 %v1582
        %v1685 = vunpack.c.h.b16 %v1582
        %v1686 = vunpack.c.l.b16 %v1583
        %v1687 = vunpack.c.h.b16 %v1583
        %v1688 = vunpack.c.l.b16 %v1584
        %v1689 = vunpack.c.h.b16 %v1584
        %v1690 = vunpack.c.l.b16 %v1585
        %v1691 = vunpack.c.h.b16 %v1585
        %v1692 = vunpack.c.l.b16 %v1586
        %v1693 = vunpack.c.l.b16 %v1587
        %v1694 = vunpack.c.h.b16 %v1587
        %v1695 = vunpack.c.l.b16 %v1588
        %v1696 = vunpack.c.h.b16 %v1588
        %v1697 = vunpack.c.l.b16 %v1589
        %v1698 = vunpack.c.h.b16 %v1589
        %v1699 = vunpack.c.l.b16 %v1590
        %v1700 = vunpack.c.h.b16 %v1590
        %v1701 = vunpack.c.l.b16 %v1591
        %v1702 = vunpack.c.l.b16 %v1592
        %v1703 = vunpack.c.h.b16 %v1592
        %v1704 = vunpack.c.l.b16 %v1593
        %v1705 = vunpack.c.h.b16 %v1593
        %v1706 = vunpack.c.l.b16 %v1594
        %v1707 = vunpack.c.h.b16 %v1594
        %v1708 = vunpack.c.l.b16 %v1595
        %v1709 = vunpack.c.h.b16 %v1595
        %v1710 = vunpack.c.l.b16 %v1596
        %v1711 = vunpack.c.l.b16 %v1597
        %v1712 = vunpack.c.h.b16 %v1597
        %v1713 = vunpack.c.l.b16 %v1598
        %v1714 = vunpack.c.h.b16 %v1598
        %v1715 = vunpack.c.l.b16 %v1599
        %v1716 = vunpack.c.h.b16 %v1599
        %v1717 = vunpack.c.l.b16 %v1600
        %v1718 = vunpack.c.h.b16 %v1600
        %v1719 = vunpack.c.l.b16 %v1601
        %v1720 = vunpack.c.l.b16 %v1602
        %v1721 = vunpack.c.h.b16 %v1602
        %v1722 = vunpack.c.l.b16 %v1603
        %v1723 = vunpack.c.h.b16 %v1603
        %v1724 = vunpack.c.l.b16 %v1604
        %v1725 = vunpack.c.h.b16 %v1604
        %v1726 = vunpack.c.l.b16 %v1605
        %v1727 = vunpack.c.h.b16 %v1605
        %v1728 = vunpack.c.l.b16 %v1606
        %v1729 = vunpack.c.l.b16 %v1607
        %v1730 = vunpack.c.h.b16 %v1607
        %v1731 = vunpack.c.l.b16 %v1608
        %v1732 = vunpack.c.h.b16 %v1608
        %v1733 = vunpack.c.l.b16 %v1609
        %v1734 = vunpack.c.h.b16 %v1609
        %v1735 = vunpack.c.l.b16 %v1610
        %v1736 = vunpack.c.h.b16 %v1610
        %v1737 = vunpack.c.l.b16 %v1611
        %v1738 = vpack.c.b16 %v1666, %v1657
        %v1739 = vpack.c.b16 %v1667, %v1658
        %v1740 = vpack.c.b16 %v1668, %v1659
        %v1741 = vpack.c.b16 %v1669, %v1660
        %v1742 = vpack.c.b16 %v1670, %v1661
        %v1743 = vpack.c.b16 %v1671, %v1662
        %v1744 = vpack.c.b16 %v1672, %v1663
        %v1745 = vpack.c.b16 %v1673, %v1664
        %v1746 = vpack.c.b16 %v1674, %v1665
        %v1747 = vpack.c.b16 %v1684, %v1675
        %v1748 = vpack.c.b16 %v1685, %v1676
        %v1749 = vpack.c.b16 %v1686, %v1677
        %v1750 = vpack.c.b16 %v1687, %v1678
        %v1751 = vpack.c.b16 %v1688, %v1679
        %v1752 = vpack.c.b16 %v1689, %v1680
        %v1753 = vpack.c.b16 %v1690, %v1681
        %v1754 = vpack.c.b16 %v1691, %v1682
        %v1755 = vpack.c.b16 %v1692, %v1683
        %v1756 = vpack.c.b16 %v1702, %v1693
        %v1757 = vpack.c.b16 %v1703, %v1694
        %v1758 = vpack.c.b16 %v1704, %v1695
        %v1759 = vpack.c.b16 %v1705, %v1696
        %v1760 = vpack.c.b16 %v1706, %v1697
        %v1761 = vpack.c.b16 %v1707, %v1698
        %v1762 = vpack.c.b16 %v1708, %v1699
        %v1763 = vpack.c.b16 %v1709, %v1700
        %v1764 = vpack.c.b16 %v1710, %v1701
        %v1765 = vpack.c.b16 %v1720, %v1711
        %v1766 = vpack.c.b16 %v1721, %v1712
        %v1767 = vpack.c.b16 %v1722, %v1713
        %v1768 = vpack.c.b16 %v1723, %v1714
        %v1769 = vpack.c.b16 %v1724, %v1715
        %v1770 = vpack.c.b16 %v1725, %v1716
        %v1771 = vpack.c.b16 %v1726, %v1717
        %v1772 = vpack.c.b16 %v1727, %v1718
        %v1773 = vpack.c.b16 %v1728, %v1719
        %v1774 = vpack.c.b16 %v1729, %v1729
        %v1775 = vpack.c.b16 %v1730, %v1730
        %v1776 = vpack.c.b16 %v1731, %v1731
        %v1777 = vpack.c.b16 %v1732, %v1732
        %v1778 = vpack.c.b16 %v1733, %v1733
        %v1779 = vpack.c.b16 %v1734, %v1734
        %v1780 = vpack.c.b16 %v1735, %v1735
        %v1781 = vpack.c.b16 %v1736, %v1736
        %v1782 = vpack.c.b16 %v1737, %v1737
        %vm1819 = vcmask 588800
        %v1821 = vsel %vm1819, %v1566, 0
        %vm1823 = vcmask 1043456
        %v1825 = vsel %vm1823, %v1774, 0
        %v1828 = vsel %vm1823, %v1775, 0
        %v1831 = vsel %vm1823, %v1776, 0
        %v1834 = vsel %vm1823, %v1777, 0
        %v1837 = vsel %vm1823, %v1778, 0
        %v1840 = vsel %vm1823, %v1779, 0
        %v1843 = vsel %vm1823, %v1780, 0
        %v1846 = vsel %vm1823, %v1781, 0
        %v1849 = vsel %vm1823, %v1782, 0
        %1851 = vmatpush.bf16.msra.mxu0 0
        %1852 = vmatpush.bf16.msra.mxu0 0
        %1853 = vmatpush.bf16.msra.mxu0 0
        %1854 = vmatpush.bf16.msra.mxu0 %v1825
        %1855 = vmatpush.bf16.msra.mxu0 %v1765
        %1856 = vmatpush.bf16.msra.mxu0 %v1756
        %1857 = vmatpush.bf16.msra.mxu0 %v1747
        %1858 = vmatpush.bf16.msra.mxu0 %v1738
        %1859 = vmatmul.bf16.gmra.mxu0 %v1821
        %v1860 = vpop.f32.mrf.mxu0
        %v1861 = vadd.f32 0.0, %v1860
        %v1862 = vpop.f32.mrf.mxu0
        %1863 = vdwg.mxu0
        %1864 = vmatpush.bf16.msra.mxu0 0
        %1865 = vmatpush.bf16.msra.mxu0 0
        %1866 = vmatpush.bf16.msra.mxu0 0
        %1867 = vmatpush.bf16.msra.mxu0 %v1828
        %1868 = vmatpush.bf16.msra.mxu0 %v1766
        %1869 = vmatpush.bf16.msra.mxu0 %v1757
        %1870 = vmatpush.bf16.msra.mxu0 %v1748
        %1871 = vmatpush.bf16.msra.mxu0 %v1739
        %1872 = vmatmul.bf16.gmra.mxu0 %v1821
        %v1873 = vpop.f32.mrf.mxu0
        %v1874 = vadd.f32 0.0, %v1873
        %v1875 = vpop.f32.mrf.mxu0
        %1876 = vdwg.mxu0
        %1877 = vmatpush.bf16.msra.mxu0 0
        %1878 = vmatpush.bf16.msra.mxu0 0
        %1879 = vmatpush.bf16.msra.mxu0 0
        %1880 = vmatpush.bf16.msra.mxu0 %v1831
        %1881 = vmatpush.bf16.msra.mxu0 %v1767
        %1882 = vmatpush.bf16.msra.mxu0 %v1758
        %1883 = vmatpush.bf16.msra.mxu0 %v1749
        %1884 = vmatpush.bf16.msra.mxu0 %v1740
        %1885 = vmatmul.bf16.gmra.mxu0 %v1821
        %v1886 = vpop.f32.mrf.mxu0
        %v1887 = vadd.f32 0.0, %v1886
        %v1888 = vpop.f32.mrf.mxu0
        %1889 = vdwg.mxu0
        %1890 = vmatpush.bf16.msra.mxu0 0
        %1891 = vmatpush.bf16.msra.mxu0 0
        %1892 = vmatpush.bf16.msra.mxu0 0
        %1893 = vmatpush.bf16.msra.mxu0 %v1834
        %1894 = vmatpush.bf16.msra.mxu0 %v1768
        %1895 = vmatpush.bf16.msra.mxu0 %v1759
        %1896 = vmatpush.bf16.msra.mxu0 %v1750
        %1897 = vmatpush.bf16.msra.mxu0 %v1741
        %1898 = vmatmul.bf16.gmra.mxu0 %v1821
        %v1899 = vpop.f32.mrf.mxu0
        %v1900 = vadd.f32 0.0, %v1899
        %v1901 = vpop.f32.mrf.mxu0
        %1902 = vdwg.mxu0
        %1903 = vmatpush.bf16.msra.mxu0 0
        %1904 = vmatpush.bf16.msra.mxu0 0
        %1905 = vmatpush.bf16.msra.mxu0 0
        %1906 = vmatpush.bf16.msra.mxu0 %v1837
        %1907 = vmatpush.bf16.msra.mxu0 %v1769
        %1908 = vmatpush.bf16.msra.mxu0 %v1760
        %1909 = vmatpush.bf16.msra.mxu0 %v1751
        %1910 = vmatpush.bf16.msra.mxu0 %v1742
        %1911 = vmatmul.bf16.gmra.mxu0 %v1821
        %v1912 = vpop.f32.mrf.mxu0
        %v1913 = vadd.f32 0.0, %v1912
        %v1914 = vpop.f32.mrf.mxu0
        %1915 = vdwg.mxu0
        %1916 = vmatpush.bf16.msra.mxu0 0
        %1917 = vmatpush.bf16.msra.mxu0 0
        %1918 = vmatpush.bf16.msra.mxu0 0
        %1919 = vmatpush.bf16.msra.mxu0 %v1840
        %1920 = vmatpush.bf16.msra.mxu0 %v1770
        %1921 = vmatpush.bf16.msra.mxu0 %v1761
        %1922 = vmatpush.bf16.msra.mxu0 %v1752
        %1923 = vmatpush.bf16.msra.mxu0 %v1743
        %1924 = vmatmul.bf16.gmra.mxu0 %v1821
        %v1925 = vpop.f32.mrf.mxu0
        %v1926 = vadd.f32 0.0, %v1925
        %v1927 = vpop.f32.mrf.mxu0
        %1928 = vdwg.mxu0
        %1929 = vmatpush.bf16.msra.mxu0 0
        %1930 = vmatpush.bf16.msra.mxu0 0
        %1931 = vmatpush.bf16.msra.mxu0 0
        %1932 = vmatpush.bf16.msra.mxu0 %v1843
        %1933 = vmatpush.bf16.msra.mxu0 %v1771
        %1934 = vmatpush.bf16.msra.mxu0 %v1762
        %1935 = vmatpush.bf16.msra.mxu0 %v1753
        %1936 = vmatpush.bf16.msra.mxu0 %v1744
        %1937 = vmatmul.bf16.gmra.mxu0 %v1821
        %v1938 = vpop.f32.mrf.mxu0
        %v1939 = vadd.f32 0.0, %v1938
        %v1940 = vpop.f32.mrf.mxu0
        %1941 = vdwg.mxu0
        %1942 = vmatpush.bf16.msra.mxu0 0
        %1943 = vmatpush.bf16.msra.mxu0 0
        %1944 = vmatpush.bf16.msra.mxu0 0
        %1945 = vmatpush.bf16.msra.mxu0 %v1846
        %1946 = vmatpush.bf16.msra.mxu0 %v1772
        %1947 = vmatpush.bf16.msra.mxu0 %v1763
        %1948 = vmatpush.bf16.msra.mxu0 %v1754
        %1949 = vmatpush.bf16.msra.mxu0 %v1745
        %1950 = vmatmul.bf16.gmra.mxu0 %v1821
        %v1951 = vpop.f32.mrf.mxu0
        %v1952 = vadd.f32 0.0, %v1951
        %v1953 = vpop.f32.mrf.mxu0
        %1954 = vdwg.mxu0
        %1955 = vmatpush.bf16.msra.mxu0 0
        %1956 = vmatpush.bf16.msra.mxu0 0
        %1957 = vmatpush.bf16.msra.mxu0 0
        %1958 = vmatpush.bf16.msra.mxu0 %v1849
        %1959 = vmatpush.bf16.msra.mxu0 %v1773
        %1960 = vmatpush.bf16.msra.mxu0 %v1764
        %1961 = vmatpush.bf16.msra.mxu0 %v1755
        %1962 = vmatpush.bf16.msra.mxu0 %v1746
        %1963 = vmatmul.bf16.gmra.mxu0 %v1821
        %v1964 = vpop.f32.mrf.mxu0
        %v1965 = vadd.f32 0.0, %v1964
        %v1966 = vpop.f32.mrf.mxu0
        %1967 = vdwg.mxu0
        %v1968 = vmax.f32 %v1861, 0.0
        %v1969 = vmax.f32 %v1874, 0.0
        %v1970 = vmax.f32 %v1887, 0.0
        %v1971 = vmax.f32 %v1900, 0.0
        %v1972 = vmax.f32 %v1913, 0.0
        %v1973 = vmax.f32 %v1926, 0.0
        %v1974 = vmax.f32 %v1939, 0.0
        %v1975 = vmax.f32 %v1952, 0.0
        %v1976 = vmax.f32 %v1965, 0.0
        %v1977 = vand.u32 2147483647, %v1861
        %v1978 = vand.u32 2147483647, %v1874
        %v1979 = vand.u32 2147483647, %v1887
        %v1980 = vand.u32 2147483647, %v1900
        %v1981 = vand.u32 2147483647, %v1913
        %v1982 = vand.u32 2147483647, %v1926
        %v1983 = vand.u32 2147483647, %v1939
        %v1984 = vand.u32 2147483647, %v1952
        %v1985 = vand.u32 2147483647, %v1965
        %v1986 = vsub.f32 0.0, %v1977
        %v1987 = vsub.f32 0.0, %v1978
        %v1988 = vsub.f32 0.0, %v1979
        %v1989 = vsub.f32 0.0, %v1980
        %v1990 = vsub.f32 0.0, %v1981
        %v1991 = vsub.f32 0.0, %v1982
        %v1992 = vsub.f32 0.0, %v1983
        %v1993 = vsub.f32 0.0, %v1984
        %v1994 = vsub.f32 0.0, %v1985
        %v1995 = vmul.f32 %v1986, 1.442695
        %v1996 = vpow.pop %v1995
        %v1997 = vmul.f32 %v1987, 1.442695
        %v1998 = vpow.pop %v1997
        %v1999 = vmul.f32 %v1988, 1.442695
        %v2000 = vpow.pop %v1999
        %v2001 = vmul.f32 %v1989, 1.442695
        %v2002 = vpow.pop %v2001
        %v2003 = vmul.f32 %v1990, 1.442695
        %v2004 = vpow.pop %v2003
        %v2005 = vmul.f32 %v1991, 1.442695
        %v2006 = vpow.pop %v2005
        %v2007 = vmul.f32 %v1992, 1.442695
        %v2008 = vpow.pop %v2007
        %v2009 = vmul.f32 %v1993, 1.442695
        %v2010 = vpow.pop %v2009
        %v2011 = vmul.f32 %v1994, 1.442695
        %v2012 = vpow.pop %v2011
        %v2013 = vadd.f32 %v1996, 1.0
        %v2014 = vlog2.pop %v2013
        %v2015 = vmul.f32 %v2014, 0.6931472
        %v2016 = vmul.f32 -0.5, %v1996
        %v2017 = vadd.f32 %v2016, 1.0
        %v2018 = vmul.f32 %v2017, %v1996
        %v2019 = vand.u32 2147483647, %v1996
        %vm2020 = vcmp.lt.f32.partialorder %v2019, 0.0004427343
        %v2021 = vsel %vm2020, %v2018, %v2015
        %v2022 = vadd.f32 %v1998, 1.0
        %v2023 = vlog2.pop %v2022
        %v2024 = vmul.f32 %v2023, 0.6931472
        %v2025 = vmul.f32 -0.5, %v1998
        %v2026 = vadd.f32 %v2025, 1.0
        %v2027 = vmul.f32 %v2026, %v1998
        %v2028 = vand.u32 2147483647, %v1998
        %vm2029 = vcmp.lt.f32.partialorder %v2028, 0.0004427343
        %v2030 = vsel %vm2029, %v2027, %v2024
        %v2031 = vadd.f32 %v2000, 1.0
        %v2032 = vlog2.pop %v2031
        %v2033 = vmul.f32 %v2032, 0.6931472
        %v2034 = vmul.f32 -0.5, %v2000
        %v2035 = vadd.f32 %v2034, 1.0
        %v2036 = vmul.f32 %v2035, %v2000
        %v2037 = vand.u32 2147483647, %v2000
        %vm2038 = vcmp.lt.f32.partialorder %v2037, 0.0004427343
        %v2039 = vsel %vm2038, %v2036, %v2033
        %v2040 = vadd.f32 %v2002, 1.0
        %v2041 = vlog2.pop %v2040
        %v2042 = vmul.f32 %v2041, 0.6931472
        %v2043 = vmul.f32 -0.5, %v2002
        %v2044 = vadd.f32 %v2043, 1.0
        %v2045 = vmul.f32 %v2044, %v2002
        %v2046 = vand.u32 2147483647, %v2002
        %vm2047 = vcmp.lt.f32.partialorder %v2046, 0.0004427343
        %v2048 = vsel %vm2047, %v2045, %v2042
        %v2049 = vadd.f32 %v2004, 1.0
        %v2050 = vlog2.pop %v2049
        %v2051 = vmul.f32 %v2050, 0.6931472
        %v2052 = vmul.f32 -0.5, %v2004
        %v2053 = vadd.f32 %v2052, 1.0
        %v2054 = vmul.f32 %v2053, %v2004
        %v2055 = vand.u32 2147483647, %v2004
        %vm2056 = vcmp.lt.f32.partialorder %v2055, 0.0004427343
        %v2057 = vsel %vm2056, %v2054, %v2051
        %v2058 = vadd.f32 %v2006, 1.0
        %v2059 = vlog2.pop %v2058
        %v2060 = vmul.f32 %v2059, 0.6931472
        %v2061 = vmul.f32 -0.5, %v2006
        %v2062 = vadd.f32 %v2061, 1.0
        %v2063 = vmul.f32 %v2062, %v2006
        %v2064 = vand.u32 2147483647, %v2006
        %vm2065 = vcmp.lt.f32.partialorder %v2064, 0.0004427343
        %v2066 = vsel %vm2065, %v2063, %v2060
        %v2067 = vadd.f32 %v2008, 1.0
        %v2068 = vlog2.pop %v2067
        %v2069 = vmul.f32 %v2068, 0.6931472
        %v2070 = vmul.f32 -0.5, %v2008
        %v2071 = vadd.f32 %v2070, 1.0
        %v2072 = vmul.f32 %v2071, %v2008
        %v2073 = vand.u32 2147483647, %v2008
        %vm2074 = vcmp.lt.f32.partialorder %v2073, 0.0004427343
        %v2075 = vsel %vm2074, %v2072, %v2069
        %v2076 = vadd.f32 %v2010, 1.0
        %v2077 = vlog2.pop %v2076
        %v2078 = vmul.f32 %v2077, 0.6931472
        %v2079 = vmul.f32 -0.5, %v2010
        %v2080 = vadd.f32 %v2079, 1.0
        %v2081 = vmul.f32 %v2080, %v2010
        %v2082 = vand.u32 2147483647, %v2010
        %vm2083 = vcmp.lt.f32.partialorder %v2082, 0.0004427343
        %v2084 = vsel %vm2083, %v2081, %v2078
        %v2085 = vadd.f32 %v2012, 1.0
        %v2086 = vlog2.pop %v2085
        %v2087 = vmul.f32 %v2086, 0.6931472
        %v2088 = vmul.f32 -0.5, %v2012
        %v2089 = vadd.f32 %v2088, 1.0
        %v2090 = vmul.f32 %v2089, %v2012
        %v2091 = vand.u32 2147483647, %v2012
        %vm2092 = vcmp.lt.f32.partialorder %v2091, 0.0004427343
        %v2093 = vsel %vm2092, %v2090, %v2087
        %v2094 = vadd.f32 %v1968, %v2021
        %v2095 = vadd.f32 %v1969, %v2030
        %v2096 = vadd.f32 %v1970, %v2039
        %v2097 = vadd.f32 %v1971, %v2048
        %v2098 = vadd.f32 %v1972, %v2057
        %v2099 = vadd.f32 %v1973, %v2066
        %v2100 = vadd.f32 %v1974, %v2075
        %v2101 = vadd.f32 %v1975, %v2084
        %v2102 = vadd.f32 %v1976, %v2093
        %v2103 = vtanh.pop %v2094
        %v2104 = vtanh.pop %v2095
        %v2105 = vtanh.pop %v2096
        %v2106 = vtanh.pop %v2097
        %v2107 = vtanh.pop %v2098
        %v2108 = vtanh.pop %v2099
        %v2109 = vtanh.pop %v2100
        %v2110 = vtanh.pop %v2101
        %v2111 = vtanh.pop %v2102
        %v2112 = vmul.f32 %v1861, %v2103
        %v2113 = vmul.f32 %v1874, %v2104
        %v2114 = vmul.f32 %v1887, %v2105
        %v2115 = vmul.f32 %v1900, %v2106
        %v2116 = vmul.f32 %v1913, %v2107
        %v2117 = vmul.f32 %v1926, %v2108
        %v2118 = vmul.f32 %v1939, %v2109
        %v2119 = vmul.f32 %v1952, %v2110
        %v2120 = vmul.f32 %v1965, %v2111
        %v2121 = vld [vmem:[#allocation6] sm:$0xff]
        %v2122 = vld [vmem:[#allocation6 + $0x8] sm:$0x1]
        %v2125 = vperm.slane %v2121, 0
        %v2126 = vperm.slane %v2121, 1
        %v2127 = vperm.slane %v2121, 2
        %v2128 = vperm.slane %v2121, 3
        %v2129 = vperm.slane %v2121, 4
        %v2130 = vperm.slane %v2121, 5
        %v2131 = vperm.slane %v2121, 6
        %v2132 = vperm.slane %v2121, 7
        %v2133 = vperm.slane %v2122, 0
        %v2143 = vmul.f32 %v2112, %v2125
        %v2144 = vmul.f32 %v2113, %v2126
        %v2145 = vmul.f32 %v2114, %v2127
        %v2146 = vmul.f32 %v2115, %v2128
        %v2147 = vmul.f32 %v2116, %v2129
        %v2148 = vmul.f32 %v2117, %v2130
        %v2149 = vmul.f32 %v2118, %v2131
        %v2150 = vmul.f32 %v2119, %v2132
        %v2151 = vmul.f32 %v2120, %v2133
        %v2152 = vld [vmem:[%s4] sm:$0xf]
        %v2154 = vsel %vm1819, %v2152, 0
        %2156 = vmatpush.bf16.msra.mxu0 0
        %2157 = vmatpush.bf16.msra.mxu0 0
        %2158 = vmatpush.bf16.msra.mxu0 0
        %2159 = vmatpush.bf16.msra.mxu0 %v1825
        %2160 = vmatpush.bf16.msra.mxu0 %v1765
        %2161 = vmatpush.bf16.msra.mxu0 %v1756
        %2162 = vmatpush.bf16.msra.mxu0 %v1747
        %2163 = vmatpush.bf16.msra.mxu0 %v1738
        %2164 = vmatmul.bf16.gmra.mxu0 %v2154
        %v2165 = vpop.f32.mrf.mxu0
        %v2166 = vadd.f32 0.0, %v2165
        %v2167 = vpop.f32.mrf.mxu0
        %2168 = vdwg.mxu0
        %2169 = vmatpush.bf16.msra.mxu0 0
        %2170 = vmatpush.bf16.msra.mxu0 0
        %2171 = vmatpush.bf16.msra.mxu0 0
        %2172 = vmatpush.bf16.msra.mxu0 %v1828
        %2173 = vmatpush.bf16.msra.mxu0 %v1766
        %2174 = vmatpush.bf16.msra.mxu0 %v1757
        %2175 = vmatpush.bf16.msra.mxu0 %v1748
        %2176 = vmatpush.bf16.msra.mxu0 %v1739
        %2177 = vmatmul.bf16.gmra.mxu0 %v2154
        %v2178 = vpop.f32.mrf.mxu0
        %v2179 = vadd.f32 0.0, %v2178
        %v2180 = vpop.f32.mrf.mxu0
        %2181 = vdwg.mxu0
        %2182 = vmatpush.bf16.msra.mxu0 0
        %2183 = vmatpush.bf16.msra.mxu0 0
        %2184 = vmatpush.bf16.msra.mxu0 0
        %2185 = vmatpush.bf16.msra.mxu0 %v1831
        %2186 = vmatpush.bf16.msra.mxu0 %v1767
        %2187 = vmatpush.bf16.msra.mxu0 %v1758
        %2188 = vmatpush.bf16.msra.mxu0 %v1749
        %2189 = vmatpush.bf16.msra.mxu0 %v1740
        %2190 = vmatmul.bf16.gmra.mxu0 %v2154
        %v2191 = vpop.f32.mrf.mxu0
        %v2192 = vadd.f32 0.0, %v2191
        %v2193 = vpop.f32.mrf.mxu0
        %2194 = vdwg.mxu0
        %2195 = vmatpush.bf16.msra.mxu0 0
        %2196 = vmatpush.bf16.msra.mxu0 0
        %2197 = vmatpush.bf16.msra.mxu0 0
        %2198 = vmatpush.bf16.msra.mxu0 %v1834
        %2199 = vmatpush.bf16.msra.mxu0 %v1768
        %2200 = vmatpush.bf16.msra.mxu0 %v1759
        %2201 = vmatpush.bf16.msra.mxu0 %v1750
        %2202 = vmatpush.bf16.msra.mxu0 %v1741
        %2203 = vmatmul.bf16.gmra.mxu0 %v2154
        %v2204 = vpop.f32.mrf.mxu0
        %v2205 = vadd.f32 0.0, %v2204
        %v2206 = vpop.f32.mrf.mxu0
        %2207 = vdwg.mxu0
        %2208 = vmatpush.bf16.msra.mxu0 0
        %2209 = vmatpush.bf16.msra.mxu0 0
        %2210 = vmatpush.bf16.msra.mxu0 0
        %2211 = vmatpush.bf16.msra.mxu0 %v1837
        %2212 = vmatpush.bf16.msra.mxu0 %v1769
        %2213 = vmatpush.bf16.msra.mxu0 %v1760
        %2214 = vmatpush.bf16.msra.mxu0 %v1751
        %2215 = vmatpush.bf16.msra.mxu0 %v1742
        %2216 = vmatmul.bf16.gmra.mxu0 %v2154
        %v2217 = vpop.f32.mrf.mxu0
        %v2218 = vadd.f32 0.0, %v2217
        %v2219 = vpop.f32.mrf.mxu0
        %2220 = vdwg.mxu0
        %2221 = vmatpush.bf16.msra.mxu0 0
        %2222 = vmatpush.bf16.msra.mxu0 0
        %2223 = vmatpush.bf16.msra.mxu0 0
        %2224 = vmatpush.bf16.msra.mxu0 %v1840
        %2225 = vmatpush.bf16.msra.mxu0 %v1770
        %2226 = vmatpush.bf16.msra.mxu0 %v1761
        %2227 = vmatpush.bf16.msra.mxu0 %v1752
        %2228 = vmatpush.bf16.msra.mxu0 %v1743
        %2229 = vmatmul.bf16.gmra.mxu0 %v2154
        %v2230 = vpop.f32.mrf.mxu0
        %v2231 = vadd.f32 0.0, %v2230
        %v2232 = vpop.f32.mrf.mxu0
        %2233 = vdwg.mxu0
        %2234 = vmatpush.bf16.msra.mxu0 0
        %2235 = vmatpush.bf16.msra.mxu0 0
        %2236 = vmatpush.bf16.msra.mxu0 0
        %2237 = vmatpush.bf16.msra.mxu0 %v1843
        %2238 = vmatpush.bf16.msra.mxu0 %v1771
        %2239 = vmatpush.bf16.msra.mxu0 %v1762
        %2240 = vmatpush.bf16.msra.mxu0 %v1753
        %2241 = vmatpush.bf16.msra.mxu0 %v1744
        %2242 = vmatmul.bf16.gmra.mxu0 %v2154
        %v2243 = vpop.f32.mrf.mxu0
        %v2244 = vadd.f32 0.0, %v2243
        %v2245 = vpop.f32.mrf.mxu0
        %2246 = vdwg.mxu0
        %2247 = vmatpush.bf16.msra.mxu0 0
        %2248 = vmatpush.bf16.msra.mxu0 0
        %2249 = vmatpush.bf16.msra.mxu0 0
        %2250 = vmatpush.bf16.msra.mxu0 %v1846
        %2251 = vmatpush.bf16.msra.mxu0 %v1772
        %2252 = vmatpush.bf16.msra.mxu0 %v1763
        %2253 = vmatpush.bf16.msra.mxu0 %v1754
        %2254 = vmatpush.bf16.msra.mxu0 %v1745
        %2255 = vmatmul.bf16.gmra.mxu0 %v2154
        %v2256 = vpop.f32.mrf.mxu0
        %v2257 = vadd.f32 0.0, %v2256
        %v2258 = vpop.f32.mrf.mxu0
        %2259 = vdwg.mxu0
        %2260 = vmatpush.bf16.msra.mxu0 0
        %2261 = vmatpush.bf16.msra.mxu0 0
        %2262 = vmatpush.bf16.msra.mxu0 0
        %2263 = vmatpush.bf16.msra.mxu0 %v1849
        %2264 = vmatpush.bf16.msra.mxu0 %v1773
        %2265 = vmatpush.bf16.msra.mxu0 %v1764
        %2266 = vmatpush.bf16.msra.mxu0 %v1755
        %2267 = vmatpush.bf16.msra.mxu0 %v1746
        %2268 = vmatmul.bf16.gmra.mxu0 %v2154
        %v2269 = vpop.f32.mrf.mxu0
        %v2270 = vadd.f32 0.0, %v2269
        %v2271 = vpop.f32.mrf.mxu0
        %2272 = vdwg.mxu0
        %v2273 = vld [vmem:[%s6] sm:$0xff]
        %2275 = vset.pattern.permute.xlu0 0
        %2276 = vperm.xlu0 %2275, %v2273
        %v2277 = vpop.permute.xlu0 %2276
        %v2279 = vmul.f32 %v2166, %v2277
        %v2280 = vmul.f32 %v2179, %v2277
        %v2281 = vmul.f32 %v2192, %v2277
        %v2282 = vmul.f32 %v2205, %v2277
        %v2283 = vmul.f32 %v2218, %v2277
        %v2284 = vmul.f32 %v2231, %v2277
        %v2285 = vmul.f32 %v2244, %v2277
        %v2286 = vmul.f32 %v2257, %v2277
        %v2287 = vmul.f32 %v2270, %v2277
        %v2288 = vld [vmem:[%s7] sm:$0xff]
        %2290 = vset.pattern.permute.xlu0 0
        %2291 = vperm.xlu0 %2290, %v2288
        %v2292 = vpop.permute.xlu0 %2291
        %v2294 = vadd.f32 %v2279, %v2292
        %v2295 = vadd.f32 %v2280, %v2292
        %v2296 = vadd.f32 %v2281, %v2292
        %v2297 = vadd.f32 %v2282, %v2292
        %v2298 = vadd.f32 %v2283, %v2292
        %v2299 = vadd.f32 %v2284, %v2292
        %v2300 = vadd.f32 %v2285, %v2292
        %v2301 = vadd.f32 %v2286, %v2292
        %v2302 = vadd.f32 %v2287, %v2292
        %2303 = vst [vmem:[#allocation2] sm:$0xff] 0.0
        %2304 = vst [vmem:[#allocation2 + $0x8] sm:$0xff] 0.0
        %2305 = vst [vmem:[#allocation2 + $0x10] sm:$0xff] 0.0
        %2306 = vst [vmem:[#allocation2 + $0x18] sm:$0xff] 0.0
        %2307 = vst [vmem:[#allocation2 + $0x20] sm:$0xff] 0.0
        %2308 = vst [vmem:[#allocation2 + $0x28] sm:$0xff] 0.0
        %2309 = vst [vmem:[#allocation2 + $0x30] sm:$0xff] 0.0
        %2310 = vst [vmem:[#allocation2 + $0x38] sm:$0xff] 0.0
        %2311 = vst [vmem:[#allocation2 + $0x40] sm:$0xff] 0.0
        %2312 = vst.msk [vmem:[#allocation2 + $0x48] sm:$0xff] %vm1104, 0.0
        %2322 = vrot.lane.b32.xlu0 %v2143, 37
        %v2323 = vpop.permute.xlu0 %2322
        %2324 = vrot.lane.b32.xlu0 %v2144, 37
        %v2325 = vpop.permute.xlu0 %2324
        %2326 = vrot.lane.b32.xlu0 %v2145, 37
        %v2327 = vpop.permute.xlu0 %2326
        %2328 = vrot.lane.b32.xlu0 %v2146, 37
        %v2329 = vpop.permute.xlu0 %2328
        %2330 = vrot.lane.b32.xlu0 %v2147, 37
        %v2331 = vpop.permute.xlu0 %2330
        %2332 = vrot.lane.b32.xlu0 %v2148, 37
        %v2333 = vpop.permute.xlu0 %2332
        %2334 = vrot.lane.b32.xlu0 %v2149, 37
        %v2335 = vpop.permute.xlu0 %2334
        %2336 = vrot.lane.b32.xlu0 %v2150, 37
        %v2337 = vpop.permute.xlu0 %2336
        %2338 = vrot.lane.b32.xlu0 %v2151, 37
        %v2339 = vpop.permute.xlu0 %2338
        %vm2340 = vcmask 302080
        %v2341 = vsel %vm2340, %v2323, %v2325
        %v2342 = vsel %vm2340, %v2325, %v2327
        %v2343 = vsel %vm2340, %v2327, %v2329
        %v2344 = vsel %vm2340, %v2329, %v2331
        %v2345 = vsel %vm2340, %v2331, %v2333
        %v2346 = vsel %vm2340, %v2333, %v2335
        %v2347 = vsel %vm2340, %v2335, %v2337
        %v2348 = vsel %vm2340, %v2337, %v2339
        %vm2359 = vcmask 1047848
        %2360 = vst.msk [vmem:[#allocation2] sm:$0xff] %vm2359, %v2323
        %2361 = vst [vmem:[#allocation2 + $0x8] sm:$0xff] %v2341
        %2362 = vst [vmem:[#allocation2 + $0x10] sm:$0xff] %v2342
        %2363 = vst [vmem:[#allocation2 + $0x18] sm:$0xff] %v2343
        %2364 = vst [vmem:[#allocation2 + $0x20] sm:$0xff] %v2344
        %2365 = vst [vmem:[#allocation2 + $0x28] sm:$0xff] %v2345
        %2366 = vst [vmem:[#allocation2 + $0x30] sm:$0xff] %v2346
        %2367 = vst [vmem:[#allocation2 + $0x38] sm:$0xff] %v2347
        %2368 = vst [vmem:[#allocation2 + $0x40] sm:$0xff] %v2348
        %2369 = vst.msk [vmem:[#allocation2 + $0x48] sm:$0xff] %vm2340, %v2339
        %v2370 = vld [vmem:[#allocation2] sm:$0xff]
        %v2371 = vld [vmem:[#allocation2 + $0x8] sm:$0xff]
        %v2372 = vld [vmem:[#allocation2 + $0x10] sm:$0xff]
        %v2373 = vld [vmem:[#allocation2 + $0x18] sm:$0xff]
        %v2374 = vld [vmem:[#allocation2 + $0x20] sm:$0xff]
        %v2375 = vld [vmem:[#allocation2 + $0x28] sm:$0xff]
        %v2376 = vld [vmem:[#allocation2 + $0x30] sm:$0xff]
        %v2377 = vld [vmem:[#allocation2 + $0x38] sm:$0xff]
        %v2378 = vld [vmem:[#allocation2 + $0x40] sm:$0xff]
        %v2379 = vpack.c.bf16 %v2371, %v2370
        %v2380 = vpack.c.bf16 %v2373, %v2372
        %v2381 = vpack.c.bf16 %v2375, %v2374
        %v2382 = vpack.c.bf16 %v2377, %v2376
        %v2383 = vpack.c.bf16 %v2378, %v2378
        %2384 = vst [vmem:[#allocation3] sm:$0xff] %v2379
        %2385 = vst [vmem:[#allocation3 + $0x8] sm:$0xff] %v2380
        %2386 = vst [vmem:[#allocation3 + $0x10] sm:$0xff] %v2381
        %2387 = vst [vmem:[#allocation3 + $0x18] sm:$0xff] %v2382
        %2388 = vst [vmem:[#allocation3 + $0x20] sm:$0xf] %v2383
        %v2389 = vld [vmem:[#allocation2] sm:$0xff]
        %v2390 = vld [vmem:[#allocation2 + $0x8] sm:$0xff]
        %v2391 = vld [vmem:[#allocation2 + $0x10] sm:$0xff]
        %v2392 = vld [vmem:[#allocation2 + $0x18] sm:$0xff]
        %v2393 = vld [vmem:[#allocation2 + $0x20] sm:$0xff]
        %v2394 = vld [vmem:[#allocation2 + $0x28] sm:$0xff]
        %v2395 = vld [vmem:[#allocation2 + $0x30] sm:$0xff]
        %v2396 = vld [vmem:[#allocation2 + $0x38] sm:$0xff]
        %v2397 = vld [vmem:[#allocation2 + $0x40] sm:$0xff]
        %v2398 = vld [vmem:[#allocation2 + $0x48] sm:$0xff]
        %v2399 = vpack.c.bf16 %v2390, %v2389
        %v2400 = vpack.c.bf16 %v2392, %v2391
        %v2401 = vpack.c.bf16 %v2394, %v2393
        %v2402 = vpack.c.bf16 %v2396, %v2395
        %v2403 = vpack.c.bf16 %v2398, %v2397
        %2409 = vrot.lane.b32.xlu0 %v2399, 127
        %v2410 = vpop.permute.xlu0 %2409
        %2411 = vrot.lane.b32.xlu0 %v2400, 127
        %v2412 = vpop.permute.xlu0 %2411
        %2413 = vrot.lane.b32.xlu0 %v2401, 127
        %v2414 = vpop.permute.xlu0 %2413
        %2415 = vrot.lane.b32.xlu0 %v2402, 127
        %v2416 = vpop.permute.xlu0 %2415
        %2417 = vrot.lane.b32.xlu0 %v2403, 127
        %v2418 = vpop.permute.xlu0 %2417
        %v2419 = vrot.slane %v2410, 4
        %v2420 = vrot.slane %v2412, 4
        %v2421 = vrot.slane %v2414, 4
        %v2422 = vrot.slane %v2416, 4
        %v2423 = vrot.slane %v2418, 4
        %v2424 = vsel %vm1160, %v2419, %v2420
        %v2425 = vsel %vm1162, %v2410, %v2424
        %v2426 = vsel %vm1160, %v2420, %v2421
        %v2427 = vsel %vm1162, %v2412, %v2426
        %v2428 = vsel %vm1160, %v2421, %v2422
        %v2429 = vsel %vm1162, %v2414, %v2428
        %v2430 = vsel %vm1160, %v2422, %v2423
        %v2431 = vsel %vm1162, %v2416, %v2430
        %v2432 = vsel %vm1162, %v2418, %v2423
        %2438 = vst [vmem:[#allocation3 + $0x24] sm:$0xff] %v2425
        %2439 = vst [vmem:[#allocation3 + $0x2c] sm:$0xff] %v2427
        %2440 = vst [vmem:[#allocation3 + $0x34] sm:$0xff] %v2429
        %2441 = vst [vmem:[#allocation3 + $0x3c] sm:$0xff] %v2431
        %2442 = vst [vmem:[#allocation3 + $0x44] sm:$0xf] %v2432
        %v2443 = vld [vmem:[#allocation2] sm:$0xff]
        %v2444 = vld [vmem:[#allocation2 + $0x8] sm:$0xff]
        %v2445 = vld [vmem:[#allocation2 + $0x10] sm:$0xff]
        %v2446 = vld [vmem:[#allocation2 + $0x18] sm:$0xff]
        %v2447 = vld [vmem:[#allocation2 + $0x20] sm:$0xff]
        %v2448 = vld [vmem:[#allocation2 + $0x28] sm:$0xff]
        %v2449 = vld [vmem:[#allocation2 + $0x30] sm:$0xff]
        %v2450 = vld [vmem:[#allocation2 + $0x38] sm:$0xff]
        %v2451 = vld [vmem:[#allocation2 + $0x40] sm:$0xff]
        %v2452 = vld [vmem:[#allocation2 + $0x48] sm:$0xff]
        %v2453 = vpack.c.bf16 %v2444, %v2443
        %v2454 = vpack.c.bf16 %v2446, %v2445
        %v2455 = vpack.c.bf16 %v2448, %v2447
        %v2456 = vpack.c.bf16 %v2450, %v2449
        %v2457 = vpack.c.bf16 %v2452, %v2451
        %2463 = vrot.lane.b32.xlu0 %v2453, 126
        %v2464 = vpop.permute.xlu0 %2463
        %2465 = vrot.lane.b32.xlu0 %v2454, 126
        %v2466 = vpop.permute.xlu0 %2465
        %2467 = vrot.lane.b32.xlu0 %v2455, 126
        %v2468 = vpop.permute.xlu0 %2467
        %2469 = vrot.lane.b32.xlu0 %v2456, 126
        %v2470 = vpop.permute.xlu0 %2469
        %2471 = vrot.lane.b32.xlu0 %v2457, 126
        %v2472 = vpop.permute.xlu0 %2471
        %v2473 = vrot.slane %v2464, 4
        %v2474 = vrot.slane %v2466, 4
        %v2475 = vrot.slane %v2468, 4
        %v2476 = vrot.slane %v2470, 4
        %v2477 = vrot.slane %v2472, 4
        %v2478 = vsel %vm1160, %v2473, %v2474
        %v2479 = vsel %vm1217, %v2464, %v2478
        %v2480 = vsel %vm1160, %v2474, %v2475
        %v2481 = vsel %vm1217, %v2466, %v2480
        %v2482 = vsel %vm1160, %v2475, %v2476
        %v2483 = vsel %vm1217, %v2468, %v2482
        %v2484 = vsel %vm1160, %v2476, %v2477
        %v2485 = vsel %vm1217, %v2470, %v2484
        %v2486 = vsel %vm1217, %v2472, %v2477
        %2492 = vst [vmem:[#allocation3 + $0x48] sm:$0xff] %v2479
        %2493 = vst [vmem:[#allocation3 + $0x50] sm:$0xff] %v2481
        %2494 = vst [vmem:[#allocation3 + $0x58] sm:$0xff] %v2483
        %2495 = vst [vmem:[#allocation3 + $0x60] sm:$0xff] %v2485
        %2496 = vst [vmem:[#allocation3 + $0x68] sm:$0xf] %v2486
        %v2497 = vld [vmem:[#allocation2] sm:$0xff]
        %v2498 = vld [vmem:[#allocation2 + $0x8] sm:$0xff]
        %v2499 = vld [vmem:[#allocation2 + $0x10] sm:$0xff]
        %v2500 = vld [vmem:[#allocation2 + $0x18] sm:$0xff]
        %v2501 = vld [vmem:[#allocation2 + $0x20] sm:$0xff]
        %v2502 = vld [vmem:[#allocation2 + $0x28] sm:$0xff]
        %v2503 = vld [vmem:[#allocation2 + $0x30] sm:$0xff]
        %v2504 = vld [vmem:[#allocation2 + $0x38] sm:$0xff]
        %v2505 = vld [vmem:[#allocation2 + $0x40] sm:$0xff]
        %v2506 = vld [vmem:[#allocation2 + $0x48] sm:$0xff]
        %v2507 = vpack.c.bf16 %v2498, %v2497
        %v2508 = vpack.c.bf16 %v2500, %v2499
        %v2509 = vpack.c.bf16 %v2502, %v2501
        %v2510 = vpack.c.bf16 %v2504, %v2503
        %v2511 = vpack.c.bf16 %v2506, %v2505
        %2517 = vrot.lane.b32.xlu0 %v2507, 92
        %v2518 = vpop.permute.xlu0 %2517
        %2519 = vrot.lane.b32.xlu0 %v2508, 92
        %v2520 = vpop.permute.xlu0 %2519
        %2521 = vrot.lane.b32.xlu0 %v2509, 92
        %v2522 = vpop.permute.xlu0 %2521
        %2523 = vrot.lane.b32.xlu0 %v2510, 92
        %v2524 = vpop.permute.xlu0 %2523
        %2525 = vrot.lane.b32.xlu0 %v2511, 92
        %v2526 = vpop.permute.xlu0 %2525
        %v2527 = vrot.slane %v2518, 4
        %v2528 = vrot.slane %v2520, 4
        %v2529 = vrot.slane %v2522, 4
        %v2530 = vrot.slane %v2524, 4
        %v2531 = vrot.slane %v2526, 4
        %v2532 = vsel %vm1160, %v2527, %v2528
        %v2533 = vsel %vm1272, %v2518, %v2532
        %v2534 = vsel %vm1160, %v2528, %v2529
        %v2535 = vsel %vm1272, %v2520, %v2534
        %v2536 = vsel %vm1160, %v2529, %v2530
        %v2537 = vsel %vm1272, %v2522, %v2536
        %v2538 = vsel %vm1160, %v2530, %v2531
        %v2539 = vsel %vm1272, %v2524, %v2538
        %v2540 = vsel %vm1272, %v2526, %v2531
        %2546 = vst [vmem:[#allocation3 + $0x6c] sm:$0xff] %v2533
        %2547 = vst [vmem:[#allocation3 + $0x74] sm:$0xff] %v2535
        %2548 = vst [vmem:[#allocation3 + $0x7c] sm:$0xff] %v2537
        %2549 = vst [vmem:[#allocation3 + $0x84] sm:$0xff] %v2539
        %2550 = vst [vmem:[#allocation3 + $0x8c] sm:$0xf] %v2540
        %v2551 = vld [vmem:[#allocation2] sm:$0xff]
        %v2552 = vld [vmem:[#allocation2 + $0x8] sm:$0xff]
        %v2553 = vld [vmem:[#allocation2 + $0x10] sm:$0xff]
        %v2554 = vld [vmem:[#allocation2 + $0x18] sm:$0xff]
        %v2555 = vld [vmem:[#allocation2 + $0x20] sm:$0xff]
        %v2556 = vld [vmem:[#allocation2 + $0x28] sm:$0xff]
        %v2557 = vld [vmem:[#allocation2 + $0x30] sm:$0xff]
        %v2558 = vld [vmem:[#allocation2 + $0x38] sm:$0xff]
        %v2559 = vld [vmem:[#allocation2 + $0x40] sm:$0xff]
        %v2560 = vld [vmem:[#allocation2 + $0x48] sm:$0xff]
        %v2561 = vpack.c.bf16 %v2552, %v2551
        %v2562 = vpack.c.bf16 %v2554, %v2553
        %v2563 = vpack.c.bf16 %v2556, %v2555
        %v2564 = vpack.c.bf16 %v2558, %v2557
        %v2565 = vpack.c.bf16 %v2560, %v2559
        %2571 = vrot.lane.b32.xlu0 %v2561, 91
        %v2572 = vpop.permute.xlu0 %2571
        %2573 = vrot.lane.b32.xlu0 %v2562, 91
        %v2574 = vpop.permute.xlu0 %2573
        %2575 = vrot.lane.b32.xlu0 %v2563, 91
        %v2576 = vpop.permute.xlu0 %2575
        %2577 = vrot.lane.b32.xlu0 %v2564, 91
        %v2578 = vpop.permute.xlu0 %2577
        %2579 = vrot.lane.b32.xlu0 %v2565, 91
        %v2580 = vpop.permute.xlu0 %2579
        %v2581 = vrot.slane %v2572, 4
        %v2582 = vrot.slane %v2574, 4
        %v2583 = vrot.slane %v2576, 4
        %v2584 = vrot.slane %v2578, 4
        %v2585 = vrot.slane %v2580, 4
        %v2586 = vsel %vm1160, %v2581, %v2582
        %v2587 = vsel %vm1327, %v2572, %v2586
        %v2588 = vsel %vm1160, %v2582, %v2583
        %v2589 = vsel %vm1327, %v2574, %v2588
        %v2590 = vsel %vm1160, %v2583, %v2584
        %v2591 = vsel %vm1327, %v2576, %v2590
        %v2592 = vsel %vm1160, %v2584, %v2585
        %v2593 = vsel %vm1327, %v2578, %v2592
        %v2594 = vsel %vm1327, %v2580, %v2585
        %2600 = vst [vmem:[#allocation3 + $0x90] sm:$0xff] %v2587
        %2601 = vst [vmem:[#allocation3 + $0x98] sm:$0xff] %v2589
        %2602 = vst [vmem:[#allocation3 + $0xa0] sm:$0xff] %v2591
        %2603 = vst [vmem:[#allocation3 + $0xa8] sm:$0xff] %v2593
        %2604 = vst [vmem:[#allocation3 + $0xb0] sm:$0xf] %v2594
        %v2605 = vld [vmem:[#allocation2] sm:$0xff]
        %v2606 = vld [vmem:[#allocation2 + $0x8] sm:$0xff]
        %v2607 = vld [vmem:[#allocation2 + $0x10] sm:$0xff]
        %v2608 = vld [vmem:[#allocation2 + $0x18] sm:$0xff]
        %v2609 = vld [vmem:[#allocation2 + $0x20] sm:$0xff]
        %v2610 = vld [vmem:[#allocation2 + $0x28] sm:$0xff]
        %v2611 = vld [vmem:[#allocation2 + $0x30] sm:$0xff]
        %v2612 = vld [vmem:[#allocation2 + $0x38] sm:$0xff]
        %v2613 = vld [vmem:[#allocation2 + $0x40] sm:$0xff]
        %v2614 = vld [vmem:[#allocation2 + $0x48] sm:$0xff]
        %v2615 = vpack.c.bf16 %v2606, %v2605
        %v2616 = vpack.c.bf16 %v2608, %v2607
        %v2617 = vpack.c.bf16 %v2610, %v2609
        %v2618 = vpack.c.bf16 %v2612, %v2611
        %v2619 = vpack.c.bf16 %v2614, %v2613
        %2625 = vrot.lane.b32.xlu0 %v2615, 90
        %v2626 = vpop.permute.xlu0 %2625
        %2627 = vrot.lane.b32.xlu0 %v2616, 90
        %v2628 = vpop.permute.xlu0 %2627
        %2629 = vrot.lane.b32.xlu0 %v2617, 90
        %v2630 = vpop.permute.xlu0 %2629
        %2631 = vrot.lane.b32.xlu0 %v2618, 90
        %v2632 = vpop.permute.xlu0 %2631
        %2633 = vrot.lane.b32.xlu0 %v2619, 90
        %v2634 = vpop.permute.xlu0 %2633
        %v2635 = vrot.slane %v2626, 4
        %v2636 = vrot.slane %v2628, 4
        %v2637 = vrot.slane %v2630, 4
        %v2638 = vrot.slane %v2632, 4
        %v2639 = vrot.slane %v2634, 4
        %v2640 = vsel %vm1160, %v2635, %v2636
        %v2641 = vsel %vm1382, %v2626, %v2640
        %v2642 = vsel %vm1160, %v2636, %v2637
        %v2643 = vsel %vm1382, %v2628, %v2642
        %v2644 = vsel %vm1160, %v2637, %v2638
        %v2645 = vsel %vm1382, %v2630, %v2644
        %v2646 = vsel %vm1160, %v2638, %v2639
        %v2647 = vsel %vm1382, %v2632, %v2646
        %v2648 = vsel %vm1382, %v2634, %v2639
        %2654 = vst [vmem:[#allocation3 + $0xb4] sm:$0xff] %v2641
        %2655 = vst [vmem:[#allocation3 + $0xbc] sm:$0xff] %v2643
        %2656 = vst [vmem:[#allocation3 + $0xc4] sm:$0xff] %v2645
        %2657 = vst [vmem:[#allocation3 + $0xcc] sm:$0xff] %v2647
        %2658 = vst [vmem:[#allocation3 + $0xd4] sm:$0xf] %v2648
        %v2659 = vld [vmem:[#allocation2] sm:$0xff]
        %v2660 = vld [vmem:[#allocation2 + $0x8] sm:$0xff]
        %v2661 = vld [vmem:[#allocation2 + $0x10] sm:$0xff]
        %v2662 = vld [vmem:[#allocation2 + $0x18] sm:$0xff]
        %v2663 = vld [vmem:[#allocation2 + $0x20] sm:$0xff]
        %v2664 = vld [vmem:[#allocation2 + $0x28] sm:$0xff]
        %v2665 = vld [vmem:[#allocation2 + $0x30] sm:$0xff]
        %v2666 = vld [vmem:[#allocation2 + $0x38] sm:$0xff]
        %v2667 = vld [vmem:[#allocation2 + $0x40] sm:$0xff]
        %v2668 = vld [vmem:[#allocation2 + $0x48] sm:$0xff]
        %v2669 = vpack.c.bf16 %v2660, %v2659
        %v2670 = vpack.c.bf16 %v2662, %v2661
        %v2671 = vpack.c.bf16 %v2664, %v2663
        %v2672 = vpack.c.bf16 %v2666, %v2665
        %v2673 = vpack.c.bf16 %v2668, %v2667
        %2679 = vrot.lane.b32.xlu0 %v2669, 56
        %v2680 = vpop.permute.xlu0 %2679
        %2681 = vrot.lane.b32.xlu0 %v2670, 56
        %v2682 = vpop.permute.xlu0 %2681
        %2683 = vrot.lane.b32.xlu0 %v2671, 56
        %v2684 = vpop.permute.xlu0 %2683
        %2685 = vrot.lane.b32.xlu0 %v2672, 56
        %v2686 = vpop.permute.xlu0 %2685
        %2687 = vrot.lane.b32.xlu0 %v2673, 56
        %v2688 = vpop.permute.xlu0 %2687
        %v2689 = vrot.slane %v2680, 4
        %v2690 = vrot.slane %v2682, 4
        %v2691 = vrot.slane %v2684, 4
        %v2692 = vrot.slane %v2686, 4
        %v2693 = vrot.slane %v2688, 4
        %v2694 = vsel %vm1160, %v2689, %v2690
        %v2695 = vsel %vm1437, %v2680, %v2694
        %v2696 = vsel %vm1160, %v2690, %v2691
        %v2697 = vsel %vm1437, %v2682, %v2696
        %v2698 = vsel %vm1160, %v2691, %v2692
        %v2699 = vsel %vm1437, %v2684, %v2698
        %v2700 = vsel %vm1160, %v2692, %v2693
        %v2701 = vsel %vm1437, %v2686, %v2700
        %v2702 = vsel %vm1437, %v2688, %v2693
        %2708 = vst [vmem:[#allocation3 + $0xd8] sm:$0xff] %v2695
        %2709 = vst [vmem:[#allocation3 + $0xe0] sm:$0xff] %v2697
        %2710 = vst [vmem:[#allocation3 + $0xe8] sm:$0xff] %v2699
        %2711 = vst [vmem:[#allocation3 + $0xf0] sm:$0xff] %v2701
        %2712 = vst [vmem:[#allocation3 + $0xf8] sm:$0xf] %v2702
        %v2713 = vld [vmem:[#allocation2] sm:$0xff]
        %v2714 = vld [vmem:[#allocation2 + $0x8] sm:$0xff]
        %v2715 = vld [vmem:[#allocation2 + $0x10] sm:$0xff]
        %v2716 = vld [vmem:[#allocation2 + $0x18] sm:$0xff]
        %v2717 = vld [vmem:[#allocation2 + $0x20] sm:$0xff]
        %v2718 = vld [vmem:[#allocation2 + $0x28] sm:$0xff]
        %v2719 = vld [vmem:[#allocation2 + $0x30] sm:$0xff]
        %v2720 = vld [vmem:[#allocation2 + $0x38] sm:$0xff]
        %v2721 = vld [vmem:[#allocation2 + $0x40] sm:$0xff]
        %v2722 = vld [vmem:[#allocation2 + $0x48] sm:$0xff]
        %v2723 = vpack.c.bf16 %v2714, %v2713
        %v2724 = vpack.c.bf16 %v2716, %v2715
        %v2725 = vpack.c.bf16 %v2718, %v2717
        %v2726 = vpack.c.bf16 %v2720, %v2719
        %v2727 = vpack.c.bf16 %v2722, %v2721
        %2733 = vrot.lane.b32.xlu0 %v2723, 55
        %v2734 = vpop.permute.xlu0 %2733
        %2735 = vrot.lane.b32.xlu0 %v2724, 55
        %v2736 = vpop.permute.xlu0 %2735
        %2737 = vrot.lane.b32.xlu0 %v2725, 55
        %v2738 = vpop.permute.xlu0 %2737
        %2739 = vrot.lane.b32.xlu0 %v2726, 55
        %v2740 = vpop.permute.xlu0 %2739
        %2741 = vrot.lane.b32.xlu0 %v2727, 55
        %v2742 = vpop.permute.xlu0 %2741
        %v2743 = vrot.slane %v2734, 4
        %v2744 = vrot.slane %v2736, 4
        %v2745 = vrot.slane %v2738, 4
        %v2746 = vrot.slane %v2740, 4
        %v2747 = vrot.slane %v2742, 4
        %v2748 = vsel %vm1160, %v2743, %v2744
        %v2749 = vsel %vm1492, %v2734, %v2748
        %v2750 = vsel %vm1160, %v2744, %v2745
        %v2751 = vsel %vm1492, %v2736, %v2750
        %v2752 = vsel %vm1160, %v2745, %v2746
        %v2753 = vsel %vm1492, %v2738, %v2752
        %v2754 = vsel %vm1160, %v2746, %v2747
        %v2755 = vsel %vm1492, %v2740, %v2754
        %v2756 = vsel %vm1492, %v2742, %v2747
        %2762 = vst [vmem:[#allocation3 + $0xfc] sm:$0xff] %v2749
        %2763 = vst [vmem:[#allocation3 + $0x104] sm:$0xff] %v2751
        %2764 = vst [vmem:[#allocation3 + $0x10c] sm:$0xff] %v2753
        %2765 = vst [vmem:[#allocation3 + $0x114] sm:$0xff] %v2755
        %2766 = vst [vmem:[#allocation3 + $0x11c] sm:$0xf] %v2756
        %v2767 = vld [vmem:[#allocation2] sm:$0xff]
        %v2768 = vld [vmem:[#allocation2 + $0x8] sm:$0xff]
        %v2769 = vld [vmem:[#allocation2 + $0x10] sm:$0xff]
        %v2770 = vld [vmem:[#allocation2 + $0x18] sm:$0xff]
        %v2771 = vld [vmem:[#allocation2 + $0x20] sm:$0xff]
        %v2772 = vld [vmem:[#allocation2 + $0x28] sm:$0xff]
        %v2773 = vld [vmem:[#allocation2 + $0x30] sm:$0xff]
        %v2774 = vld [vmem:[#allocation2 + $0x38] sm:$0xff]
        %v2775 = vld [vmem:[#allocation2 + $0x40] sm:$0xff]
        %v2776 = vld [vmem:[#allocation2 + $0x48] sm:$0xff]
        %v2777 = vpack.c.bf16 %v2768, %v2767
        %v2778 = vpack.c.bf16 %v2770, %v2769
        %v2779 = vpack.c.bf16 %v2772, %v2771
        %v2780 = vpack.c.bf16 %v2774, %v2773
        %v2781 = vpack.c.bf16 %v2776, %v2775
        %2787 = vrot.lane.b32.xlu0 %v2777, 54
        %v2788 = vpop.permute.xlu0 %2787
        %2789 = vrot.lane.b32.xlu0 %v2778, 54
        %v2790 = vpop.permute.xlu0 %2789
        %2791 = vrot.lane.b32.xlu0 %v2779, 54
        %v2792 = vpop.permute.xlu0 %2791
        %2793 = vrot.lane.b32.xlu0 %v2780, 54
        %v2794 = vpop.permute.xlu0 %2793
        %2795 = vrot.lane.b32.xlu0 %v2781, 54
        %v2796 = vpop.permute.xlu0 %2795
        %v2797 = vrot.slane %v2788, 4
        %v2798 = vrot.slane %v2790, 4
        %v2799 = vrot.slane %v2792, 4
        %v2800 = vrot.slane %v2794, 4
        %v2801 = vrot.slane %v2796, 4
        %v2802 = vsel %vm1160, %v2797, %v2798
        %v2803 = vsel %vm1547, %v2788, %v2802
        %v2804 = vsel %vm1160, %v2798, %v2799
        %v2805 = vsel %vm1547, %v2790, %v2804
        %v2806 = vsel %vm1160, %v2799, %v2800
        %v2807 = vsel %vm1547, %v2792, %v2806
        %v2808 = vsel %vm1160, %v2800, %v2801
        %v2809 = vsel %vm1547, %v2794, %v2808
        %v2810 = vsel %vm1547, %v2796, %v2801
        %2816 = vst [vmem:[#allocation3 + $0x120] sm:$0xff] %v2803
        %2817 = vst [vmem:[#allocation3 + $0x128] sm:$0xff] %v2805
        %2818 = vst [vmem:[#allocation3 + $0x130] sm:$0xff] %v2807
        %2819 = vst [vmem:[#allocation3 + $0x138] sm:$0xff] %v2809
        %2820 = vst [vmem:[#allocation3 + $0x140] sm:$0xf] %v2810
        %v2821 = vld [vmem:[%s366] sm:$0xf]
        %v2822 = vld [vmem:[#allocation3] sm:$0xff]
        %v2823 = vld [vmem:[#allocation3 + $0x8] sm:$0xff]
        %v2824 = vld [vmem:[#allocation3 + $0x10] sm:$0xff]
        %v2825 = vld [vmem:[#allocation3 + $0x18] sm:$0xff]
        %v2826 = vld [vmem:[#allocation3 + $0x20] sm:$0xf]
        %v2827 = vld [vmem:[#allocation3 + $0x24] sm:$0xff]
        %v2828 = vld [vmem:[#allocation3 + $0x2c] sm:$0xff]
        %v2829 = vld [vmem:[#allocation3 + $0x34] sm:$0xff]
        %v2830 = vld [vmem:[#allocation3 + $0x3c] sm:$0xff]
        %v2831 = vld [vmem:[#allocation3 + $0x44] sm:$0xf]
        %v2832 = vld [vmem:[#allocation3 + $0x48] sm:$0xff]
        %v2833 = vld [vmem:[#allocation3 + $0x50] sm:$0xff]
        %v2834 = vld [vmem:[#allocation3 + $0x58] sm:$0xff]
        %v2835 = vld [vmem:[#allocation3 + $0x60] sm:$0xff]
        %v2836 = vld [vmem:[#allocation3 + $0x68] sm:$0xf]
        %v2837 = vld [vmem:[#allocation3 + $0x6c] sm:$0xff]
        %v2838 = vld [vmem:[#allocation3 + $0x74] sm:$0xff]
        %v2839 = vld [vmem:[#allocation3 + $0x7c] sm:$0xff]
        %v2840 = vld [vmem:[#allocation3 + $0x84] sm:$0xff]
        %v2841 = vld [vmem:[#allocation3 + $0x8c] sm:$0xf]
        %v2842 = vld [vmem:[#allocation3 + $0x90] sm:$0xff]
        %v2843 = vld [vmem:[#allocation3 + $0x98] sm:$0xff]
        %v2844 = vld [vmem:[#allocation3 + $0xa0] sm:$0xff]
        %v2845 = vld [vmem:[#allocation3 + $0xa8] sm:$0xff]
        %v2846 = vld [vmem:[#allocation3 + $0xb0] sm:$0xf]
        %v2847 = vld [vmem:[#allocation3 + $0xb4] sm:$0xff]
        %v2848 = vld [vmem:[#allocation3 + $0xbc] sm:$0xff]
        %v2849 = vld [vmem:[#allocation3 + $0xc4] sm:$0xff]
        %v2850 = vld [vmem:[#allocation3 + $0xcc] sm:$0xff]
        %v2851 = vld [vmem:[#allocation3 + $0xd4] sm:$0xf]
        %v2852 = vld [vmem:[#allocation3 + $0xd8] sm:$0xff]
        %v2853 = vld [vmem:[#allocation3 + $0xe0] sm:$0xff]
        %v2854 = vld [vmem:[#allocation3 + $0xe8] sm:$0xff]
        %v2855 = vld [vmem:[#allocation3 + $0xf0] sm:$0xff]
        %v2856 = vld [vmem:[#allocation3 + $0xf8] sm:$0xf]
        %v2857 = vld [vmem:[#allocation3 + $0xfc] sm:$0xff]
        %v2858 = vld [vmem:[#allocation3 + $0x104] sm:$0xff]
        %v2859 = vld [vmem:[#allocation3 + $0x10c] sm:$0xff]
        %v2860 = vld [vmem:[#allocation3 + $0x114] sm:$0xff]
        %v2861 = vld [vmem:[#allocation3 + $0x11c] sm:$0xf]
        %v2862 = vld [vmem:[#allocation3 + $0x120] sm:$0xff]
        %v2863 = vld [vmem:[#allocation3 + $0x128] sm:$0xff]
        %v2864 = vld [vmem:[#allocation3 + $0x130] sm:$0xff]
        %v2865 = vld [vmem:[#allocation3 + $0x138] sm:$0xff]
        %v2866 = vld [vmem:[#allocation3 + $0x140] sm:$0xf]
        %v2912 = vunpack.c.l.b16 %v2822
        %v2913 = vunpack.c.h.b16 %v2822
        %v2914 = vunpack.c.l.b16 %v2823
        %v2915 = vunpack.c.h.b16 %v2823
        %v2916 = vunpack.c.l.b16 %v2824
        %v2917 = vunpack.c.h.b16 %v2824
        %v2918 = vunpack.c.l.b16 %v2825
        %v2919 = vunpack.c.h.b16 %v2825
        %v2920 = vunpack.c.l.b16 %v2826
        %v2921 = vunpack.c.l.b16 %v2827
        %v2922 = vunpack.c.h.b16 %v2827
        %v2923 = vunpack.c.l.b16 %v2828
        %v2924 = vunpack.c.h.b16 %v2828
        %v2925 = vunpack.c.l.b16 %v2829
        %v2926 = vunpack.c.h.b16 %v2829
        %v2927 = vunpack.c.l.b16 %v2830
        %v2928 = vunpack.c.h.b16 %v2830
        %v2929 = vunpack.c.l.b16 %v2831
        %v2930 = vunpack.c.l.b16 %v2832
        %v2931 = vunpack.c.h.b16 %v2832
        %v2932 = vunpack.c.l.b16 %v2833
        %v2933 = vunpack.c.h.b16 %v2833
        %v2934 = vunpack.c.l.b16 %v2834
        %v2935 = vunpack.c.h.b16 %v2834
        %v2936 = vunpack.c.l.b16 %v2835
        %v2937 = vunpack.c.h.b16 %v2835
        %v2938 = vunpack.c.l.b16 %v2836
        %v2939 = vunpack.c.l.b16 %v2837
        %v2940 = vunpack.c.h.b16 %v2837
        %v2941 = vunpack.c.l.b16 %v2838
        %v2942 = vunpack.c.h.b16 %v2838
        %v2943 = vunpack.c.l.b16 %v2839
        %v2944 = vunpack.c.h.b16 %v2839
        %v2945 = vunpack.c.l.b16 %v2840
        %v2946 = vunpack.c.h.b16 %v2840
        %v2947 = vunpack.c.l.b16 %v2841
        %v2948 = vunpack.c.l.b16 %v2842
        %v2949 = vunpack.c.h.b16 %v2842
        %v2950 = vunpack.c.l.b16 %v2843
        %v2951 = vunpack.c.h.b16 %v2843
        %v2952 = vunpack.c.l.b16 %v2844
        %v2953 = vunpack.c.h.b16 %v2844
        %v2954 = vunpack.c.l.b16 %v2845
        %v2955 = vunpack.c.h.b16 %v2845
        %v2956 = vunpack.c.l.b16 %v2846
        %v2957 = vunpack.c.l.b16 %v2847
        %v2958 = vunpack.c.h.b16 %v2847
        %v2959 = vunpack.c.l.b16 %v2848
        %v2960 = vunpack.c.h.b16 %v2848
        %v2961 = vunpack.c.l.b16 %v2849
        %v2962 = vunpack.c.h.b16 %v2849
        %v2963 = vunpack.c.l.b16 %v2850
        %v2964 = vunpack.c.h.b16 %v2850
        %v2965 = vunpack.c.l.b16 %v2851
        %v2966 = vunpack.c.l.b16 %v2852
        %v2967 = vunpack.c.h.b16 %v2852
        %v2968 = vunpack.c.l.b16 %v2853
        %v2969 = vunpack.c.h.b16 %v2853
        %v2970 = vunpack.c.l.b16 %v2854
        %v2971 = vunpack.c.h.b16 %v2854
        %v2972 = vunpack.c.l.b16 %v2855
        %v2973 = vunpack.c.h.b16 %v2855
        %v2974 = vunpack.c.l.b16 %v2856
        %v2975 = vunpack.c.l.b16 %v2857
        %v2976 = vunpack.c.h.b16 %v2857
        %v2977 = vunpack.c.l.b16 %v2858
        %v2978 = vunpack.c.h.b16 %v2858
        %v2979 = vunpack.c.l.b16 %v2859
        %v2980 = vunpack.c.h.b16 %v2859
        %v2981 = vunpack.c.l.b16 %v2860
        %v2982 = vunpack.c.h.b16 %v2860
        %v2983 = vunpack.c.l.b16 %v2861
        %v2984 = vunpack.c.l.b16 %v2862
        %v2985 = vunpack.c.h.b16 %v2862
        %v2986 = vunpack.c.l.b16 %v2863
        %v2987 = vunpack.c.h.b16 %v2863
        %v2988 = vunpack.c.l.b16 %v2864
        %v2989 = vunpack.c.h.b16 %v2864
        %v2990 = vunpack.c.l.b16 %v2865
        %v2991 = vunpack.c.h.b16 %v2865
        %v2992 = vunpack.c.l.b16 %v2866
        %v2993 = vpack.c.b16 %v2921, %v2912
        %v2994 = vpack.c.b16 %v2922, %v2913
        %v2995 = vpack.c.b16 %v2923, %v2914
        %v2996 = vpack.c.b16 %v2924, %v2915
        %v2997 = vpack.c.b16 %v2925, %v2916
        %v2998 = vpack.c.b16 %v2926, %v2917
        %v2999 = vpack.c.b16 %v2927, %v2918
        %v3000 = vpack.c.b16 %v2928, %v2919
        %v3001 = vpack.c.b16 %v2929, %v2920
        %v3002 = vpack.c.b16 %v2939, %v2930
        %v3003 = vpack.c.b16 %v2940, %v2931
        %v3004 = vpack.c.b16 %v2941, %v2932
        %v3005 = vpack.c.b16 %v2942, %v2933
        %v3006 = vpack.c.b16 %v2943, %v2934
        %v3007 = vpack.c.b16 %v2944, %v2935
        %v3008 = vpack.c.b16 %v2945, %v2936
        %v3009 = vpack.c.b16 %v2946, %v2937
        %v3010 = vpack.c.b16 %v2947, %v2938
        %v3011 = vpack.c.b16 %v2957, %v2948
        %v3012 = vpack.c.b16 %v2958, %v2949
        %v3013 = vpack.c.b16 %v2959, %v2950
        %v3014 = vpack.c.b16 %v2960, %v2951
        %v3015 = vpack.c.b16 %v2961, %v2952
        %v3016 = vpack.c.b16 %v2962, %v2953
        %v3017 = vpack.c.b16 %v2963, %v2954
        %v3018 = vpack.c.b16 %v2964, %v2955
        %v3019 = vpack.c.b16 %v2965, %v2956
        %v3020 = vpack.c.b16 %v2975, %v2966
        %v3021 = vpack.c.b16 %v2976, %v2967
        %v3022 = vpack.c.b16 %v2977, %v2968
        %v3023 = vpack.c.b16 %v2978, %v2969
        %v3024 = vpack.c.b16 %v2979, %v2970
        %v3025 = vpack.c.b16 %v2980, %v2971
        %v3026 = vpack.c.b16 %v2981, %v2972
        %v3027 = vpack.c.b16 %v2982, %v2973
        %v3028 = vpack.c.b16 %v2983, %v2974
        %v3029 = vpack.c.b16 %v2984, %v2984
        %v3030 = vpack.c.b16 %v2985, %v2985
        %v3031 = vpack.c.b16 %v2986, %v2986
        %v3032 = vpack.c.b16 %v2987, %v2987
        %v3033 = vpack.c.b16 %v2988, %v2988
        %v3034 = vpack.c.b16 %v2989, %v2989
        %v3035 = vpack.c.b16 %v2990, %v2990
        %v3036 = vpack.c.b16 %v2991, %v2991
        %v3037 = vpack.c.b16 %v2992, %v2992
        %v3075 = vsel %vm1819, %v2821, 0
        %v3078 = vsel %vm1823, %v3029, 0
        %v3081 = vsel %vm1823, %v3030, 0
        %v3084 = vsel %vm1823, %v3031, 0
        %v3087 = vsel %vm1823, %v3032, 0
        %v3090 = vsel %vm1823, %v3033, 0
        %v3093 = vsel %vm1823, %v3034, 0
        %v3096 = vsel %vm1823, %v3035, 0
        %v3099 = vsel %vm1823, %v3036, 0
        %v3102 = vsel %vm1823, %v3037, 0
        %3104 = vmatpush.bf16.msra.mxu0 0
        %3105 = vmatpush.bf16.msra.mxu0 0
        %3106 = vmatpush.bf16.msra.mxu0 0
        %3107 = vmatpush.bf16.msra.mxu0 %v3078
        %3108 = vmatpush.bf16.msra.mxu0 %v3020
        %3109 = vmatpush.bf16.msra.mxu0 %v3011
        %3110 = vmatpush.bf16.msra.mxu0 %v3002
        %3111 = vmatpush.bf16.msra.mxu0 %v2993
        %3112 = vmatmul.bf16.gmra.mxu0 %v3075
        %v3113 = vpop.f32.mrf.mxu0
        %v3114 = vadd.f32 0.0, %v3113
        %v3115 = vpop.f32.mrf.mxu0
        %3116 = vdwg.mxu0
        %3117 = vmatpush.bf16.msra.mxu0 0
        %3118 = vmatpush.bf16.msra.mxu0 0
        %3119 = vmatpush.bf16.msra.mxu0 0
        %3120 = vmatpush.bf16.msra.mxu0 %v3081
        %3121 = vmatpush.bf16.msra.mxu0 %v3021
        %3122 = vmatpush.bf16.msra.mxu0 %v3012
        %3123 = vmatpush.bf16.msra.mxu0 %v3003
        %3124 = vmatpush.bf16.msra.mxu0 %v2994
        %3125 = vmatmul.bf16.gmra.mxu0 %v3075
        %v3126 = vpop.f32.mrf.mxu0
        %v3127 = vadd.f32 0.0, %v3126
        %v3128 = vpop.f32.mrf.mxu0
        %3129 = vdwg.mxu0
        %3130 = vmatpush.bf16.msra.mxu0 0
        %3131 = vmatpush.bf16.msra.mxu0 0
        %3132 = vmatpush.bf16.msra.mxu0 0
        %3133 = vmatpush.bf16.msra.mxu0 %v3084
        %3134 = vmatpush.bf16.msra.mxu0 %v3022
        %3135 = vmatpush.bf16.msra.mxu0 %v3013
        %3136 = vmatpush.bf16.msra.mxu0 %v3004
        %3137 = vmatpush.bf16.msra.mxu0 %v2995
        %3138 = vmatmul.bf16.gmra.mxu0 %v3075
        %v3139 = vpop.f32.mrf.mxu0
        %v3140 = vadd.f32 0.0, %v3139
        %v3141 = vpop.f32.mrf.mxu0
        %3142 = vdwg.mxu0
        %3143 = vmatpush.bf16.msra.mxu0 0
        %3144 = vmatpush.bf16.msra.mxu0 0
        %3145 = vmatpush.bf16.msra.mxu0 0
        %3146 = vmatpush.bf16.msra.mxu0 %v3087
        %3147 = vmatpush.bf16.msra.mxu0 %v3023
        %3148 = vmatpush.bf16.msra.mxu0 %v3014
        %3149 = vmatpush.bf16.msra.mxu0 %v3005
        %3150 = vmatpush.bf16.msra.mxu0 %v2996
        %3151 = vmatmul.bf16.gmra.mxu0 %v3075
        %v3152 = vpop.f32.mrf.mxu0
        %v3153 = vadd.f32 0.0, %v3152
        %v3154 = vpop.f32.mrf.mxu0
        %3155 = vdwg.mxu0
        %3156 = vmatpush.bf16.msra.mxu0 0
        %3157 = vmatpush.bf16.msra.mxu0 0
        %3158 = vmatpush.bf16.msra.mxu0 0
        %3159 = vmatpush.bf16.msra.mxu0 %v3090
        %3160 = vmatpush.bf16.msra.mxu0 %v3024
        %3161 = vmatpush.bf16.msra.mxu0 %v3015
        %3162 = vmatpush.bf16.msra.mxu0 %v3006
        %3163 = vmatpush.bf16.msra.mxu0 %v2997
        %3164 = vmatmul.bf16.gmra.mxu0 %v3075
        %v3165 = vpop.f32.mrf.mxu0
        %v3166 = vadd.f32 0.0, %v3165
        %v3167 = vpop.f32.mrf.mxu0
        %3168 = vdwg.mxu0
        %3169 = vmatpush.bf16.msra.mxu0 0
        %3170 = vmatpush.bf16.msra.mxu0 0
        %3171 = vmatpush.bf16.msra.mxu0 0
        %3172 = vmatpush.bf16.msra.mxu0 %v3093
        %3173 = vmatpush.bf16.msra.mxu0 %v3025
        %3174 = vmatpush.bf16.msra.mxu0 %v3016
        %3175 = vmatpush.bf16.msra.mxu0 %v3007
        %3176 = vmatpush.bf16.msra.mxu0 %v2998
        %3177 = vmatmul.bf16.gmra.mxu0 %v3075
        %v3178 = vpop.f32.mrf.mxu0
        %v3179 = vadd.f32 0.0, %v3178
        %v3180 = vpop.f32.mrf.mxu0
        %3181 = vdwg.mxu0
        %3182 = vmatpush.bf16.msra.mxu0 0
        %3183 = vmatpush.bf16.msra.mxu0 0
        %3184 = vmatpush.bf16.msra.mxu0 0
        %3185 = vmatpush.bf16.msra.mxu0 %v3096
        %3186 = vmatpush.bf16.msra.mxu0 %v3026
        %3187 = vmatpush.bf16.msra.mxu0 %v3017
        %3188 = vmatpush.bf16.msra.mxu0 %v3008
        %3189 = vmatpush.bf16.msra.mxu0 %v2999
        %3190 = vmatmul.bf16.gmra.mxu0 %v3075
        %v3191 = vpop.f32.mrf.mxu0
        %v3192 = vadd.f32 0.0, %v3191
        %v3193 = vpop.f32.mrf.mxu0
        %3194 = vdwg.mxu0
        %3195 = vmatpush.bf16.msra.mxu0 0
        %3196 = vmatpush.bf16.msra.mxu0 0
        %3197 = vmatpush.bf16.msra.mxu0 0
        %3198 = vmatpush.bf16.msra.mxu0 %v3099
        %3199 = vmatpush.bf16.msra.mxu0 %v3027
        %3200 = vmatpush.bf16.msra.mxu0 %v3018
        %3201 = vmatpush.bf16.msra.mxu0 %v3009
        %3202 = vmatpush.bf16.msra.mxu0 %v3000
        %3203 = vmatmul.bf16.gmra.mxu0 %v3075
        %v3204 = vpop.f32.mrf.mxu0
        %v3205 = vadd.f32 0.0, %v3204
        %v3206 = vpop.f32.mrf.mxu0
        %3207 = vdwg.mxu0
        %3208 = vmatpush.bf16.msra.mxu0 0
        %3209 = vmatpush.bf16.msra.mxu0 0
        %3210 = vmatpush.bf16.msra.mxu0 0
        %3211 = vmatpush.bf16.msra.mxu0 %v3102
        %3212 = vmatpush.bf16.msra.mxu0 %v3028
        %3213 = vmatpush.bf16.msra.mxu0 %v3019
        %3214 = vmatpush.bf16.msra.mxu0 %v3010
        %3215 = vmatpush.bf16.msra.mxu0 %v3001
        %3216 = vmatmul.bf16.gmra.mxu0 %v3075
        %v3217 = vpop.f32.mrf.mxu0
        %v3218 = vadd.f32 0.0, %v3217
        %v3219 = vpop.f32.mrf.mxu0
        %3220 = vdwg.mxu0
        %v3221 = vmax.f32 %v3114, 0.0
        %v3222 = vmax.f32 %v3127, 0.0
        %v3223 = vmax.f32 %v3140, 0.0
        %v3224 = vmax.f32 %v3153, 0.0
        %v3225 = vmax.f32 %v3166, 0.0
        %v3226 = vmax.f32 %v3179, 0.0
        %v3227 = vmax.f32 %v3192, 0.0
        %v3228 = vmax.f32 %v3205, 0.0
        %v3229 = vmax.f32 %v3218, 0.0
        %v3230 = vand.u32 2147483647, %v3114
        %v3231 = vand.u32 2147483647, %v3127
        %v3232 = vand.u32 2147483647, %v3140
        %v3233 = vand.u32 2147483647, %v3153
        %v3234 = vand.u32 2147483647, %v3166
        %v3235 = vand.u32 2147483647, %v3179
        %v3236 = vand.u32 2147483647, %v3192
        %v3237 = vand.u32 2147483647, %v3205
        %v3238 = vand.u32 2147483647, %v3218
        %v3239 = vsub.f32 0.0, %v3230
        %v3240 = vsub.f32 0.0, %v3231
        %v3241 = vsub.f32 0.0, %v3232
        %v3242 = vsub.f32 0.0, %v3233
        %v3243 = vsub.f32 0.0, %v3234
        %v3244 = vsub.f32 0.0, %v3235
        %v3245 = vsub.f32 0.0, %v3236
        %v3246 = vsub.f32 0.0, %v3237
        %v3247 = vsub.f32 0.0, %v3238
        %v3248 = vmul.f32 %v3239, 1.442695
        %v3249 = vpow.pop %v3248
        %v3250 = vmul.f32 %v3240, 1.442695
        %v3251 = vpow.pop %v3250
        %v3252 = vmul.f32 %v3241, 1.442695
        %v3253 = vpow.pop %v3252
        %v3254 = vmul.f32 %v3242, 1.442695
        %v3255 = vpow.pop %v3254
        %v3256 = vmul.f32 %v3243, 1.442695
        %v3257 = vpow.pop %v3256
        %v3258 = vmul.f32 %v3244, 1.442695
        %v3259 = vpow.pop %v3258
        %v3260 = vmul.f32 %v3245, 1.442695
        %v3261 = vpow.pop %v3260
        %v3262 = vmul.f32 %v3246, 1.442695
        %v3263 = vpow.pop %v3262
        %v3264 = vmul.f32 %v3247, 1.442695
        %v3265 = vpow.pop %v3264
        %v3266 = vadd.f32 %v3249, 1.0
        %v3267 = vlog2.pop %v3266
        %v3268 = vmul.f32 %v3267, 0.6931472
        %v3269 = vmul.f32 -0.5, %v3249
        %v3270 = vadd.f32 %v3269, 1.0
        %v3271 = vmul.f32 %v3270, %v3249
        %v3272 = vand.u32 2147483647, %v3249
        %vm3273 = vcmp.lt.f32.partialorder %v3272, 0.0004427343
        %v3274 = vsel %vm3273, %v3271, %v3268
        %v3275 = vadd.f32 %v3251, 1.0
        %v3276 = vlog2.pop %v3275
        %v3277 = vmul.f32 %v3276, 0.6931472
        %v3278 = vmul.f32 -0.5, %v3251
        %v3279 = vadd.f32 %v3278, 1.0
        %v3280 = vmul.f32 %v3279, %v3251
        %v3281 = vand.u32 2147483647, %v3251
        %vm3282 = vcmp.lt.f32.partialorder %v3281, 0.0004427343
        %v3283 = vsel %vm3282, %v3280, %v3277
        %v3284 = vadd.f32 %v3253, 1.0
        %v3285 = vlog2.pop %v3284
        %v3286 = vmul.f32 %v3285, 0.6931472
        %v3287 = vmul.f32 -0.5, %v3253
        %v3288 = vadd.f32 %v3287, 1.0
        %v3289 = vmul.f32 %v3288, %v3253
        %v3290 = vand.u32 2147483647, %v3253
        %vm3291 = vcmp.lt.f32.partialorder %v3290, 0.0004427343
        %v3292 = vsel %vm3291, %v3289, %v3286
        %v3293 = vadd.f32 %v3255, 1.0
        %v3294 = vlog2.pop %v3293
        %v3295 = vmul.f32 %v3294, 0.6931472
        %v3296 = vmul.f32 -0.5, %v3255
        %v3297 = vadd.f32 %v3296, 1.0
        %v3298 = vmul.f32 %v3297, %v3255
        %v3299 = vand.u32 2147483647, %v3255
        %vm3300 = vcmp.lt.f32.partialorder %v3299, 0.0004427343
        %v3301 = vsel %vm3300, %v3298, %v3295
        %v3302 = vadd.f32 %v3257, 1.0
        %v3303 = vlog2.pop %v3302
        %v3304 = vmul.f32 %v3303, 0.6931472
        %v3305 = vmul.f32 -0.5, %v3257
        %v3306 = vadd.f32 %v3305, 1.0
        %v3307 = vmul.f32 %v3306, %v3257
        %v3308 = vand.u32 2147483647, %v3257
        %vm3309 = vcmp.lt.f32.partialorder %v3308, 0.0004427343
        %v3310 = vsel %vm3309, %v3307, %v3304
        %v3311 = vadd.f32 %v3259, 1.0
        %v3312 = vlog2.pop %v3311
        %v3313 = vmul.f32 %v3312, 0.6931472
        %v3314 = vmul.f32 -0.5, %v3259
        %v3315 = vadd.f32 %v3314, 1.0
        %v3316 = vmul.f32 %v3315, %v3259
        %v3317 = vand.u32 2147483647, %v3259
        %vm3318 = vcmp.lt.f32.partialorder %v3317, 0.0004427343
        %v3319 = vsel %vm3318, %v3316, %v3313
        %v3320 = vadd.f32 %v3261, 1.0
        %v3321 = vlog2.pop %v3320
        %v3322 = vmul.f32 %v3321, 0.6931472
        %v3323 = vmul.f32 -0.5, %v3261
        %v3324 = vadd.f32 %v3323, 1.0
        %v3325 = vmul.f32 %v3324, %v3261
        %v3326 = vand.u32 2147483647, %v3261
        %vm3327 = vcmp.lt.f32.partialorder %v3326, 0.0004427343
        %v3328 = vsel %vm3327, %v3325, %v3322
        %v3329 = vadd.f32 %v3263, 1.0
        %v3330 = vlog2.pop %v3329
        %v3331 = vmul.f32 %v3330, 0.6931472
        %v3332 = vmul.f32 -0.5, %v3263
        %v3333 = vadd.f32 %v3332, 1.0
        %v3334 = vmul.f32 %v3333, %v3263
        %v3335 = vand.u32 2147483647, %v3263
        %vm3336 = vcmp.lt.f32.partialorder %v3335, 0.0004427343
        %v3337 = vsel %vm3336, %v3334, %v3331
        %v3338 = vadd.f32 %v3265, 1.0
        %v3339 = vlog2.pop %v3338
        %v3340 = vmul.f32 %v3339, 0.6931472
        %v3341 = vmul.f32 -0.5, %v3265
        %v3342 = vadd.f32 %v3341, 1.0
        %v3343 = vmul.f32 %v3342, %v3265
        %v3344 = vand.u32 2147483647, %v3265
        %vm3345 = vcmp.lt.f32.partialorder %v3344, 0.0004427343
        %v3346 = vsel %vm3345, %v3343, %v3340
        %v3347 = vadd.f32 %v3221, %v3274
        %v3348 = vadd.f32 %v3222, %v3283
        %v3349 = vadd.f32 %v3223, %v3292
        %v3350 = vadd.f32 %v3224, %v3301
        %v3351 = vadd.f32 %v3225, %v3310
        %v3352 = vadd.f32 %v3226, %v3319
        %v3353 = vadd.f32 %v3227, %v3328
        %v3354 = vadd.f32 %v3228, %v3337
        %v3355 = vadd.f32 %v3229, %v3346
        %v3356 = vtanh.pop %v3347
        %v3357 = vtanh.pop %v3348
        %v3358 = vtanh.pop %v3349
        %v3359 = vtanh.pop %v3350
        %v3360 = vtanh.pop %v3351
        %v3361 = vtanh.pop %v3352
        %v3362 = vtanh.pop %v3353
        %v3363 = vtanh.pop %v3354
        %v3364 = vtanh.pop %v3355
        %v3365 = vmul.f32 %v3114, %v3356
        %v3366 = vmul.f32 %v3127, %v3357
        %v3367 = vmul.f32 %v3140, %v3358
        %v3368 = vmul.f32 %v3153, %v3359
        %v3369 = vmul.f32 %v3166, %v3360
        %v3370 = vmul.f32 %v3179, %v3361
        %v3371 = vmul.f32 %v3192, %v3362
        %v3372 = vmul.f32 %v3205, %v3363
        %v3373 = vmul.f32 %v3218, %v3364
        %v3374 = vadd.f32 %v3365, %v2294
        %v3375 = vadd.f32 %v3366, %v2295
        %v3376 = vadd.f32 %v3367, %v2296
        %v3377 = vadd.f32 %v3368, %v2297
        %v3378 = vadd.f32 %v3369, %v2298
        %v3379 = vadd.f32 %v3370, %v2299
        %v3380 = vadd.f32 %v3371, %v2300
        %v3381 = vadd.f32 %v3372, %v2301
        %v3382 = vadd.f32 %v3373, %v2302
        %3383 = vst [vmem:[%s371] sm:$0xff] %v3374
        %3384 = vst [vmem:[%s371 + $0x8] sm:$0xff] %v3375
        %3385 = vst [vmem:[%s371 + $0x10] sm:$0xff] %v3376
        %3386 = vst [vmem:[%s371 + $0x18] sm:$0xff] %v3377
        %3387 = vst [vmem:[%s371 + $0x20] sm:$0xff] %v3378
        %3388 = vst [vmem:[%s371 + $0x28] sm:$0xff] %v3379
        %3389 = vst [vmem:[%s371 + $0x30] sm:$0xff] %v3380
        %3390 = vst [vmem:[%s371 + $0x38] sm:$0xff] %v3381
        %3391 = vst [vmem:[%s371 + $0x40] sm:$0xff] %v3382
        %p3392 = scmp.lt.s32.totalorder %s21, 1
        %s3393 = scalar_select %p3392, %s21, 1
        %s3394 = smul.addr %s3393, 9
        %s3395 = smul.addr %s3394, 8
        %s3396 = scalar_lea.vmem %s8, %s3395
        // Predicated region
        $region61: #{up_double_convertible_style_block.1} parent=51 // pred_check
          %p3397 = pneg %p222
        $region62: #{up_double_convertible_style_block.1} parent=51 // pred_check_branch
          %3399 = sbr.rel (%p3397) target = $region64
        $region63: #{up_double_convertible_style_block.1} parent=51 // pred_region
          _
        $region64: #{up_double_convertible_style_block.1} parent=51 // pred_fallthru
          _
      $region52: #{up_double_convertible_style_block.1} parent=5 // pred_fallthru
        _
      %p3400 = scmp.le.s32.totalorder 2, %s16
      // Predicated region
      $region65: #{up_double_convertible_style_block.1} parent=5 // pred_check
        %p3401 = pneg %p3400
      $region66: #{up_double_convertible_style_block.1} parent=5 // pred_check_branch
        %3403 = sbr.rel (%p3401) target = $region68
      $region67: #{up_double_convertible_style_block.1} parent=5 // pred_region
        %s3404 = ssub.s32 %s16, 2
        // Predicated region
        $region69: #{up_double_convertible_style_block.1} parent=67 // pred_check
          %p3405 = pneg %p228
        $region70: #{up_double_convertible_style_block.1} parent=67 // pred_check_branch
          %3407 = sbr.rel (%p3405) target = $region72
        $region71: #{up_double_convertible_style_block.1} parent=67 // pred_region
          %p3408 = scmp.lt.s32.totalorder %s22, 1
          %s3409 = scalar_select %p3408, %s22, 1
          %s3410 = smul.addr %s3409, 9
          %s3411 = smul.addr %s3410, 8
          %s3412 = scalar_lea.vmem %s8, %s3411
        $region72: #{up_double_convertible_style_block.1} parent=67 // pred_fallthru
          _
      $region68: #{up_double_convertible_style_block.1} parent=5 // pred_fallthru
        _
    $region6: #{up_double_convertible_style_block.1} parent=1 // loop_footer
      %s20 = sadd.s32 1, %s16
    $region7: #{up_double_convertible_style_block.1} parent=1 // loop_footer_branch
      %15 = sbr.rel target = $region3
    $region8: #{up_double_convertible_style_block.1} parent=1 // loop_exit
      _
    %3413 = vsyncpa [#allocation5], 1
    %s3414 = scalar_lea.sflag [#allocation5], 1
    %3415 = vsyncpa %s3414, 1
    %3416 = vsyncpa [#allocation7], 1

</llo_original>
